<compile_context>
chip_gen: v6e
topology: v6e:2x2x1
jax: 0.10.0
libtpu: 0.0.40
codegen_flags: <defaults>
</compile_context>

<pallas_src>
import math

import jax
import jax.numpy as jnp
from jax.experimental import pallas as pl
from jax.experimental.pallas import tpu as pltpu  # noqa: F401  (TPU backend)

# ---------------- config ----------------
B = 2            # batch
S = 8            # decoder sequence length
S_ENC = 8        # encoder sequence length (== S so block constants are shared)
D_MODEL = 32
NUM_HEADS = 4
D_HEAD = D_MODEL // NUM_HEADS
D_FF = 64
ROUTER_HIDDEN = D_MODEL * 4
EPS_LN = 1e-6


# ---------------- fused Pallas kernel ----------------
def fused_decoder_kernel(
    x_ref, enc_ref,
    hmask_ref, bsum_ref, pair_ref,
    ln1g_ref, ln1b_ref, ln2g_ref, ln2b_ref, ln3g_ref, ln3b_ref,
    # self-attention params (q-scale pre-folded into wq/bq)
    s_wq, s_bq, s_wk, s_bk, s_wv, s_bv, s_wo, s_bo,
    s_wup, s_bup, s_wg, s_bg, s_wd, s_bd,
    # cross-attention params (q-scale pre-folded into wq/bq)
    c_wq, c_bq, c_wk, c_bk, c_wv, c_bv, c_wo, c_bo,
    c_wup, c_bup, c_wg, c_bg, c_wd, c_bd,
    # feed-forward params
    f_w1, f_b1, f_w2, f_b2,
    # outputs
    out_ref, ent_ref,
):
    f32 = jnp.float32
    x = x_ref[...]            # (B*S, D)
    enc = enc_ref[...]        # (B*S_enc, D)
    hmask = hmask_ref[...]    # (H*S_kv, D)   block-diag head mask for K/V rows
    bsum = bsum_ref[...]      # (H*S_kv, H*S_kv) block-ones (per-head row sums)
    pair = pair_ref[...]      # (2H, 2H)      pair-ones (router 2-way softmax)

    def layer_norm(v, g_ref, b_ref):
        mu = jnp.mean(v, axis=-1, keepdims=True)
        var = jnp.mean((v - mu) ** 2, axis=-1, keepdims=True)
        return (v - mu) * jax.lax.rsqrt(var + EPS_LN) * g_ref[...] + b_ref[...]

    def dense(v, w_ref, b_ref):
        return jnp.dot(v, w_ref[...], preferred_element_type=f32) + b_ref[...]

    def attention(nx, kv, res, s_kv,
                  wq, bq, wk, bk, wv, bv, wo, bo, wup, bup, wg, bg, wd, bd):
        # Projections + router on the batch-flattened activations (16 rows).
        q = dense(nx, wq, bq)          # (B*S, D), already scaled by 1/sqrt(dh)
        k = dense(kv, wk, bk)          # (B*s_kv, D)
        v = dense(kv, wv, bv)          # (B*s_kv, D)

        # RoutingNetwork.  On this path ctx_col == ctx_row and the per-head
        # routing weights sum to 1, so the routed mix is the identity; only
        # the mean entropy is needed.
        up = dense(nx, wup, bup)
        gate = dense(nx, wg, bg)
        logits = dense(up * jax.nn.sigmoid(up) * gate, wd, bd)      # (B*S, 2H)
        el = jnp.exp(logits - jnp.max(logits, axis=-1, keepdims=True))
        r = el / jnp.dot(el, pair, preferred_element_type=f32)      # pairwise softmax
        ent_rows = jnp.sum(-r * jnp.log(r + 1e-9), axis=-1, keepdims=True)  # (B*S, 1)

        # All-head attention with a single block-diagonally masked score matmul
        # per batch element (static 2-iteration unroll; no per-head loop, no
        # lane slicing, no head concatenation).
        ctx_parts = []
        for b in range(B):
            qb = q[b * S:(b + 1) * S, :]                             # (S, D)
            kb = k[b * s_kv:(b + 1) * s_kv, :]                       # (s_kv, D)
            vb = v[b * s_kv:(b + 1) * s_kv, :]                       # (s_kv, D)
            kx = jnp.concatenate([kb] * NUM_HEADS, axis=0) * hmask   # (H*s_kv, D)
            vx = jnp.concatenate([vb] * NUM_HEADS, axis=0) * hmask   # (H*s_kv, D)
            s = jnp.dot(qb, kx.T, preferred_element_type=f32)        # (S, H*s_kv)
            # row-wide max is constant per row -> exact per-head softmax shift
            s = s - jnp.max(s, axis=-1, keepdims=True)
            p = jnp.exp(s)
            p = p / jnp.dot(p, bsum, preferred_element_type=f32)     # per-head denom
            # heads land directly in their lane slots of the context
            ctx_parts.append(jnp.dot(p, vx, preferred_element_type=f32))  # (S, D)
        ctx = jnp.concatenate(ctx_parts, axis=0)                     # (B*S, D)
        return res + dense(ctx, wo, bo), ent_rows

    # ----- decoder layer -----
    nx1 = layer_norm(x, ln1g_ref, ln1b_ref)
    x1, e1 = attention(nx1, nx1, x, S,
                       s_wq, s_bq, s_wk, s_bk, s_wv, s_bv, s_wo, s_bo,
                       s_wup, s_bup, s_wg, s_bg, s_wd, s_bd)
    nx2 = layer_norm(x1, ln2g_ref, ln2b_ref)
    x2, e2 = attention(nx2, enc, x1, S_ENC,
                       c_wq, c_bq, c_wk, c_bk, c_wv, c_bv, c_wo, c_bo,
                       c_wup, c_bup, c_wg, c_bg, c_wd, c_bd)
    nx3 = layer_norm(x2, ln3g_ref, ln3b_ref)
    h = jnp.maximum(dense(nx3, f_w1, f_b1), 0.0)
    out_ref[...] = x2 + dense(h, f_w2, f_b2)

    # scalar entropy loss: mean(self) + mean(cross) over (B, S, H)
    n_tokens = x.shape[0]
    ent_ref[...] = jnp.sum(e1 + e2, axis=0, keepdims=True) * (
        1.0 / (n_tokens * NUM_HEADS))


# ---------------- wrapper ----------------
@jax.jit
def decoder_layer(x, encoder_output, p):
    Bq, Sq, D = x.shape
    Se = encoder_output.shape[1]
    assert Sq == Se, "shared block-diagonal constants assume equal kv lengths"
    BSq = Bq * Sq

    # Fold the 1/sqrt(d_head) score scale into the query projection (free).
    scale = 1.0 / math.sqrt(D_HEAD)

    def fold_scale(prm):
        wq, bq, *rest = prm
        return (wq * scale, bq * scale) + tuple(rest)

    # Constant masks (built once outside the kernel).
    hrow = jnp.repeat(jnp.arange(NUM_HEADS), Sq)
    hcol = jnp.repeat(jnp.arange(NUM_HEADS), D_HEAD)
    hmask = (hrow[:, None] == hcol[None, :]).astype(jnp.float32)   # (H*S, D)
    blk = jnp.arange(NUM_HEADS * Sq) // Sq
    bsum = (blk[:, None] == blk[None, :]).astype(jnp.float32)      # (H*S, H*S)
    pr = jnp.arange(2 * NUM_HEADS) // 2
    pair = (pr[:, None] == pr[None, :]).astype(jnp.float32)        # (2H, 2H)

    args = (
        x.reshape(BSq, D), encoder_output.reshape(Bq * Se, D),
        hmask, bsum, pair,
        p["ln1_g"], p["ln1_b"], p["ln2_g"], p["ln2_b"], p["ln3_g"], p["ln3_b"],
        *fold_scale(p["self_attn"]),
        *fold_scale(p["cross_attn"]),
        *p["ffn"],
    )

    # Single fused, grid-free pallas_call: every operand is one whole-array
    # VMEM block (weights stay resident for the full layer).
    out_flat, ent = pl.pallas_call(
        fused_decoder_kernel,
        out_shape=(jax.ShapeDtypeStruct((BSq, D), jnp.float32),
                   jax.ShapeDtypeStruct((1, 1), jnp.float32)),
    )(*args)
    return out_flat.reshape(Bq, Sq, D), ent[0, 0]


# ---------------- pure-JAX reference (for correctness check) ----------------
def _ref_ln(x, g, b):
    mean = jnp.mean(x, -1, keepdims=True)
    var = jnp.mean((x - mean) ** 2, -1, keepdims=True)
    return (x - mean) / jnp.sqrt(var + EPS_LN) * g + b


def _ref_attn(q_src, kv_src, residual, params):
    wq, bq, wk, bk, wv, bv, wo, bo, wup, bup, wg, bg, wd, bd = params
    Bq, Sq, _ = q_src.shape
    Skv = kv_src.shape[1]
    q = (q_src @ wq + bq).reshape(Bq, Sq, NUM_HEADS, D_HEAD).transpose(0, 2, 1, 3)
    k = (kv_src @ wk + bk).reshape(Bq, Skv, NUM_HEADS, D_HEAD).transpose(0, 2, 1, 3)
    v = (kv_src @ wv + bv).reshape(Bq, Skv, NUM_HEADS, D_HEAD).transpose(0, 2, 1, 3)
    s = jnp.einsum("bhqd,bhkd->bhqk", q, k) / math.sqrt(D_HEAD)
    p = jax.nn.softmax(s, -1)
    ctx_row = jnp.einsum("bhqk,bhkd->bhqd", p, v)
    ctx_col = ctx_row
    up = q_src @ wup + bup
    gate = q_src @ wg + bg
    act = jax.nn.silu(up) * gate
    logits = (act @ wd + bd).reshape(Bq, Sq, NUM_HEADS, 2)
    rw = jax.nn.softmax(logits, -1)
    ent = -jnp.sum(rw * jnp.log(rw + 1e-9), -1)
    rw = rw.transpose(0, 2, 1, 3)
    ctx = rw[..., 0:1] * ctx_row + rw[..., 1:2] * ctx_col
    ctx = ctx.transpose(0, 2, 1, 3).reshape(Bq, Sq, D_MODEL)
    return residual + ctx @ wo + bo, jnp.mean(ent)


def _ref_decoder(x, enc, p):
    nx1 = _ref_ln(x, p["ln1_g"], p["ln1_b"])
    x1, e1 = _ref_attn(nx1, nx1, x, p["self_attn"])
    nx2 = _ref_ln(x1, p["ln2_g"], p["ln2_b"])
    x2, e2 = _ref_attn(nx2, enc, x1, p["cross_attn"])
    nx3 = _ref_ln(x2, p["ln3_g"], p["ln3_b"])
    w1, b1, w2, b2 = p["ffn"]
    x3 = x2 + jnp.maximum(nx3 @ w1 + b1, 0.0) @ w2 + b2
    return x3, e1 + e2


# ---------------- deterministic parameter init ----------------
def _init_linear(key, fan_in, fan_out):
    kw, kb = jax.random.split(key)
    w = jax.random.normal(kw, (fan_in, fan_out), jnp.float32) * 0.05
    b = jax.random.normal(kb, (1, fan_out), jnp.float32) * 0.01
    return w, b


def _init_attention(key):
    ks = jax.random.split(key, 7)
    wq, bq = _init_linear(ks[0], D_MODEL, D_MODEL)
    wk, bk = _init_linear(ks[1], D_MODEL, D_MODEL)
    wv, bv = _init_linear(ks[2], D_MODEL, D_MODEL)
    wo, bo = _init_linear(ks[3], D_MODEL, D_MODEL)
    wup, bup = _init_linear(ks[4], D_MODEL, ROUTER_HIDDEN)
    wg, bg = _init_linear(ks[5], D_MODEL, ROUTER_HIDDEN)
    wd, bd = _init_linear(ks[6], ROUTER_HIDDEN, NUM_HEADS * 2)
    return (wq, bq, wk, bk, wv, bv, wo, bo, wup, bup, wg, bg, wd, bd)


if __name__ == "__main__":
    key = jax.random.PRNGKey(0)
    kx, kenc, ksa, kca, kff = jax.random.split(key, 5)

    x = jax.random.normal(kx, (B, S, D_MODEL), jnp.float32)
    encoder_output = jax.random.normal(kenc, (B, S_ENC, D_MODEL), jnp.float32)

    kff1, kff2 = jax.random.split(kff)
    w1, b1 = _init_linear(kff1, D_MODEL, D_FF)
    w2, b2 = _init_linear(kff2, D_FF, D_MODEL)

    params = {
        "ln1_g": jnp.ones((1, D_MODEL), jnp.float32),
        "ln1_b": jnp.zeros((1, D_MODEL), jnp.float32),
        "ln2_g": jnp.ones((1, D_MODEL), jnp.float32),
        "ln2_b": jnp.zeros((1, D_MODEL), jnp.float32),
        "ln3_g": jnp.ones((1, D_MODEL), jnp.float32),
        "ln3_b": jnp.zeros((1, D_MODEL), jnp.float32),
        "self_attn": _init_attention(ksa),
        "cross_attn": _init_attention(kca),
        "ffn": (w1, b1, w2, b2),
    }

    out, loss = decoder_layer(x, encoder_output, params)
    out, loss = jax.block_until_ready((out, loss))

    ref_out, ref_loss = _ref_decoder(x, encoder_output, params)
    assert out.shape == (B, S, D_MODEL)
    assert jnp.allclose(out, ref_out, atol=1e-4, rtol=1e-4), "output mismatch"
    assert jnp.allclose(loss, ref_loss, atol=1e-4, rtol=1e-4), "entropy loss mismatch"

    # TODO(synk): the data-dependent permuted column-attention path
    # (position_indices + relative_attention_bias_module) and stochastic
    # dropout are not exercised here (forward defaults -> None / eval mode).
    print("KERNEL_OK")
</pallas_src>

<mosaic_0001>
module attributes {stable_mosaic.version = 11 : i64} {
  func.func @fused_decoder_kernel(%arg0: memref<16x32xf32, #tpu.memory_space<vmem>>, %arg1: memref<16x32xf32, #tpu.memory_space<vmem>>, %arg2: memref<32x32xf32, #tpu.memory_space<vmem>>, %arg3: memref<32x32xf32, #tpu.memory_space<vmem>>, %arg4: memref<8x8xf32, #tpu.memory_space<vmem>>, %arg5: memref<1x32xf32, #tpu.memory_space<vmem>>, %arg6: memref<1x32xf32, #tpu.memory_space<vmem>>, %arg7: memref<1x32xf32, #tpu.memory_space<vmem>>, %arg8: memref<1x32xf32, #tpu.memory_space<vmem>>, %arg9: memref<1x32xf32, #tpu.memory_space<vmem>>, %arg10: memref<1x32xf32, #tpu.memory_space<vmem>>, %arg11: memref<32x32xf32, #tpu.memory_space<vmem>>, %arg12: memref<1x32xf32, #tpu.memory_space<vmem>>, %arg13: memref<32x32xf32, #tpu.memory_space<vmem>>, %arg14: memref<1x32xf32, #tpu.memory_space<vmem>>, %arg15: memref<32x32xf32, #tpu.memory_space<vmem>>, %arg16: memref<1x32xf32, #tpu.memory_space<vmem>>, %arg17: memref<32x32xf32, #tpu.memory_space<vmem>>, %arg18: memref<1x32xf32, #tpu.memory_space<vmem>>, %arg19: memref<32x128xf32, #tpu.memory_space<vmem>>, %arg20: memref<1x128xf32, #tpu.memory_space<vmem>>, %arg21: memref<32x128xf32, #tpu.memory_space<vmem>>, %arg22: memref<1x128xf32, #tpu.memory_space<vmem>>, %arg23: memref<128x8xf32, #tpu.memory_space<vmem>>, %arg24: memref<1x8xf32, #tpu.memory_space<vmem>>, %arg25: memref<32x32xf32, #tpu.memory_space<vmem>>, %arg26: memref<1x32xf32, #tpu.memory_space<vmem>>, %arg27: memref<32x32xf32, #tpu.memory_space<vmem>>, %arg28: memref<1x32xf32, #tpu.memory_space<vmem>>, %arg29: memref<32x32xf32, #tpu.memory_space<vmem>>, %arg30: memref<1x32xf32, #tpu.memory_space<vmem>>, %arg31: memref<32x32xf32, #tpu.memory_space<vmem>>, %arg32: memref<1x32xf32, #tpu.memory_space<vmem>>, %arg33: memref<32x128xf32, #tpu.memory_space<vmem>>, %arg34: memref<1x128xf32, #tpu.memory_space<vmem>>, %arg35: memref<32x128xf32, #tpu.memory_space<vmem>>, %arg36: memref<1x128xf32, #tpu.memory_space<vmem>>, %arg37: memref<128x8xf32, #tpu.memory_space<vmem>>, %arg38: memref<1x8xf32, #tpu.memory_space<vmem>>, %arg39: memref<32x64xf32, #tpu.memory_space<vmem>>, %arg40: memref<1x64xf32, #tpu.memory_space<vmem>>, %arg41: memref<64x32xf32, #tpu.memory_space<vmem>>, %arg42: memref<1x32xf32, #tpu.memory_space<vmem>>, %arg43: memref<16x32xf32, #tpu.memory_space<vmem>>, %arg44: memref<1x1xf32, #tpu.memory_space<vmem>>) attributes {dimension_semantics = [], scalar_prefetch = 0 : i64, scratch_operands = 0 : i64, tpu.core_type = #tpu.core_type<tc>} {
    %c0 = arith.constant 0 : index
    %c0_0 = arith.constant 0 : index
    %0 = vector.load %arg0[%c0, %c0_0] : memref<16x32xf32, #tpu.memory_space<vmem>>, vector<16x32xf32>
    %c0_1 = arith.constant 0 : index
    %c0_2 = arith.constant 0 : index
    %1 = vector.load %arg1[%c0_1, %c0_2] : memref<16x32xf32, #tpu.memory_space<vmem>>, vector<16x32xf32>
    %c0_3 = arith.constant 0 : index
    %c0_4 = arith.constant 0 : index
    %2 = vector.load %arg2[%c0_3, %c0_4] : memref<32x32xf32, #tpu.memory_space<vmem>>, vector<32x32xf32>
    %c0_5 = arith.constant 0 : index
    %c0_6 = arith.constant 0 : index
    %3 = vector.load %arg3[%c0_5, %c0_6] : memref<32x32xf32, #tpu.memory_space<vmem>>, vector<32x32xf32>
    %c0_7 = arith.constant 0 : index
    %c0_8 = arith.constant 0 : index
    %4 = vector.load %arg4[%c0_7, %c0_8] : memref<8x8xf32, #tpu.memory_space<vmem>>, vector<8x8xf32>
    %cst = arith.constant dense<0.000000e+00> : vector<16xf32>
    %5 = vector.multi_reduction <add>, %0, %cst [1] : vector<16x32xf32> to vector<16xf32>
    %6 = vector.shape_cast %5 : vector<16xf32> to vector<16x1xf32>
    %cst_9 = arith.constant 3.200000e+01 : f32
    %7 = vector.broadcast %cst_9 : f32 to vector<16x1xf32>
    %8 = arith.divf %6, %7 : vector<16x1xf32>
    %9 = vector.broadcast %8 : vector<16x1xf32> to vector<16x32xf32>
    %10 = arith.subf %0, %9 : vector<16x32xf32>
    %11 = arith.mulf %10, %10 : vector<16x32xf32>
    %cst_10 = arith.constant dense<0.000000e+00> : vector<16xf32>
    %12 = vector.multi_reduction <add>, %11, %cst_10 [1] : vector<16x32xf32> to vector<16xf32>
    %13 = vector.shape_cast %12 : vector<16xf32> to vector<16x1xf32>
    %cst_11 = arith.constant 3.200000e+01 : f32
    %14 = vector.broadcast %cst_11 : f32 to vector<16x1xf32>
    %15 = arith.divf %13, %14 : vector<16x1xf32>
    %16 = vector.broadcast %8 : vector<16x1xf32> to vector<16x32xf32>
    %17 = arith.subf %0, %16 : vector<16x32xf32>
    %cst_12 = arith.constant 9.99999997E-7 : f32
    %18 = vector.broadcast %cst_12 : f32 to vector<16x1xf32>
    %19 = arith.addf %15, %18 : vector<16x1xf32>
    %20 = math.rsqrt %19 : vector<16x1xf32>
    %21 = vector.broadcast %20 : vector<16x1xf32> to vector<16x32xf32>
    %22 = arith.mulf %17, %21 : vector<16x32xf32>
    %c0_13 = arith.constant 0 : index
    %c0_14 = arith.constant 0 : index
    %23 = vector.load %arg5[%c0_13, %c0_14] : memref<1x32xf32, #tpu.memory_space<vmem>>, vector<1x32xf32>
    %24 = vector.broadcast %23 : vector<1x32xf32> to vector<16x32xf32>
    %25 = arith.mulf %22, %24 : vector<16x32xf32>
    %c0_15 = arith.constant 0 : index
    %c0_16 = arith.constant 0 : index
    %26 = vector.load %arg6[%c0_15, %c0_16] : memref<1x32xf32, #tpu.memory_space<vmem>>, vector<1x32xf32>
    %27 = vector.broadcast %26 : vector<1x32xf32> to vector<16x32xf32>
    %28 = arith.addf %25, %27 : vector<16x32xf32>
    %c0_17 = arith.constant 0 : index
    %c0_18 = arith.constant 0 : index
    %29 = vector.load %arg11[%c0_17, %c0_18] : memref<32x32xf32, #tpu.memory_space<vmem>>, vector<32x32xf32>
    %cst_19 = arith.constant dense<0.000000e+00> : vector<16x32xf32>
    %30 = tpu.matmul %28, %29, %cst_19 {dimension_numbers = #tpu.dot_dimension_numbers<[1], [0], [0], [1], [0, 0, 1, 1], [], []>} : vector<16x32xf32>, vector<32x32xf32>, vector<16x32xf32> -> vector<16x32xf32>
    %c0_20 = arith.constant 0 : index
    %c0_21 = arith.constant 0 : index
    %31 = vector.load %arg12[%c0_20, %c0_21] : memref<1x32xf32, #tpu.memory_space<vmem>>, vector<1x32xf32>
    %32 = vector.broadcast %31 : vector<1x32xf32> to vector<16x32xf32>
    %33 = arith.addf %30, %32 : vector<16x32xf32>
    %c0_22 = arith.constant 0 : index
    %c0_23 = arith.constant 0 : index
    %34 = vector.load %arg13[%c0_22, %c0_23] : memref<32x32xf32, #tpu.memory_space<vmem>>, vector<32x32xf32>
    %cst_24 = arith.constant dense<0.000000e+00> : vector<16x32xf32>
    %35 = tpu.matmul %28, %34, %cst_24 {dimension_numbers = #tpu.dot_dimension_numbers<[1], [0], [0], [1], [0, 0, 1, 1], [], []>} : vector<16x32xf32>, vector<32x32xf32>, vector<16x32xf32> -> vector<16x32xf32>
    %c0_25 = arith.constant 0 : index
    %c0_26 = arith.constant 0 : index
    %36 = vector.load %arg14[%c0_25, %c0_26] : memref<1x32xf32, #tpu.memory_space<vmem>>, vector<1x32xf32>
    %37 = vector.broadcast %36 : vector<1x32xf32> to vector<16x32xf32>
    %38 = arith.addf %35, %37 : vector<16x32xf32>
    %c0_27 = arith.constant 0 : index
    %c0_28 = arith.constant 0 : index
    %39 = vector.load %arg15[%c0_27, %c0_28] : memref<32x32xf32, #tpu.memory_space<vmem>>, vector<32x32xf32>
    %cst_29 = arith.constant dense<0.000000e+00> : vector<16x32xf32>
    %40 = tpu.matmul %28, %39, %cst_29 {dimension_numbers = #tpu.dot_dimension_numbers<[1], [0], [0], [1], [0, 0, 1, 1], [], []>} : vector<16x32xf32>, vector<32x32xf32>, vector<16x32xf32> -> vector<16x32xf32>
    %c0_30 = arith.constant 0 : index
    %c0_31 = arith.constant 0 : index
    %41 = vector.load %arg16[%c0_30, %c0_31] : memref<1x32xf32, #tpu.memory_space<vmem>>, vector<1x32xf32>
    %42 = vector.broadcast %41 : vector<1x32xf32> to vector<16x32xf32>
    %43 = arith.addf %40, %42 : vector<16x32xf32>
    %c0_32 = arith.constant 0 : index
    %c0_33 = arith.constant 0 : index
    %44 = vector.load %arg19[%c0_32, %c0_33] : memref<32x128xf32, #tpu.memory_space<vmem>>, vector<32x128xf32>
    %cst_34 = arith.constant dense<0.000000e+00> : vector<16x128xf32>
    %45 = tpu.matmul %28, %44, %cst_34 {dimension_numbers = #tpu.dot_dimension_numbers<[1], [0], [0], [1], [0, 0, 1, 1], [], []>} : vector<16x32xf32>, vector<32x128xf32>, vector<16x128xf32> -> vector<16x128xf32>
    %c0_35 = arith.constant 0 : index
    %c0_36 = arith.constant 0 : index
    %46 = vector.load %arg20[%c0_35, %c0_36] : memref<1x128xf32, #tpu.memory_space<vmem>>, vector<1x128xf32>
    %47 = vector.broadcast %46 : vector<1x128xf32> to vector<16x128xf32>
    %48 = arith.addf %45, %47 : vector<16x128xf32>
    %c0_37 = arith.constant 0 : index
    %c0_38 = arith.constant 0 : index
    %49 = vector.load %arg21[%c0_37, %c0_38] : memref<32x128xf32, #tpu.memory_space<vmem>>, vector<32x128xf32>
    %cst_39 = arith.constant dense<0.000000e+00> : vector<16x128xf32>
    %50 = tpu.matmul %28, %49, %cst_39 {dimension_numbers = #tpu.dot_dimension_numbers<[1], [0], [0], [1], [0, 0, 1, 1], [], []>} : vector<16x32xf32>, vector<32x128xf32>, vector<16x128xf32> -> vector<16x128xf32>
    %c0_40 = arith.constant 0 : index
    %c0_41 = arith.constant 0 : index
    %51 = vector.load %arg22[%c0_40, %c0_41] : memref<1x128xf32, #tpu.memory_space<vmem>>, vector<1x128xf32>
    %52 = vector.broadcast %51 : vector<1x128xf32> to vector<16x128xf32>
    %53 = arith.addf %50, %52 : vector<16x128xf32>
    %54 = arith.negf %48 : vector<16x128xf32>
    %55 = math.exp %54 : vector<16x128xf32>
    %cst_42 = arith.constant 1.000000e+00 : f32
    %56 = vector.broadcast %cst_42 : f32 to vector<16x128xf32>
    %57 = arith.addf %56, %55 : vector<16x128xf32>
    %58 = arith.divf %56, %57 : vector<16x128xf32>
    %59 = arith.mulf %48, %58 : vector<16x128xf32>
    %60 = arith.mulf %59, %53 : vector<16x128xf32>
    %c0_43 = arith.constant 0 : index
    %c0_44 = arith.constant 0 : index
    %61 = vector.load %arg23[%c0_43, %c0_44] : memref<128x8xf32, #tpu.memory_space<vmem>>, vector<128x8xf32>
    %cst_45 = arith.constant dense<0.000000e+00> : vector<16x8xf32>
    %62 = tpu.matmul %60, %61, %cst_45 {dimension_numbers = #tpu.dot_dimension_numbers<[1], [0], [0], [1], [0, 0, 1, 1], [], []>} : vector<16x128xf32>, vector<128x8xf32>, vector<16x8xf32> -> vector<16x8xf32>
    %c0_46 = arith.constant 0 : index
    %c0_47 = arith.constant 0 : index
    %63 = vector.load %arg24[%c0_46, %c0_47] : memref<1x8xf32, #tpu.memory_space<vmem>>, vector<1x8xf32>
    %64 = vector.broadcast %63 : vector<1x8xf32> to vector<16x8xf32>
    %65 = arith.addf %62, %64 : vector<16x8xf32>
    %cst_48 = arith.constant dense<0xFF800000> : vector<16xf32>
    %66 = vector.multi_reduction <maximumf>, %65, %cst_48 [1] : vector<16x8xf32> to vector<16xf32>
    %67 = vector.shape_cast %66 : vector<16xf32> to vector<16x1xf32>
    %68 = vector.broadcast %67 : vector<16x1xf32> to vector<16x8xf32>
    %69 = arith.subf %65, %68 : vector<16x8xf32>
    %70 = math.exp %69 : vector<16x8xf32>
    %cst_49 = arith.constant dense<0.000000e+00> : vector<16x8xf32>
    %71 = tpu.matmul %70, %4, %cst_49 {dimension_numbers = #tpu.dot_dimension_numbers<[1], [0], [0], [1], [0, 0, 1, 1], [], []>} : vector<16x8xf32>, vector<8x8xf32>, vector<16x8xf32> -> vector<16x8xf32>
    %72 = arith.divf %70, %71 : vector<16x8xf32>
    %cst_50 = arith.constant 0.000000e+00 : f32
    %73 = vector.broadcast %cst_50 : f32 to vector<16x8xf32>
    %74 = arith.subf %73, %72 : vector<16x8xf32>
    %cst_51 = arith.constant 9.99999971E-10 : f32
    %75 = vector.broadcast %cst_51 : f32 to vector<16x8xf32>
    %76 = arith.addf %72, %75 : vector<16x8xf32>
    %77 = math.log %76 : vector<16x8xf32>
    %78 = arith.mulf %74, %77 : vector<16x8xf32>
    %cst_52 = arith.constant dense<0.000000e+00> : vector<16xf32>
    %79 = vector.multi_reduction <add>, %78, %cst_52 [1] : vector<16x8xf32> to vector<16xf32>
    %80 = vector.shape_cast %79 : vector<16xf32> to vector<16x1xf32>
    %81 = vector.extract_strided_slice %33 {offsets = [0, 0], sizes = [8, 32], strides = [1, 1]} : vector<16x32xf32> to vector<8x32xf32>
    %82 = vector.extract_strided_slice %38 {offsets = [0, 0], sizes = [8, 32], strides = [1, 1]} : vector<16x32xf32> to vector<8x32xf32>
    %83 = vector.extract_strided_slice %43 {offsets = [0, 0], sizes = [8, 32], strides = [1, 1]} : vector<16x32xf32> to vector<8x32xf32>
    %84 = tpu.concatenate %82, %82, %82, %82 in 0 : vector<8x32xf32>, vector<8x32xf32>, vector<8x32xf32>, vector<8x32xf32> -> vector<32x32xf32>
    %85 = arith.mulf %84, %2 : vector<32x32xf32>
    %86 = tpu.concatenate %83, %83, %83, %83 in 0 : vector<8x32xf32>, vector<8x32xf32>, vector<8x32xf32>, vector<8x32xf32> -> vector<32x32xf32>
    %87 = arith.mulf %86, %2 : vector<32x32xf32>
    %88 = tpu.transpose %85, [1, 0] : vector<32x32xf32> -> vector<32x32xf32>
    %cst_53 = arith.constant dense<0.000000e+00> : vector<8x32xf32>
    %89 = tpu.matmul %81, %88, %cst_53 {dimension_numbers = #tpu.dot_dimension_numbers<[1], [0], [0], [1], [0, 0, 1, 1], [], []>} : vector<8x32xf32>, vector<32x32xf32>, vector<8x32xf32> -> vector<8x32xf32>
    %cst_54 = arith.constant dense<0xFF800000> : vector<8xf32>
    %90 = vector.multi_reduction <maximumf>, %89, %cst_54 [1] : vector<8x32xf32> to vector<8xf32>
    %91 = vector.shape_cast %90 : vector<8xf32> to vector<8x1xf32>
    %92 = vector.broadcast %91 : vector<8x1xf32> to vector<8x32xf32>
    %93 = arith.subf %89, %92 : vector<8x32xf32>
    %94 = math.exp %93 : vector<8x32xf32>
    %cst_55 = arith.constant dense<0.000000e+00> : vector<8x32xf32>
    %95 = tpu.matmul %94, %3, %cst_55 {dimension_numbers = #tpu.dot_dimension_numbers<[1], [0], [0], [1], [0, 0, 1, 1], [], []>} : vector<8x32xf32>, vector<32x32xf32>, vector<8x32xf32> -> vector<8x32xf32>
    %96 = arith.divf %94, %95 : vector<8x32xf32>
    %cst_56 = arith.constant dense<0.000000e+00> : vector<8x32xf32>
    %97 = tpu.matmul %96, %87, %cst_56 {dimension_numbers = #tpu.dot_dimension_numbers<[1], [0], [0], [1], [0, 0, 1, 1], [], []>} : vector<8x32xf32>, vector<32x32xf32>, vector<8x32xf32> -> vector<8x32xf32>
    %98 = vector.extract_strided_slice %33 {offsets = [8, 0], sizes = [8, 32], strides = [1, 1]} : vector<16x32xf32> to vector<8x32xf32>
    %99 = vector.extract_strided_slice %38 {offsets = [8, 0], sizes = [8, 32], strides = [1, 1]} : vector<16x32xf32> to vector<8x32xf32>
    %100 = vector.extract_strided_slice %43 {offsets = [8, 0], sizes = [8, 32], strides = [1, 1]} : vector<16x32xf32> to vector<8x32xf32>
    %101 = tpu.concatenate %99, %99, %99, %99 in 0 : vector<8x32xf32>, vector<8x32xf32>, vector<8x32xf32>, vector<8x32xf32> -> vector<32x32xf32>
    %102 = arith.mulf %101, %2 : vector<32x32xf32>
    %103 = tpu.concatenate %100, %100, %100, %100 in 0 : vector<8x32xf32>, vector<8x32xf32>, vector<8x32xf32>, vector<8x32xf32> -> vector<32x32xf32>
    %104 = arith.mulf %103, %2 : vector<32x32xf32>
    %105 = tpu.transpose %102, [1, 0] : vector<32x32xf32> -> vector<32x32xf32>
    %cst_57 = arith.constant dense<0.000000e+00> : vector<8x32xf32>
    %106 = tpu.matmul %98, %105, %cst_57 {dimension_numbers = #tpu.dot_dimension_numbers<[1], [0], [0], [1], [0, 0, 1, 1], [], []>} : vector<8x32xf32>, vector<32x32xf32>, vector<8x32xf32> -> vector<8x32xf32>
    %cst_58 = arith.constant dense<0xFF800000> : vector<8xf32>
    %107 = vector.multi_reduction <maximumf>, %106, %cst_58 [1] : vector<8x32xf32> to vector<8xf32>
    %108 = vector.shape_cast %107 : vector<8xf32> to vector<8x1xf32>
    %109 = vector.broadcast %108 : vector<8x1xf32> to vector<8x32xf32>
    %110 = arith.subf %106, %109 : vector<8x32xf32>
    %111 = math.exp %110 : vector<8x32xf32>
    %cst_59 = arith.constant dense<0.000000e+00> : vector<8x32xf32>
    %112 = tpu.matmul %111, %3, %cst_59 {dimension_numbers = #tpu.dot_dimension_numbers<[1], [0], [0], [1], [0, 0, 1, 1], [], []>} : vector<8x32xf32>, vector<32x32xf32>, vector<8x32xf32> -> vector<8x32xf32>
    %113 = arith.divf %111, %112 : vector<8x32xf32>
    %cst_60 = arith.constant dense<0.000000e+00> : vector<8x32xf32>
    %114 = tpu.matmul %113, %104, %cst_60 {dimension_numbers = #tpu.dot_dimension_numbers<[1], [0], [0], [1], [0, 0, 1, 1], [], []>} : vector<8x32xf32>, vector<32x32xf32>, vector<8x32xf32> -> vector<8x32xf32>
    %115 = tpu.concatenate %97, %114 in 0 : vector<8x32xf32>, vector<8x32xf32> -> vector<16x32xf32>
    %c0_61 = arith.constant 0 : index
    %c0_62 = arith.constant 0 : index
    %116 = vector.load %arg17[%c0_61, %c0_62] : memref<32x32xf32, #tpu.memory_space<vmem>>, vector<32x32xf32>
    %cst_63 = arith.constant dense<0.000000e+00> : vector<16x32xf32>
    %117 = tpu.matmul %115, %116, %cst_63 {dimension_numbers = #tpu.dot_dimension_numbers<[1], [0], [0], [1], [0, 0, 1, 1], [], []>} : vector<16x32xf32>, vector<32x32xf32>, vector<16x32xf32> -> vector<16x32xf32>
    %c0_64 = arith.constant 0 : index
    %c0_65 = arith.constant 0 : index
    %118 = vector.load %arg18[%c0_64, %c0_65] : memref<1x32xf32, #tpu.memory_space<vmem>>, vector<1x32xf32>
    %119 = vector.broadcast %118 : vector<1x32xf32> to vector<16x32xf32>
    %120 = arith.addf %117, %119 : vector<16x32xf32>
    %121 = arith.addf %0, %120 : vector<16x32xf32>
    %cst_66 = arith.constant dense<0.000000e+00> : vector<16xf32>
    %122 = vector.multi_reduction <add>, %121, %cst_66 [1] : vector<16x32xf32> to vector<16xf32>
    %123 = vector.shape_cast %122 : vector<16xf32> to vector<16x1xf32>
    %cst_67 = arith.constant 3.200000e+01 : f32
    %124 = vector.broadcast %cst_67 : f32 to vector<16x1xf32>
    %125 = arith.divf %123, %124 : vector<16x1xf32>
    %126 = vector.broadcast %125 : vector<16x1xf32> to vector<16x32xf32>
    %127 = arith.subf %121, %126 : vector<16x32xf32>
    %128 = arith.mulf %127, %127 : vector<16x32xf32>
    %cst_68 = arith.constant dense<0.000000e+00> : vector<16xf32>
    %129 = vector.multi_reduction <add>, %128, %cst_68 [1] : vector<16x32xf32> to vector<16xf32>
    %130 = vector.shape_cast %129 : vector<16xf32> to vector<16x1xf32>
    %cst_69 = arith.constant 3.200000e+01 : f32
    %131 = vector.broadcast %cst_69 : f32 to vector<16x1xf32>
    %132 = arith.divf %130, %131 : vector<16x1xf32>
    %133 = vector.broadcast %125 : vector<16x1xf32> to vector<16x32xf32>
    %134 = arith.subf %121, %133 : vector<16x32xf32>
    %cst_70 = arith.constant 9.99999997E-7 : f32
    %135 = vector.broadcast %cst_70 : f32 to vector<16x1xf32>
    %136 = arith.addf %132, %135 : vector<16x1xf32>
    %137 = math.rsqrt %136 : vector<16x1xf32>
    %138 = vector.broadcast %137 : vector<16x1xf32> to vector<16x32xf32>
    %139 = arith.mulf %134, %138 : vector<16x32xf32>
    %c0_71 = arith.constant 0 : index
    %c0_72 = arith.constant 0 : index
    %140 = vector.load %arg7[%c0_71, %c0_72] : memref<1x32xf32, #tpu.memory_space<vmem>>, vector<1x32xf32>
    %141 = vector.broadcast %140 : vector<1x32xf32> to vector<16x32xf32>
    %142 = arith.mulf %139, %141 : vector<16x32xf32>
    %c0_73 = arith.constant 0 : index
    %c0_74 = arith.constant 0 : index
    %143 = vector.load %arg8[%c0_73, %c0_74] : memref<1x32xf32, #tpu.memory_space<vmem>>, vector<1x32xf32>
    %144 = vector.broadcast %143 : vector<1x32xf32> to vector<16x32xf32>
    %145 = arith.addf %142, %144 : vector<16x32xf32>
    %c0_75 = arith.constant 0 : index
    %c0_76 = arith.constant 0 : index
    %146 = vector.load %arg25[%c0_75, %c0_76] : memref<32x32xf32, #tpu.memory_space<vmem>>, vector<32x32xf32>
    %cst_77 = arith.constant dense<0.000000e+00> : vector<16x32xf32>
    %147 = tpu.matmul %145, %146, %cst_77 {dimension_numbers = #tpu.dot_dimension_numbers<[1], [0], [0], [1], [0, 0, 1, 1], [], []>} : vector<16x32xf32>, vector<32x32xf32>, vector<16x32xf32> -> vector<16x32xf32>
    %c0_78 = arith.constant 0 : index
    %c0_79 = arith.constant 0 : index
    %148 = vector.load %arg26[%c0_78, %c0_79] : memref<1x32xf32, #tpu.memory_space<vmem>>, vector<1x32xf32>
    %149 = vector.broadcast %148 : vector<1x32xf32> to vector<16x32xf32>
    %150 = arith.addf %147, %149 : vector<16x32xf32>
    %c0_80 = arith.constant 0 : index
    %c0_81 = arith.constant 0 : index
    %151 = vector.load %arg27[%c0_80, %c0_81] : memref<32x32xf32, #tpu.memory_space<vmem>>, vector<32x32xf32>
    %cst_82 = arith.constant dense<0.000000e+00> : vector<16x32xf32>
    %152 = tpu.matmul %1, %151, %cst_82 {dimension_numbers = #tpu.dot_dimension_numbers<[1], [0], [0], [1], [0, 0, 1, 1], [], []>} : vector<16x32xf32>, vector<32x32xf32>, vector<16x32xf32> -> vector<16x32xf32>
    %c0_83 = arith.constant 0 : index
    %c0_84 = arith.constant 0 : index
    %153 = vector.load %arg28[%c0_83, %c0_84] : memref<1x32xf32, #tpu.memory_space<vmem>>, vector<1x32xf32>
    %154 = vector.broadcast %153 : vector<1x32xf32> to vector<16x32xf32>
    %155 = arith.addf %152, %154 : vector<16x32xf32>
    %c0_85 = arith.constant 0 : index
    %c0_86 = arith.constant 0 : index
    %156 = vector.load %arg29[%c0_85, %c0_86] : memref<32x32xf32, #tpu.memory_space<vmem>>, vector<32x32xf32>
    %cst_87 = arith.constant dense<0.000000e+00> : vector<16x32xf32>
    %157 = tpu.matmul %1, %156, %cst_87 {dimension_numbers = #tpu.dot_dimension_numbers<[1], [0], [0], [1], [0, 0, 1, 1], [], []>} : vector<16x32xf32>, vector<32x32xf32>, vector<16x32xf32> -> vector<16x32xf32>
    %c0_88 = arith.constant 0 : index
    %c0_89 = arith.constant 0 : index
    %158 = vector.load %arg30[%c0_88, %c0_89] : memref<1x32xf32, #tpu.memory_space<vmem>>, vector<1x32xf32>
    %159 = vector.broadcast %158 : vector<1x32xf32> to vector<16x32xf32>
    %160 = arith.addf %157, %159 : vector<16x32xf32>
    %c0_90 = arith.constant 0 : index
    %c0_91 = arith.constant 0 : index
    %161 = vector.load %arg33[%c0_90, %c0_91] : memref<32x128xf32, #tpu.memory_space<vmem>>, vector<32x128xf32>
    %cst_92 = arith.constant dense<0.000000e+00> : vector<16x128xf32>
    %162 = tpu.matmul %145, %161, %cst_92 {dimension_numbers = #tpu.dot_dimension_numbers<[1], [0], [0], [1], [0, 0, 1, 1], [], []>} : vector<16x32xf32>, vector<32x128xf32>, vector<16x128xf32> -> vector<16x128xf32>
    %c0_93 = arith.constant 0 : index
    %c0_94 = arith.constant 0 : index
    %163 = vector.load %arg34[%c0_93, %c0_94] : memref<1x128xf32, #tpu.memory_space<vmem>>, vector<1x128xf32>
    %164 = vector.broadcast %163 : vector<1x128xf32> to vector<16x128xf32>
    %165 = arith.addf %162, %164 : vector<16x128xf32>
    %c0_95 = arith.constant 0 : index
    %c0_96 = arith.constant 0 : index
    %166 = vector.load %arg35[%c0_95, %c0_96] : memref<32x128xf32, #tpu.memory_space<vmem>>, vector<32x128xf32>
    %cst_97 = arith.constant dense<0.000000e+00> : vector<16x128xf32>
    %167 = tpu.matmul %145, %166, %cst_97 {dimension_numbers = #tpu.dot_dimension_numbers<[1], [0], [0], [1], [0, 0, 1, 1], [], []>} : vector<16x32xf32>, vector<32x128xf32>, vector<16x128xf32> -> vector<16x128xf32>
    %c0_98 = arith.constant 0 : index
    %c0_99 = arith.constant 0 : index
    %168 = vector.load %arg36[%c0_98, %c0_99] : memref<1x128xf32, #tpu.memory_space<vmem>>, vector<1x128xf32>
    %169 = vector.broadcast %168 : vector<1x128xf32> to vector<16x128xf32>
    %170 = arith.addf %167, %169 : vector<16x128xf32>
    %171 = arith.negf %165 : vector<16x128xf32>
    %172 = math.exp %171 : vector<16x128xf32>
    %cst_100 = arith.constant 1.000000e+00 : f32
    %173 = vector.broadcast %cst_100 : f32 to vector<16x128xf32>
    %174 = arith.addf %173, %172 : vector<16x128xf32>
    %175 = arith.divf %173, %174 : vector<16x128xf32>
    %176 = arith.mulf %165, %175 : vector<16x128xf32>
    %177 = arith.mulf %176, %170 : vector<16x128xf32>
    %c0_101 = arith.constant 0 : index
    %c0_102 = arith.constant 0 : index
    %178 = vector.load %arg37[%c0_101, %c0_102] : memref<128x8xf32, #tpu.memory_space<vmem>>, vector<128x8xf32>
    %cst_103 = arith.constant dense<0.000000e+00> : vector<16x8xf32>
    %179 = tpu.matmul %177, %178, %cst_103 {dimension_numbers = #tpu.dot_dimension_numbers<[1], [0], [0], [1], [0, 0, 1, 1], [], []>} : vector<16x128xf32>, vector<128x8xf32>, vector<16x8xf32> -> vector<16x8xf32>
    %c0_104 = arith.constant 0 : index
    %c0_105 = arith.constant 0 : index
    %180 = vector.load %arg38[%c0_104, %c0_105] : memref<1x8xf32, #tpu.memory_space<vmem>>, vector<1x8xf32>
    %181 = vector.broadcast %180 : vector<1x8xf32> to vector<16x8xf32>
    %182 = arith.addf %179, %181 : vector<16x8xf32>
    %cst_106 = arith.constant dense<0xFF800000> : vector<16xf32>
    %183 = vector.multi_reduction <maximumf>, %182, %cst_106 [1] : vector<16x8xf32> to vector<16xf32>
    %184 = vector.shape_cast %183 : vector<16xf32> to vector<16x1xf32>
    %185 = vector.broadcast %184 : vector<16x1xf32> to vector<16x8xf32>
    %186 = arith.subf %182, %185 : vector<16x8xf32>
    %187 = math.exp %186 : vector<16x8xf32>
    %cst_107 = arith.constant dense<0.000000e+00> : vector<16x8xf32>
    %188 = tpu.matmul %187, %4, %cst_107 {dimension_numbers = #tpu.dot_dimension_numbers<[1], [0], [0], [1], [0, 0, 1, 1], [], []>} : vector<16x8xf32>, vector<8x8xf32>, vector<16x8xf32> -> vector<16x8xf32>
    %189 = arith.divf %187, %188 : vector<16x8xf32>
    %cst_108 = arith.constant 0.000000e+00 : f32
    %190 = vector.broadcast %cst_108 : f32 to vector<16x8xf32>
    %191 = arith.subf %190, %189 : vector<16x8xf32>
    %cst_109 = arith.constant 9.99999971E-10 : f32
    %192 = vector.broadcast %cst_109 : f32 to vector<16x8xf32>
    %193 = arith.addf %189, %192 : vector<16x8xf32>
    %194 = math.log %193 : vector<16x8xf32>
    %195 = arith.mulf %191, %194 : vector<16x8xf32>
    %cst_110 = arith.constant dense<0.000000e+00> : vector<16xf32>
    %196 = vector.multi_reduction <add>, %195, %cst_110 [1] : vector<16x8xf32> to vector<16xf32>
    %197 = vector.shape_cast %196 : vector<16xf32> to vector<16x1xf32>
    %198 = vector.extract_strided_slice %150 {offsets = [0, 0], sizes = [8, 32], strides = [1, 1]} : vector<16x32xf32> to vector<8x32xf32>
    %199 = vector.extract_strided_slice %155 {offsets = [0, 0], sizes = [8, 32], strides = [1, 1]} : vector<16x32xf32> to vector<8x32xf32>
    %200 = vector.extract_strided_slice %160 {offsets = [0, 0], sizes = [8, 32], strides = [1, 1]} : vector<16x32xf32> to vector<8x32xf32>
    %201 = tpu.concatenate %199, %199, %199, %199 in 0 : vector<8x32xf32>, vector<8x32xf32>, vector<8x32xf32>, vector<8x32xf32> -> vector<32x32xf32>
    %202 = arith.mulf %201, %2 : vector<32x32xf32>
    %203 = tpu.concatenate %200, %200, %200, %200 in 0 : vector<8x32xf32>, vector<8x32xf32>, vector<8x32xf32>, vector<8x32xf32> -> vector<32x32xf32>
    %204 = arith.mulf %203, %2 : vector<32x32xf32>
    %205 = tpu.transpose %202, [1, 0] : vector<32x32xf32> -> vector<32x32xf32>
    %cst_111 = arith.constant dense<0.000000e+00> : vector<8x32xf32>
    %206 = tpu.matmul %198, %205, %cst_111 {dimension_numbers = #tpu.dot_dimension_numbers<[1], [0], [0], [1], [0, 0, 1, 1], [], []>} : vector<8x32xf32>, vector<32x32xf32>, vector<8x32xf32> -> vector<8x32xf32>
    %cst_112 = arith.constant dense<0xFF800000> : vector<8xf32>
    %207 = vector.multi_reduction <maximumf>, %206, %cst_112 [1] : vector<8x32xf32> to vector<8xf32>
    %208 = vector.shape_cast %207 : vector<8xf32> to vector<8x1xf32>
    %209 = vector.broadcast %208 : vector<8x1xf32> to vector<8x32xf32>
    %210 = arith.subf %206, %209 : vector<8x32xf32>
    %211 = math.exp %210 : vector<8x32xf32>
    %cst_113 = arith.constant dense<0.000000e+00> : vector<8x32xf32>
    %212 = tpu.matmul %211, %3, %cst_113 {dimension_numbers = #tpu.dot_dimension_numbers<[1], [0], [0], [1], [0, 0, 1, 1], [], []>} : vector<8x32xf32>, vector<32x32xf32>, vector<8x32xf32> -> vector<8x32xf32>
    %213 = arith.divf %211, %212 : vector<8x32xf32>
    %cst_114 = arith.constant dense<0.000000e+00> : vector<8x32xf32>
    %214 = tpu.matmul %213, %204, %cst_114 {dimension_numbers = #tpu.dot_dimension_numbers<[1], [0], [0], [1], [0, 0, 1, 1], [], []>} : vector<8x32xf32>, vector<32x32xf32>, vector<8x32xf32> -> vector<8x32xf32>
    %215 = vector.extract_strided_slice %150 {offsets = [8, 0], sizes = [8, 32], strides = [1, 1]} : vector<16x32xf32> to vector<8x32xf32>
    %216 = vector.extract_strided_slice %155 {offsets = [8, 0], sizes = [8, 32], strides = [1, 1]} : vector<16x32xf32> to vector<8x32xf32>
    %217 = vector.extract_strided_slice %160 {offsets = [8, 0], sizes = [8, 32], strides = [1, 1]} : vector<16x32xf32> to vector<8x32xf32>
    %218 = tpu.concatenate %216, %216, %216, %216 in 0 : vector<8x32xf32>, vector<8x32xf32>, vector<8x32xf32>, vector<8x32xf32> -> vector<32x32xf32>
    %219 = arith.mulf %218, %2 : vector<32x32xf32>
    %220 = tpu.concatenate %217, %217, %217, %217 in 0 : vector<8x32xf32>, vector<8x32xf32>, vector<8x32xf32>, vector<8x32xf32> -> vector<32x32xf32>
    %221 = arith.mulf %220, %2 : vector<32x32xf32>
    %222 = tpu.transpose %219, [1, 0] : vector<32x32xf32> -> vector<32x32xf32>
    %cst_115 = arith.constant dense<0.000000e+00> : vector<8x32xf32>
    %223 = tpu.matmul %215, %222, %cst_115 {dimension_numbers = #tpu.dot_dimension_numbers<[1], [0], [0], [1], [0, 0, 1, 1], [], []>} : vector<8x32xf32>, vector<32x32xf32>, vector<8x32xf32> -> vector<8x32xf32>
    %cst_116 = arith.constant dense<0xFF800000> : vector<8xf32>
    %224 = vector.multi_reduction <maximumf>, %223, %cst_116 [1] : vector<8x32xf32> to vector<8xf32>
    %225 = vector.shape_cast %224 : vector<8xf32> to vector<8x1xf32>
    %226 = vector.broadcast %225 : vector<8x1xf32> to vector<8x32xf32>
    %227 = arith.subf %223, %226 : vector<8x32xf32>
    %228 = math.exp %227 : vector<8x32xf32>
    %cst_117 = arith.constant dense<0.000000e+00> : vector<8x32xf32>
    %229 = tpu.matmul %228, %3, %cst_117 {dimension_numbers = #tpu.dot_dimension_numbers<[1], [0], [0], [1], [0, 0, 1, 1], [], []>} : vector<8x32xf32>, vector<32x32xf32>, vector<8x32xf32> -> vector<8x32xf32>
    %230 = arith.divf %228, %229 : vector<8x32xf32>
    %cst_118 = arith.constant dense<0.000000e+00> : vector<8x32xf32>
    %231 = tpu.matmul %230, %221, %cst_118 {dimension_numbers = #tpu.dot_dimension_numbers<[1], [0], [0], [1], [0, 0, 1, 1], [], []>} : vector<8x32xf32>, vector<32x32xf32>, vector<8x32xf32> -> vector<8x32xf32>
    %232 = tpu.concatenate %214, %231 in 0 : vector<8x32xf32>, vector<8x32xf32> -> vector<16x32xf32>
    %c0_119 = arith.constant 0 : index
    %c0_120 = arith.constant 0 : index
    %233 = vector.load %arg31[%c0_119, %c0_120] : memref<32x32xf32, #tpu.memory_space<vmem>>, vector<32x32xf32>
    %cst_121 = arith.constant dense<0.000000e+00> : vector<16x32xf32>
    %234 = tpu.matmul %232, %233, %cst_121 {dimension_numbers = #tpu.dot_dimension_numbers<[1], [0], [0], [1], [0, 0, 1, 1], [], []>} : vector<16x32xf32>, vector<32x32xf32>, vector<16x32xf32> -> vector<16x32xf32>
    %c0_122 = arith.constant 0 : index
    %c0_123 = arith.constant 0 : index
    %235 = vector.load %arg32[%c0_122, %c0_123] : memref<1x32xf32, #tpu.memory_space<vmem>>, vector<1x32xf32>
    %236 = vector.broadcast %235 : vector<1x32xf32> to vector<16x32xf32>
    %237 = arith.addf %234, %236 : vector<16x32xf32>
    %238 = arith.addf %121, %237 : vector<16x32xf32>
    %cst_124 = arith.constant dense<0.000000e+00> : vector<16xf32>
    %239 = vector.multi_reduction <add>, %238, %cst_124 [1] : vector<16x32xf32> to vector<16xf32>
    %240 = vector.shape_cast %239 : vector<16xf32> to vector<16x1xf32>
    %cst_125 = arith.constant 3.200000e+01 : f32
    %241 = vector.broadcast %cst_125 : f32 to vector<16x1xf32>
    %242 = arith.divf %240, %241 : vector<16x1xf32>
    %243 = vector.broadcast %242 : vector<16x1xf32> to vector<16x32xf32>
    %244 = arith.subf %238, %243 : vector<16x32xf32>
    %245 = arith.mulf %244, %244 : vector<16x32xf32>
    %cst_126 = arith.constant dense<0.000000e+00> : vector<16xf32>
    %246 = vector.multi_reduction <add>, %245, %cst_126 [1] : vector<16x32xf32> to vector<16xf32>
    %247 = vector.shape_cast %246 : vector<16xf32> to vector<16x1xf32>
    %cst_127 = arith.constant 3.200000e+01 : f32
    %248 = vector.broadcast %cst_127 : f32 to vector<16x1xf32>
    %249 = arith.divf %247, %248 : vector<16x1xf32>
    %250 = vector.broadcast %242 : vector<16x1xf32> to vector<16x32xf32>
    %251 = arith.subf %238, %250 : vector<16x32xf32>
    %cst_128 = arith.constant 9.99999997E-7 : f32
    %252 = vector.broadcast %cst_128 : f32 to vector<16x1xf32>
    %253 = arith.addf %249, %252 : vector<16x1xf32>
    %254 = math.rsqrt %253 : vector<16x1xf32>
    %255 = vector.broadcast %254 : vector<16x1xf32> to vector<16x32xf32>
    %256 = arith.mulf %251, %255 : vector<16x32xf32>
    %c0_129 = arith.constant 0 : index
    %c0_130 = arith.constant 0 : index
    %257 = vector.load %arg9[%c0_129, %c0_130] : memref<1x32xf32, #tpu.memory_space<vmem>>, vector<1x32xf32>
    %258 = vector.broadcast %257 : vector<1x32xf32> to vector<16x32xf32>
    %259 = arith.mulf %256, %258 : vector<16x32xf32>
    %c0_131 = arith.constant 0 : index
    %c0_132 = arith.constant 0 : index
    %260 = vector.load %arg10[%c0_131, %c0_132] : memref<1x32xf32, #tpu.memory_space<vmem>>, vector<1x32xf32>
    %261 = vector.broadcast %260 : vector<1x32xf32> to vector<16x32xf32>
    %262 = arith.addf %259, %261 : vector<16x32xf32>
    %c0_133 = arith.constant 0 : index
    %c0_134 = arith.constant 0 : index
    %263 = vector.load %arg39[%c0_133, %c0_134] : memref<32x64xf32, #tpu.memory_space<vmem>>, vector<32x64xf32>
    %cst_135 = arith.constant dense<0.000000e+00> : vector<16x64xf32>
    %264 = tpu.matmul %262, %263, %cst_135 {dimension_numbers = #tpu.dot_dimension_numbers<[1], [0], [0], [1], [0, 0, 1, 1], [], []>} : vector<16x32xf32>, vector<32x64xf32>, vector<16x64xf32> -> vector<16x64xf32>
    %c0_136 = arith.constant 0 : index
    %c0_137 = arith.constant 0 : index
    %265 = vector.load %arg40[%c0_136, %c0_137] : memref<1x64xf32, #tpu.memory_space<vmem>>, vector<1x64xf32>
    %266 = vector.broadcast %265 : vector<1x64xf32> to vector<16x64xf32>
    %267 = arith.addf %264, %266 : vector<16x64xf32>
    %cst_138 = arith.constant 0.000000e+00 : f32
    %268 = vector.broadcast %cst_138 : f32 to vector<16x64xf32>
    %269 = arith.maximumf %267, %268 : vector<16x64xf32>
    %c0_139 = arith.constant 0 : index
    %c0_140 = arith.constant 0 : index
    %270 = vector.load %arg41[%c0_139, %c0_140] : memref<64x32xf32, #tpu.memory_space<vmem>>, vector<64x32xf32>
    %cst_141 = arith.constant dense<0.000000e+00> : vector<16x32xf32>
    %271 = tpu.matmul %269, %270, %cst_141 {dimension_numbers = #tpu.dot_dimension_numbers<[1], [0], [0], [1], [0, 0, 1, 1], [], []>} : vector<16x64xf32>, vector<64x32xf32>, vector<16x32xf32> -> vector<16x32xf32>
    %c0_142 = arith.constant 0 : index
    %c0_143 = arith.constant 0 : index
    %272 = vector.load %arg42[%c0_142, %c0_143] : memref<1x32xf32, #tpu.memory_space<vmem>>, vector<1x32xf32>
    %273 = vector.broadcast %272 : vector<1x32xf32> to vector<16x32xf32>
    %274 = arith.addf %271, %273 : vector<16x32xf32>
    %275 = arith.addf %238, %274 : vector<16x32xf32>
    %c0_144 = arith.constant 0 : index
    %c0_145 = arith.constant 0 : index
    %276 = vector.load %arg43[%c0_144, %c0_145] : memref<16x32xf32, #tpu.memory_space<vmem>>, vector<16x32xf32>
    tpu.vector_store %arg43[%c0_144, %c0_145], %275 {strides = array<i32>} : memref<16x32xf32, #tpu.memory_space<vmem>>, vector<16x32xf32>,
    %277 = arith.addf %80, %197 : vector<16x1xf32>
    %cst_146 = arith.constant dense<0.000000e+00> : vector<1xf32>
    %278 = vector.multi_reduction <add>, %277, %cst_146 [0] : vector<16x1xf32> to vector<1xf32>
    %279 = vector.shape_cast %278 : vector<1xf32> to vector<1x1xf32>
    %cst_147 = arith.constant 1.562500e-02 : f32
    %280 = vector.broadcast %cst_147 : f32 to vector<1x1xf32>
    %281 = arith.mulf %279, %280 : vector<1x1xf32>
    %c0_148 = arith.constant 0 : index
    %c0_149 = arith.constant 0 : index
    %282 = vector.load %arg44[%c0_148, %c0_149] : memref<1x1xf32, #tpu.memory_space<vmem>>, vector<1x1xf32>
    tpu.vector_store %arg44[%c0_148, %c0_149], %281 {strides = array<i32>} : memref<1x1xf32, #tpu.memory_space<vmem>>, vector<1x1xf32>,
    return
  }
}

</mosaic_0001>

<llo_original>
// kernel: eq.22
$region0: #{eq.22}
  %s0 = inlined_call_operand.vmem [shape: s32[4,8], index: 0, kind: input, shape index: {}]
  %s1 = inlined_call_operand.vmem [shape: s32[32], index: 1, kind: output, shape index: {}]
  $region1: #{eq.22} parent=0
    #allocation0 [shape = 'u8[4096]{0}', space=vmem, size = 0x1000, scoped, tag = 'scoped mem for output reshape']
    #allocation1 [shape = 'u8[4096]{0}', space=vmem, size = 0x1000, scoped, tag = 'scoped mem for input reshape']
    %s3 = sshll.u32 1, 4
    %s4 = ssub.s32 %s3, 1
    %v5 = vld [vmem:[%s0] sm:%s4]
    %6 = vst [vmem:[#allocation1] sm:%s4] %v5
    %v7 = vld [vmem:[#allocation1] sm:$0x1]
    %vm8 = vcmask 64512
    %9 = vst.msk [vmem:[#allocation0] sm:$0x1] %vm8, %v7
    %s10 = scalar_lea.vmem [#allocation1], 3
    %v11 = vld [vmem:[%s10] sm:$0x1]
    %12 = vrot.lane.b32.xlu0 %v11, 24
    %v13 = vpop.permute.xlu0 %12
    %vm14 = vcmask 261312
    %15 = vst.msk [vmem:[#allocation0] sm:$0x1] %vm14, %v13
    %s16 = scalar_lea.vmem [#allocation1], 2
    %v17 = vld [vmem:[%s16] sm:$0x1]
    %18 = vrot.lane.b32.xlu0 %v17, 16
    %v19 = vpop.permute.xlu0 %18
    %vm20 = vcmask 195712
    %21 = vst.msk [vmem:[#allocation0] sm:$0x1] %vm20, %v19
    %s22 = scalar_lea.vmem [#allocation1], 1
    %v23 = vld [vmem:[%s22] sm:$0x1]
    %24 = vrot.lane.b32.xlu0 %v23, 8
    %v25 = vpop.permute.xlu0 %24
    %vm26 = vcmask 130112
    %27 = vst.msk [vmem:[#allocation0] sm:$0x1] %vm26, %v25
    %s29 = sshll.u32 1, 1
    %s30 = ssub.s32 %s29, 1
    %v32 = vld [vmem:[#allocation0] sm:%s30]
    %s33 = sshll.u32 1, 1
    %s34 = ssub.s32 %s33, 1
    %35 = vst [vmem:[%s1] sm:%s34] %v32

// kernel: decoder_layer.1
$region0: #{decoder_layer.1}
  #allocation0 [shape = 'u32[]', space=smem, size = 0x4, offset = 0x4, fixed_abs, tag = 'smem constant byte address 0x4 - core index']
  #allocation1 [shape = 'u32[144,128]{1,0:T(1,128)}', space=vmem, size = 0x12000, scoped, tag = 'internal scratch']
  %s0 = inlined_call_operand.smem [shape: u32[45], index: -1, kind: input, shape index: {}]
  %s1 = sld [smem:[%s0]]
  %s2 = scalar_lea.smem %s0, 1
  %s3 = sld [smem:[%s2]]
  %s4 = scalar_lea.smem %s0, 2
  %s5 = sld [smem:[%s4]]
  %s6 = scalar_lea.smem %s0, 3
  %s7 = sld [smem:[%s6]]
  %s8 = scalar_lea.smem %s0, 4
  %s9 = sld [smem:[%s8]]
  %s10 = scalar_lea.smem %s0, 5
  %s11 = sld [smem:[%s10]]
  %s12 = scalar_lea.smem %s0, 6
  %s13 = sld [smem:[%s12]]
  %s14 = scalar_lea.smem %s0, 7
  %s15 = sld [smem:[%s14]]
  %s16 = scalar_lea.smem %s0, 8
  %s17 = sld [smem:[%s16]]
  %s18 = scalar_lea.smem %s0, 9
  %s19 = sld [smem:[%s18]]
  %s20 = scalar_lea.smem %s0, 10
  %s21 = sld [smem:[%s20]]
  %s22 = scalar_lea.smem %s0, 11
  %s23 = sld [smem:[%s22]]
  %s24 = scalar_lea.smem %s0, 12
  %s25 = sld [smem:[%s24]]
  %s26 = scalar_lea.smem %s0, 13
  %s27 = sld [smem:[%s26]]
  %s28 = scalar_lea.smem %s0, 14
  %s29 = sld [smem:[%s28]]
  %s30 = scalar_lea.smem %s0, 15
  %s31 = sld [smem:[%s30]]
  %s32 = scalar_lea.smem %s0, 16
  %s33 = sld [smem:[%s32]]
  %s34 = scalar_lea.smem %s0, 17
  %s35 = sld [smem:[%s34]]
  %s36 = scalar_lea.smem %s0, 18
  %s37 = sld [smem:[%s36]]
  %s38 = scalar_lea.smem %s0, 19
  %s39 = sld [smem:[%s38]]
  %s40 = scalar_lea.smem %s0, 20
  %s41 = sld [smem:[%s40]]
  %s42 = scalar_lea.smem %s0, 21
  %s43 = sld [smem:[%s42]]
  %s44 = scalar_lea.smem %s0, 22
  %s45 = sld [smem:[%s44]]
  %s46 = scalar_lea.smem %s0, 23
  %s47 = sld [smem:[%s46]]
  %s48 = scalar_lea.smem %s0, 24
  %s49 = sld [smem:[%s48]]
  %s50 = scalar_lea.smem %s0, 25
  %s51 = sld [smem:[%s50]]
  %s52 = scalar_lea.smem %s0, 26
  %s53 = sld [smem:[%s52]]
  %s54 = scalar_lea.smem %s0, 27
  %s55 = sld [smem:[%s54]]
  %s56 = scalar_lea.smem %s0, 28
  %s57 = sld [smem:[%s56]]
  %s58 = scalar_lea.smem %s0, 29
  %s59 = sld [smem:[%s58]]
  %s60 = scalar_lea.smem %s0, 30
  %s61 = sld [smem:[%s60]]
  %s62 = scalar_lea.smem %s0, 31
  %s63 = sld [smem:[%s62]]
  %s64 = scalar_lea.smem %s0, 32
  %s65 = sld [smem:[%s64]]
  %s66 = scalar_lea.smem %s0, 33
  %s67 = sld [smem:[%s66]]
  %s68 = scalar_lea.smem %s0, 34
  %s69 = sld [smem:[%s68]]
  %s70 = scalar_lea.smem %s0, 35
  %s71 = sld [smem:[%s70]]
  %s72 = scalar_lea.smem %s0, 36
  %s73 = sld [smem:[%s72]]
  %s74 = scalar_lea.smem %s0, 37
  %s75 = sld [smem:[%s74]]
  %s76 = scalar_lea.smem %s0, 38
  %s77 = sld [smem:[%s76]]
  %s78 = scalar_lea.smem %s0, 39
  %s79 = sld [smem:[%s78]]
  %s80 = scalar_lea.smem %s0, 40
  %s81 = sld [smem:[%s80]]
  %s82 = scalar_lea.smem %s0, 41
  %s83 = sld [smem:[%s82]]
  %s84 = scalar_lea.smem %s0, 42
  %s85 = sld [smem:[%s84]]
  %s86 = scalar_lea.smem %s0, 43
  %s87 = sld [smem:[%s86]]
  %s88 = scalar_lea.smem %s0, 44
  %s89 = sld [smem:[%s88]]
  %90 = xla_tuple %s87, %s89
  %s91 = sld [smem:[#allocation0]]
  $region190: #{decoder_layer.1} parent=0
    _
  %s93 = ssub.s32 1, %s91
  %s94 = scalar_select 0, %s93, %s91
  $region1: #{decoder_layer.1} parent=0
    #allocation2 [shape = 'u8[8192]{0}', space=vmem, size = 0x2000, scoped, tag = 'output window, operand 0, single buffered']
    #allocation3 [shape = 's32[1]{0}', space=sflag, size = 0x4, scoped, tag = 'scoped memory for decoder_layer.1']
    #allocation4 [shape = 'u8[512]{0}', space=vmem, size = 0x400, scoped, tag = 'output window, operand 1, single buffered']
    #allocation5 [shape = 's32[1]{0}', space=sflag, size = 0x4, scoped, tag = 'scoped memory for decoder_layer.1']
    %95 = vsyncpa [#allocation3], 0
    %96 = vsyncpa [#allocation5], 0
    // Predicated region
    $region2: #{decoder_layer.1} parent=1 // pred_check
      _
    $region3: #{decoder_layer.1} parent=1 // pred_check_branch
      %98 = sbr.rel (0) target = $region5
    $region4: #{decoder_layer.1} parent=1 // pred_region
      _
    $region5: #{decoder_layer.1} parent=1 // pred_fallthru
      _
    // Predicated region
    $region6: #{decoder_layer.1} parent=1 // pred_check
      _
    $region7: #{decoder_layer.1} parent=1 // pred_check_branch
      %100 = sbr.rel (0) target = $region9
    $region8: #{decoder_layer.1} parent=1 // pred_region
      _
    $region9: #{decoder_layer.1} parent=1 // pred_fallthru
      _
    // Predicated region
    $region10: #{decoder_layer.1} parent=1 // pred_check
      _
    $region11: #{decoder_layer.1} parent=1 // pred_check_branch
      %102 = sbr.rel (0) target = $region13
    $region12: #{decoder_layer.1} parent=1 // pred_region
      _
    $region13: #{decoder_layer.1} parent=1 // pred_fallthru
      _
    // Predicated region
    $region14: #{decoder_layer.1} parent=1 // pred_check
      _
    $region15: #{decoder_layer.1} parent=1 // pred_check_branch
      %104 = sbr.rel (0) target = $region17
    $region16: #{decoder_layer.1} parent=1 // pred_region
      _
    $region17: #{decoder_layer.1} parent=1 // pred_fallthru
      _
    // Predicated region
    $region18: #{decoder_layer.1} parent=1 // pred_check
      _
    $region19: #{decoder_layer.1} parent=1 // pred_check_branch
      %106 = sbr.rel (0) target = $region21
    $region20: #{decoder_layer.1} parent=1 // pred_region
      _
    $region21: #{decoder_layer.1} parent=1 // pred_fallthru
      _
    // Predicated region
    $region22: #{decoder_layer.1} parent=1 // pred_check
      _
    $region23: #{decoder_layer.1} parent=1 // pred_check_branch
      %108 = sbr.rel (0) target = $region25
    $region24: #{decoder_layer.1} parent=1 // pred_region
      _
    $region25: #{decoder_layer.1} parent=1 // pred_fallthru
      _
    // Predicated region
    $region26: #{decoder_layer.1} parent=1 // pred_check
      _
    $region27: #{decoder_layer.1} parent=1 // pred_check_branch
      %110 = sbr.rel (0) target = $region29
    $region28: #{decoder_layer.1} parent=1 // pred_region
      _
    $region29: #{decoder_layer.1} parent=1 // pred_fallthru
      _
    // Predicated region
    $region30: #{decoder_layer.1} parent=1 // pred_check
      _
    $region31: #{decoder_layer.1} parent=1 // pred_check_branch
      %112 = sbr.rel (0) target = $region33
    $region32: #{decoder_layer.1} parent=1 // pred_region
      _
    $region33: #{decoder_layer.1} parent=1 // pred_fallthru
      _
    // Predicated region
    $region34: #{decoder_layer.1} parent=1 // pred_check
      _
    $region35: #{decoder_layer.1} parent=1 // pred_check_branch
      %114 = sbr.rel (0) target = $region37
    $region36: #{decoder_layer.1} parent=1 // pred_region
      _
    $region37: #{decoder_layer.1} parent=1 // pred_fallthru
      _
    // Predicated region
    $region38: #{decoder_layer.1} parent=1 // pred_check
      _
    $region39: #{decoder_layer.1} parent=1 // pred_check_branch
      %116 = sbr.rel (0) target = $region41
    $region40: #{decoder_layer.1} parent=1 // pred_region
      _
    $region41: #{decoder_layer.1} parent=1 // pred_fallthru
      _
    // Predicated region
    $region42: #{decoder_layer.1} parent=1 // pred_check
      _
    $region43: #{decoder_layer.1} parent=1 // pred_check_branch
      %118 = sbr.rel (0) target = $region45
    $region44: #{decoder_layer.1} parent=1 // pred_region
      _
    $region45: #{decoder_layer.1} parent=1 // pred_fallthru
      _
    // Predicated region
    $region46: #{decoder_layer.1} parent=1 // pred_check
      _
    $region47: #{decoder_layer.1} parent=1 // pred_check_branch
      %120 = sbr.rel (0) target = $region49
    $region48: #{decoder_layer.1} parent=1 // pred_region
      _
    $region49: #{decoder_layer.1} parent=1 // pred_fallthru
      _
    // Predicated region
    $region50: #{decoder_layer.1} parent=1 // pred_check
      _
    $region51: #{decoder_layer.1} parent=1 // pred_check_branch
      %122 = sbr.rel (0) target = $region53
    $region52: #{decoder_layer.1} parent=1 // pred_region
      _
    $region53: #{decoder_layer.1} parent=1 // pred_fallthru
      _
    // Predicated region
    $region54: #{decoder_layer.1} parent=1 // pred_check
      _
    $region55: #{decoder_layer.1} parent=1 // pred_check_branch
      %124 = sbr.rel (0) target = $region57
    $region56: #{decoder_layer.1} parent=1 // pred_region
      _
    $region57: #{decoder_layer.1} parent=1 // pred_fallthru
      _
    // Predicated region
    $region58: #{decoder_layer.1} parent=1 // pred_check
      _
    $region59: #{decoder_layer.1} parent=1 // pred_check_branch
      %126 = sbr.rel (0) target = $region61
    $region60: #{decoder_layer.1} parent=1 // pred_region
      _
    $region61: #{decoder_layer.1} parent=1 // pred_fallthru
      _
    // Predicated region
    $region62: #{decoder_layer.1} parent=1 // pred_check
      _
    $region63: #{decoder_layer.1} parent=1 // pred_check_branch
      %128 = sbr.rel (0) target = $region65
    $region64: #{decoder_layer.1} parent=1 // pred_region
      _
    $region65: #{decoder_layer.1} parent=1 // pred_fallthru
      _
    // Predicated region
    $region66: #{decoder_layer.1} parent=1 // pred_check
      _
    $region67: #{decoder_layer.1} parent=1 // pred_check_branch
      %130 = sbr.rel (0) target = $region69
    $region68: #{decoder_layer.1} parent=1 // pred_region
      _
    $region69: #{decoder_layer.1} parent=1 // pred_fallthru
      _
    // Predicated region
    $region70: #{decoder_layer.1} parent=1 // pred_check
      _
    $region71: #{decoder_layer.1} parent=1 // pred_check_branch
      %132 = sbr.rel (0) target = $region73
    $region72: #{decoder_layer.1} parent=1 // pred_region
      _
    $region73: #{decoder_layer.1} parent=1 // pred_fallthru
      _
    // Predicated region
    $region74: #{decoder_layer.1} parent=1 // pred_check
      _
    $region75: #{decoder_layer.1} parent=1 // pred_check_branch
      %134 = sbr.rel (0) target = $region77
    $region76: #{decoder_layer.1} parent=1 // pred_region
      _
    $region77: #{decoder_layer.1} parent=1 // pred_fallthru
      _
    // Predicated region
    $region78: #{decoder_layer.1} parent=1 // pred_check
      _
    $region79: #{decoder_layer.1} parent=1 // pred_check_branch
      %136 = sbr.rel (0) target = $region81
    $region80: #{decoder_layer.1} parent=1 // pred_region
      _
    $region81: #{decoder_layer.1} parent=1 // pred_fallthru
      _
    // Predicated region
    $region82: #{decoder_layer.1} parent=1 // pred_check
      _
    $region83: #{decoder_layer.1} parent=1 // pred_check_branch
      %138 = sbr.rel (0) target = $region85
    $region84: #{decoder_layer.1} parent=1 // pred_region
      _
    $region85: #{decoder_layer.1} parent=1 // pred_fallthru
      _
    // Predicated region
    $region86: #{decoder_layer.1} parent=1 // pred_check
      _
    $region87: #{decoder_layer.1} parent=1 // pred_check_branch
      %140 = sbr.rel (0) target = $region89
    $region88: #{decoder_layer.1} parent=1 // pred_region
      _
    $region89: #{decoder_layer.1} parent=1 // pred_fallthru
      _
    // Predicated region
    $region90: #{decoder_layer.1} parent=1 // pred_check
      _
    $region91: #{decoder_layer.1} parent=1 // pred_check_branch
      %142 = sbr.rel (0) target = $region93
    $region92: #{decoder_layer.1} parent=1 // pred_region
      _
    $region93: #{decoder_layer.1} parent=1 // pred_fallthru
      _
    // Predicated region
    $region94: #{decoder_layer.1} parent=1 // pred_check
      _
    $region95: #{decoder_layer.1} parent=1 // pred_check_branch
      %144 = sbr.rel (0) target = $region97
    $region96: #{decoder_layer.1} parent=1 // pred_region
      _
    $region97: #{decoder_layer.1} parent=1 // pred_fallthru
      _
    // Predicated region
    $region98: #{decoder_layer.1} parent=1 // pred_check
      _
    $region99: #{decoder_layer.1} parent=1 // pred_check_branch
      %146 = sbr.rel (0) target = $region101
    $region100: #{decoder_layer.1} parent=1 // pred_region
      _
    $region101: #{decoder_layer.1} parent=1 // pred_fallthru
      _
    // Predicated region
    $region102: #{decoder_layer.1} parent=1 // pred_check
      _
    $region103: #{decoder_layer.1} parent=1 // pred_check_branch
      %148 = sbr.rel (0) target = $region105
    $region104: #{decoder_layer.1} parent=1 // pred_region
      _
    $region105: #{decoder_layer.1} parent=1 // pred_fallthru
      _
    // Predicated region
    $region106: #{decoder_layer.1} parent=1 // pred_check
      _
    $region107: #{decoder_layer.1} parent=1 // pred_check_branch
      %150 = sbr.rel (0) target = $region109
    $region108: #{decoder_layer.1} parent=1 // pred_region
      _
    $region109: #{decoder_layer.1} parent=1 // pred_fallthru
      _
    // Predicated region
    $region110: #{decoder_layer.1} parent=1 // pred_check
      _
    $region111: #{decoder_layer.1} parent=1 // pred_check_branch
      %152 = sbr.rel (0) target = $region113
    $region112: #{decoder_layer.1} parent=1 // pred_region
      _
    $region113: #{decoder_layer.1} parent=1 // pred_fallthru
      _
    // Predicated region
    $region114: #{decoder_layer.1} parent=1 // pred_check
      _
    $region115: #{decoder_layer.1} parent=1 // pred_check_branch
      %154 = sbr.rel (0) target = $region117
    $region116: #{decoder_layer.1} parent=1 // pred_region
      _
    $region117: #{decoder_layer.1} parent=1 // pred_fallthru
      _
    // Predicated region
    $region118: #{decoder_layer.1} parent=1 // pred_check
      _
    $region119: #{decoder_layer.1} parent=1 // pred_check_branch
      %156 = sbr.rel (0) target = $region121
    $region120: #{decoder_layer.1} parent=1 // pred_region
      _
    $region121: #{decoder_layer.1} parent=1 // pred_fallthru
      _
    // Predicated region
    $region122: #{decoder_layer.1} parent=1 // pred_check
      _
    $region123: #{decoder_layer.1} parent=1 // pred_check_branch
      %158 = sbr.rel (0) target = $region125
    $region124: #{decoder_layer.1} parent=1 // pred_region
      _
    $region125: #{decoder_layer.1} parent=1 // pred_fallthru
      _
    // Predicated region
    $region126: #{decoder_layer.1} parent=1 // pred_check
      _
    $region127: #{decoder_layer.1} parent=1 // pred_check_branch
      %160 = sbr.rel (0) target = $region129
    $region128: #{decoder_layer.1} parent=1 // pred_region
      _
    $region129: #{decoder_layer.1} parent=1 // pred_fallthru
      _
    // Predicated region
    $region130: #{decoder_layer.1} parent=1 // pred_check
      _
    $region131: #{decoder_layer.1} parent=1 // pred_check_branch
      %162 = sbr.rel (0) target = $region133
    $region132: #{decoder_layer.1} parent=1 // pred_region
      _
    $region133: #{decoder_layer.1} parent=1 // pred_fallthru
      _
    // Predicated region
    $region134: #{decoder_layer.1} parent=1 // pred_check
      _
    $region135: #{decoder_layer.1} parent=1 // pred_check_branch
      %164 = sbr.rel (0) target = $region137
    $region136: #{decoder_layer.1} parent=1 // pred_region
      _
    $region137: #{decoder_layer.1} parent=1 // pred_fallthru
      _
    // Predicated region
    $region138: #{decoder_layer.1} parent=1 // pred_check
      _
    $region139: #{decoder_layer.1} parent=1 // pred_check_branch
      %166 = sbr.rel (0) target = $region141
    $region140: #{decoder_layer.1} parent=1 // pred_region
      _
    $region141: #{decoder_layer.1} parent=1 // pred_fallthru
      _
    // Predicated region
    $region142: #{decoder_layer.1} parent=1 // pred_check
      _
    $region143: #{decoder_layer.1} parent=1 // pred_check_branch
      %168 = sbr.rel (0) target = $region145
    $region144: #{decoder_layer.1} parent=1 // pred_region
      _
    $region145: #{decoder_layer.1} parent=1 // pred_fallthru
      _
    // Predicated region
    $region146: #{decoder_layer.1} parent=1 // pred_check
      _
    $region147: #{decoder_layer.1} parent=1 // pred_check_branch
      %170 = sbr.rel (0) target = $region149
    $region148: #{decoder_layer.1} parent=1 // pred_region
      _
    $region149: #{decoder_layer.1} parent=1 // pred_fallthru
      _
    // Predicated region
    $region150: #{decoder_layer.1} parent=1 // pred_check
      _
    $region151: #{decoder_layer.1} parent=1 // pred_check_branch
      %172 = sbr.rel (0) target = $region153
    $region152: #{decoder_layer.1} parent=1 // pred_region
      _
    $region153: #{decoder_layer.1} parent=1 // pred_fallthru
      _
    // Predicated region
    $region154: #{decoder_layer.1} parent=1 // pred_check
      _
    $region155: #{decoder_layer.1} parent=1 // pred_check_branch
      %174 = sbr.rel (0) target = $region157
    $region156: #{decoder_layer.1} parent=1 // pred_region
      _
    $region157: #{decoder_layer.1} parent=1 // pred_fallthru
      _
    // Predicated region
    $region158: #{decoder_layer.1} parent=1 // pred_check
      _
    $region159: #{decoder_layer.1} parent=1 // pred_check_branch
      %176 = sbr.rel (0) target = $region161
    $region160: #{decoder_layer.1} parent=1 // pred_region
      _
    $region161: #{decoder_layer.1} parent=1 // pred_fallthru
      _
    // Predicated region
    $region162: #{decoder_layer.1} parent=1 // pred_check
      _
    $region163: #{decoder_layer.1} parent=1 // pred_check_branch
      %178 = sbr.rel (0) target = $region165
    $region164: #{decoder_layer.1} parent=1 // pred_region
      _
    $region165: #{decoder_layer.1} parent=1 // pred_fallthru
      _
    // Predicated region
    $region166: #{decoder_layer.1} parent=1 // pred_check
      _
    $region167: #{decoder_layer.1} parent=1 // pred_check_branch
      %180 = sbr.rel (0) target = $region169
    $region168: #{decoder_layer.1} parent=1 // pred_region
      _
    $region169: #{decoder_layer.1} parent=1 // pred_fallthru
      _
    // Predicated region
    $region170: #{decoder_layer.1} parent=1 // pred_check
      _
    $region171: #{decoder_layer.1} parent=1 // pred_check_branch
      %182 = sbr.rel (0) target = $region173
    $region172: #{decoder_layer.1} parent=1 // pred_region
      _
    $region173: #{decoder_layer.1} parent=1 // pred_fallthru
      _
    %v183 = vld [vmem:[%s1] sm:$0xff]
    %v184 = vld [vmem:[%s1 + $0x8] sm:$0xff]
    %v185 = vld [vmem:[%s3] sm:$0xff]
    %v186 = vld [vmem:[%s3 + $0x8] sm:$0xff]
    %v187 = vld [vmem:[%s5] sm:$0xff]
    %v188 = vld [vmem:[%s5 + $0x8] sm:$0xff]
    %v189 = vld [vmem:[%s5 + $0x10] sm:$0xff]
    %v190 = vld [vmem:[%s5 + $0x18] sm:$0xff]
    %v191 = vld [vmem:[%s7] sm:$0xff]
    %v192 = vld [vmem:[%s7 + $0x8] sm:$0xff]
    %v193 = vld [vmem:[%s7 + $0x10] sm:$0xff]
    %v194 = vld [vmem:[%s7 + $0x18] sm:$0xff]
    %v195 = vld [vmem:[%s9] sm:$0xff]
    %vm196 = vcmask 261120
    %v197 = vsel %vm196, %v183, 0.0
    %198 = vadd.xlane.f32.xlu0 %v197
    %v199 = vpop.xlane.xlu0 %198
    %v200 = vsel %vm196, %v184, 0.0
    %201 = vadd.xlane.f32.xlu0 %v200
    %v202 = vpop.xlane.xlu0 %201
    %v203 = vrcp.pop 32.0
    %v204 = vmul.f32 %v199, %v203
    %v205 = vmul.f32 %v202, %v203
    %v206 = vsub.f32 %v183, %v204
    %v207 = vsub.f32 %v184, %v205
    %v208 = vmul.f32 %v206, %v206
    %v209 = vmul.f32 %v207, %v207
    %v210 = vsel %vm196, %v208, 0.0
    %211 = vadd.xlane.f32.xlu0 %v210
    %v212 = vpop.xlane.xlu0 %211
    %v213 = vsel %vm196, %v209, 0.0
    %214 = vadd.xlane.f32.xlu0 %v213
    %v215 = vpop.xlane.xlu0 %214
    %v216 = vmul.f32 %v212, %v203
    %v217 = vmul.f32 %v215, %v203
    %v218 = vadd.f32 %v216, 1e-06
    %v219 = vadd.f32 %v217, 1e-06
    %v220 = vrsqrt.pop %v218
    %v221 = vrsqrt.pop %v219
    %v222 = vmul.f32 %v206, %v220
    %v223 = vmul.f32 %v207, %v221
    %v224 = vld [vmem:[%s11] sm:$0x1]
    %v226 = vlaneseq
    %v227 = vshrl.u32 %v226, 7
    %v228 = vsub.s32 0, %v227
    %v229 = vrot.slane %v224, %v228
    %v231 = vmul.f32 %v222, %v229
    %v232 = vmul.f32 %v223, %v229
    %v233 = vld [vmem:[%s13] sm:$0x1]
    %v235 = vlaneseq
    %v236 = vshrl.u32 %v235, 7
    %v237 = vsub.s32 0, %v236
    %v238 = vrot.slane %v233, %v237
    %v240 = vadd.f32 %v231, %v238
    %v241 = vadd.f32 %v232, %v238
    %v242 = vld [vmem:[%s23] sm:$0xff]
    %v243 = vld [vmem:[%s23 + $0x8] sm:$0xff]
    %v244 = vld [vmem:[%s23 + $0x10] sm:$0xff]
    %v245 = vld [vmem:[%s23 + $0x18] sm:$0xff]
    %v246 = vld [vmem:[%s25] sm:$0x1]
    %v248 = vlaneseq
    %v249 = vshrl.u32 %v248, 7
    %v250 = vsub.s32 0, %v249
    %v251 = vrot.slane %v246, %v250
    %v254 = vsel %vm196, %v240, 0
    %v257 = vsel %vm196, %v241, 0
    %259 = vmatprep.subr.mxu0 0.0
    %260 = vmatpush1.msra.mxu0 0.0
    %261 = vmatprep.subr.mxu0 0.0
    %262 = vmatpush1.msra.mxu0 0.0
    %263 = vmatprep.subr.mxu0 0.0
    %264 = vmatpush1.msra.mxu0 0.0
    %265 = vmatprep.subr.mxu0 0.0
    %266 = vmatpush1.msra.mxu0 0.0
    %267 = vmatprep.subr.mxu0 0.0
    %268 = vmatpush1.msra.mxu0 0.0
    %269 = vmatprep.subr.mxu0 0.0
    %270 = vmatpush1.msra.mxu0 0.0
    %271 = vmatprep.subr.mxu0 0.0
    %272 = vmatpush1.msra.mxu0 0.0
    %273 = vmatprep.subr.mxu0 0.0
    %274 = vmatpush1.msra.mxu0 0.0
    %275 = vmatprep.subr.mxu0 0.0
    %276 = vmatpush1.msra.mxu0 0.0
    %277 = vmatprep.subr.mxu0 0.0
    %278 = vmatpush1.msra.mxu0 0.0
    %279 = vmatprep.subr.mxu0 0.0
    %280 = vmatpush1.msra.mxu0 0.0
    %281 = vmatprep.subr.mxu0 0.0
    %282 = vmatpush1.msra.mxu0 0.0
    %283 = vmatprep.subr.mxu0 0.0
    %284 = vmatpush1.msra.mxu0 %v245
    %285 = vmatprep.subr.mxu0 0.0
    %286 = vmatpush1.msra.mxu0 %v244
    %287 = vmatprep.subr.mxu0 0.0
    %288 = vmatpush1.msra.mxu0 %v243
    %289 = vmatprep.subr.mxu0 0.0
    %290 = vmatpush1.msra.mxu0 %v242
    %291 = vmatprep.subr.mxu0 0.0
    %292 = vmatpush2.msra.mxu0 0.0
    %293 = vmatprep.subr.mxu0 0.0
    %294 = vmatpush2.msra.mxu0 0.0
    %295 = vmatprep.subr.mxu0 0.0
    %296 = vmatpush2.msra.mxu0 0.0
    %297 = vmatprep.subr.mxu0 0.0
    %298 = vmatpush2.msra.mxu0 0.0
    %299 = vmatprep.subr.mxu0 0.0
    %300 = vmatpush2.msra.mxu0 0.0
    %301 = vmatprep.subr.mxu0 0.0
    %302 = vmatpush2.msra.mxu0 0.0
    %303 = vmatprep.subr.mxu0 0.0
    %304 = vmatpush2.msra.mxu0 0.0
    %305 = vmatprep.subr.mxu0 0.0
    %306 = vmatpush2.msra.mxu0 0.0
    %307 = vmatprep.subr.mxu0 0.0
    %308 = vmatpush2.msra.mxu0 0.0
    %309 = vmatprep.subr.mxu0 0.0
    %310 = vmatpush2.msra.mxu0 0.0
    %311 = vmatprep.subr.mxu0 0.0
    %312 = vmatpush2.msra.mxu0 0.0
    %313 = vmatprep.subr.mxu0 0.0
    %314 = vmatpush2.msra.mxu0 0.0
    %315 = vmatprep.subr.mxu0 0.0
    %316 = vmatpush2.msra.mxu0 0.0
    %317 = vmatprep.subr.mxu0 0.0
    %318 = vmatpush2.msra.mxu0 0.0
    %319 = vmatprep.subr.mxu0 0.0
    %320 = vmatpush2.msra.mxu0 0.0
    %321 = vmatprep.subr.mxu0 0.0
    %322 = vmatpush2.msra.mxu0 0.0
    %323 = vmatprep.mubr.f32.mxu0 0.0
    %324 = vmatmul.mubr.f32.gmra.mxu0 %v254
    %v325 = vpop.f32.mrf.mxu0
    %v326 = vadd.f32 %v251, %v325
    %v327 = vpop.f32.mrf.mxu0
    %328 = vmatprep.mubr.f32.mxu0 0.0
    %329 = vmatmul.mubr.f32.gmra.mxu0 %v257
    %v330 = vpop.f32.mrf.mxu0
    %v331 = vadd.f32 %v251, %v330
    %v332 = vpop.f32.mrf.mxu0
    %333 = vdwg.mxu0
    %v334 = vld [vmem:[%s27] sm:$0xff]
    %v335 = vld [vmem:[%s27 + $0x8] sm:$0xff]
    %v336 = vld [vmem:[%s27 + $0x10] sm:$0xff]
    %v337 = vld [vmem:[%s27 + $0x18] sm:$0xff]
    %v338 = vld [vmem:[%s29] sm:$0x1]
    %v340 = vlaneseq
    %v341 = vshrl.u32 %v340, 7
    %v342 = vsub.s32 0, %v341
    %v343 = vrot.slane %v338, %v342
    %345 = vmatprep.subr.mxu0 0.0
    %346 = vmatpush1.msra.mxu0 0.0
    %347 = vmatprep.subr.mxu0 0.0
    %348 = vmatpush1.msra.mxu0 0.0
    %349 = vmatprep.subr.mxu0 0.0
    %350 = vmatpush1.msra.mxu0 0.0
    %351 = vmatprep.subr.mxu0 0.0
    %352 = vmatpush1.msra.mxu0 0.0
    %353 = vmatprep.subr.mxu0 0.0
    %354 = vmatpush1.msra.mxu0 0.0
    %355 = vmatprep.subr.mxu0 0.0
    %356 = vmatpush1.msra.mxu0 0.0
    %357 = vmatprep.subr.mxu0 0.0
    %358 = vmatpush1.msra.mxu0 0.0
    %359 = vmatprep.subr.mxu0 0.0
    %360 = vmatpush1.msra.mxu0 0.0
    %361 = vmatprep.subr.mxu0 0.0
    %362 = vmatpush1.msra.mxu0 0.0
    %363 = vmatprep.subr.mxu0 0.0
    %364 = vmatpush1.msra.mxu0 0.0
    %365 = vmatprep.subr.mxu0 0.0
    %366 = vmatpush1.msra.mxu0 0.0
    %367 = vmatprep.subr.mxu0 0.0
    %368 = vmatpush1.msra.mxu0 0.0
    %369 = vmatprep.subr.mxu0 0.0
    %370 = vmatpush1.msra.mxu0 %v337
    %371 = vmatprep.subr.mxu0 0.0
    %372 = vmatpush1.msra.mxu0 %v336
    %373 = vmatprep.subr.mxu0 0.0
    %374 = vmatpush1.msra.mxu0 %v335
    %375 = vmatprep.subr.mxu0 0.0
    %376 = vmatpush1.msra.mxu0 %v334
    %377 = vmatprep.subr.mxu0 0.0
    %378 = vmatpush2.msra.mxu0 0.0
    %379 = vmatprep.subr.mxu0 0.0
    %380 = vmatpush2.msra.mxu0 0.0
    %381 = vmatprep.subr.mxu0 0.0
    %382 = vmatpush2.msra.mxu0 0.0
    %383 = vmatprep.subr.mxu0 0.0
    %384 = vmatpush2.msra.mxu0 0.0
    %385 = vmatprep.subr.mxu0 0.0
    %386 = vmatpush2.msra.mxu0 0.0
    %387 = vmatprep.subr.mxu0 0.0
    %388 = vmatpush2.msra.mxu0 0.0
    %389 = vmatprep.subr.mxu0 0.0
    %390 = vmatpush2.msra.mxu0 0.0
    %391 = vmatprep.subr.mxu0 0.0
    %392 = vmatpush2.msra.mxu0 0.0
    %393 = vmatprep.subr.mxu0 0.0
    %394 = vmatpush2.msra.mxu0 0.0
    %395 = vmatprep.subr.mxu0 0.0
    %396 = vmatpush2.msra.mxu0 0.0
    %397 = vmatprep.subr.mxu0 0.0
    %398 = vmatpush2.msra.mxu0 0.0
    %399 = vmatprep.subr.mxu0 0.0
    %400 = vmatpush2.msra.mxu0 0.0
    %401 = vmatprep.subr.mxu0 0.0
    %402 = vmatpush2.msra.mxu0 0.0
    %403 = vmatprep.subr.mxu0 0.0
    %404 = vmatpush2.msra.mxu0 0.0
    %405 = vmatprep.subr.mxu0 0.0
    %406 = vmatpush2.msra.mxu0 0.0
    %407 = vmatprep.subr.mxu0 0.0
    %408 = vmatpush2.msra.mxu0 0.0
    %409 = vmatprep.mubr.f32.mxu0 0.0
    %410 = vmatmul.mubr.f32.gmra.mxu0 %v254
    %v411 = vpop.f32.mrf.mxu0
    %v412 = vadd.f32 %v343, %v411
    %v413 = vpop.f32.mrf.mxu0
    %414 = vmatprep.mubr.f32.mxu0 0.0
    %415 = vmatmul.mubr.f32.gmra.mxu0 %v257
    %v416 = vpop.f32.mrf.mxu0
    %v417 = vadd.f32 %v343, %v416
    %v418 = vpop.f32.mrf.mxu0
    %419 = vdwg.mxu0
    %v420 = vld [vmem:[%s31] sm:$0xff]
    %v421 = vld [vmem:[%s31 + $0x8] sm:$0xff]
    %v422 = vld [vmem:[%s31 + $0x10] sm:$0xff]
    %v423 = vld [vmem:[%s31 + $0x18] sm:$0xff]
    %v424 = vld [vmem:[%s33] sm:$0x1]
    %v426 = vlaneseq
    %v427 = vshrl.u32 %v426, 7
    %v428 = vsub.s32 0, %v427
    %v429 = vrot.slane %v424, %v428
    %431 = vmatprep.subr.mxu0 0.0
    %432 = vmatpush1.msra.mxu0 0.0
    %433 = vmatprep.subr.mxu0 0.0
    %434 = vmatpush1.msra.mxu0 0.0
    %435 = vmatprep.subr.mxu0 0.0
    %436 = vmatpush1.msra.mxu0 0.0
    %437 = vmatprep.subr.mxu0 0.0
    %438 = vmatpush1.msra.mxu0 0.0
    %439 = vmatprep.subr.mxu0 0.0
    %440 = vmatpush1.msra.mxu0 0.0
    %441 = vmatprep.subr.mxu0 0.0
    %442 = vmatpush1.msra.mxu0 0.0
    %443 = vmatprep.subr.mxu0 0.0
    %444 = vmatpush1.msra.mxu0 0.0
    %445 = vmatprep.subr.mxu0 0.0
    %446 = vmatpush1.msra.mxu0 0.0
    %447 = vmatprep.subr.mxu0 0.0
    %448 = vmatpush1.msra.mxu0 0.0
    %449 = vmatprep.subr.mxu0 0.0
    %450 = vmatpush1.msra.mxu0 0.0
    %451 = vmatprep.subr.mxu0 0.0
    %452 = vmatpush1.msra.mxu0 0.0
    %453 = vmatprep.subr.mxu0 0.0
    %454 = vmatpush1.msra.mxu0 0.0
    %455 = vmatprep.subr.mxu0 0.0
    %456 = vmatpush1.msra.mxu0 %v423
    %457 = vmatprep.subr.mxu0 0.0
    %458 = vmatpush1.msra.mxu0 %v422
    %459 = vmatprep.subr.mxu0 0.0
    %460 = vmatpush1.msra.mxu0 %v421
    %461 = vmatprep.subr.mxu0 0.0
    %462 = vmatpush1.msra.mxu0 %v420
    %463 = vmatprep.subr.mxu0 0.0
    %464 = vmatpush2.msra.mxu0 0.0
    %465 = vmatprep.subr.mxu0 0.0
    %466 = vmatpush2.msra.mxu0 0.0
    %467 = vmatprep.subr.mxu0 0.0
    %468 = vmatpush2.msra.mxu0 0.0
    %469 = vmatprep.subr.mxu0 0.0
    %470 = vmatpush2.msra.mxu0 0.0
    %471 = vmatprep.subr.mxu0 0.0
    %472 = vmatpush2.msra.mxu0 0.0
    %473 = vmatprep.subr.mxu0 0.0
    %474 = vmatpush2.msra.mxu0 0.0
    %475 = vmatprep.subr.mxu0 0.0
    %476 = vmatpush2.msra.mxu0 0.0
    %477 = vmatprep.subr.mxu0 0.0
    %478 = vmatpush2.msra.mxu0 0.0
    %479 = vmatprep.subr.mxu0 0.0
    %480 = vmatpush2.msra.mxu0 0.0
    %481 = vmatprep.subr.mxu0 0.0
    %482 = vmatpush2.msra.mxu0 0.0
    %483 = vmatprep.subr.mxu0 0.0
    %484 = vmatpush2.msra.mxu0 0.0
    %485 = vmatprep.subr.mxu0 0.0
    %486 = vmatpush2.msra.mxu0 0.0
    %487 = vmatprep.subr.mxu0 0.0
    %488 = vmatpush2.msra.mxu0 0.0
    %489 = vmatprep.subr.mxu0 0.0
    %490 = vmatpush2.msra.mxu0 0.0
    %491 = vmatprep.subr.mxu0 0.0
    %492 = vmatpush2.msra.mxu0 0.0
    %493 = vmatprep.subr.mxu0 0.0
    %494 = vmatpush2.msra.mxu0 0.0
    %495 = vmatprep.mubr.f32.mxu0 0.0
    %496 = vmatmul.mubr.f32.gmra.mxu0 %v254
    %v497 = vpop.f32.mrf.mxu0
    %v498 = vadd.f32 %v429, %v497
    %v499 = vpop.f32.mrf.mxu0
    %500 = vmatprep.mubr.f32.mxu0 0.0
    %501 = vmatmul.mubr.f32.gmra.mxu0 %v257
    %v502 = vpop.f32.mrf.mxu0
    %v503 = vadd.f32 %v429, %v502
    %v504 = vpop.f32.mrf.mxu0
    %505 = vdwg.mxu0
    %v506 = vld [vmem:[%s39] sm:$0xff]
    %v507 = vld [vmem:[%s39 + $0x8] sm:$0xff]
    %v508 = vld [vmem:[%s39 + $0x10] sm:$0xff]
    %v509 = vld [vmem:[%s39 + $0x18] sm:$0xff]
    %v510 = vld [vmem:[%s41] sm:$0x1]
    %v512 = vlaneseq
    %v513 = vshrl.u32 %v512, 7
    %v514 = vsub.s32 0, %v513
    %v515 = vrot.slane %v510, %v514
    %517 = vmatprep.subr.mxu0 0.0
    %518 = vmatpush1.msra.mxu0 0.0
    %519 = vmatprep.subr.mxu0 0.0
    %520 = vmatpush1.msra.mxu0 0.0
    %521 = vmatprep.subr.mxu0 0.0
    %522 = vmatpush1.msra.mxu0 0.0
    %523 = vmatprep.subr.mxu0 0.0
    %524 = vmatpush1.msra.mxu0 0.0
    %525 = vmatprep.subr.mxu0 0.0
    %526 = vmatpush1.msra.mxu0 0.0
    %527 = vmatprep.subr.mxu0 0.0
    %528 = vmatpush1.msra.mxu0 0.0
    %529 = vmatprep.subr.mxu0 0.0
    %530 = vmatpush1.msra.mxu0 0.0
    %531 = vmatprep.subr.mxu0 0.0
    %532 = vmatpush1.msra.mxu0 0.0
    %533 = vmatprep.subr.mxu0 0.0
    %534 = vmatpush1.msra.mxu0 0.0
    %535 = vmatprep.subr.mxu0 0.0
    %536 = vmatpush1.msra.mxu0 0.0
    %537 = vmatprep.subr.mxu0 0.0
    %538 = vmatpush1.msra.mxu0 0.0
    %539 = vmatprep.subr.mxu0 0.0
    %540 = vmatpush1.msra.mxu0 0.0
    %541 = vmatprep.subr.mxu0 0.0
    %542 = vmatpush1.msra.mxu0 %v509
    %543 = vmatprep.subr.mxu0 0.0
    %544 = vmatpush1.msra.mxu0 %v508
    %545 = vmatprep.subr.mxu0 0.0
    %546 = vmatpush1.msra.mxu0 %v507
    %547 = vmatprep.subr.mxu0 0.0
    %548 = vmatpush1.msra.mxu0 %v506
    %549 = vmatprep.subr.mxu0 0.0
    %550 = vmatpush2.msra.mxu0 0.0
    %551 = vmatprep.subr.mxu0 0.0
    %552 = vmatpush2.msra.mxu0 0.0
    %553 = vmatprep.subr.mxu0 0.0
    %554 = vmatpush2.msra.mxu0 0.0
    %555 = vmatprep.subr.mxu0 0.0
    %556 = vmatpush2.msra.mxu0 0.0
    %557 = vmatprep.subr.mxu0 0.0
    %558 = vmatpush2.msra.mxu0 0.0
    %559 = vmatprep.subr.mxu0 0.0
    %560 = vmatpush2.msra.mxu0 0.0
    %561 = vmatprep.subr.mxu0 0.0
    %562 = vmatpush2.msra.mxu0 0.0
    %563 = vmatprep.subr.mxu0 0.0
    %564 = vmatpush2.msra.mxu0 0.0
    %565 = vmatprep.subr.mxu0 0.0
    %566 = vmatpush2.msra.mxu0 0.0
    %567 = vmatprep.subr.mxu0 0.0
    %568 = vmatpush2.msra.mxu0 0.0
    %569 = vmatprep.subr.mxu0 0.0
    %570 = vmatpush2.msra.mxu0 0.0
    %571 = vmatprep.subr.mxu0 0.0
    %572 = vmatpush2.msra.mxu0 0.0
    %573 = vmatprep.subr.mxu0 0.0
    %574 = vmatpush2.msra.mxu0 0.0
    %575 = vmatprep.subr.mxu0 0.0
    %576 = vmatpush2.msra.mxu0 0.0
    %577 = vmatprep.subr.mxu0 0.0
    %578 = vmatpush2.msra.mxu0 0.0
    %579 = vmatprep.subr.mxu0 0.0
    %580 = vmatpush2.msra.mxu0 0.0
    %581 = vmatprep.mubr.f32.mxu0 0.0
    %582 = vmatmul.mubr.f32.gmra.mxu0 %v254
    %v583 = vpop.f32.mrf.mxu0
    %v584 = vadd.f32 %v515, %v583
    %v585 = vpop.f32.mrf.mxu0
    %586 = vmatprep.mubr.f32.mxu0 0.0
    %587 = vmatmul.mubr.f32.gmra.mxu0 %v257
    %v588 = vpop.f32.mrf.mxu0
    %v589 = vadd.f32 %v515, %v588
    %v590 = vpop.f32.mrf.mxu0
    %591 = vdwg.mxu0
    %v592 = vld [vmem:[%s43] sm:$0xff]
    %v593 = vld [vmem:[%s43 + $0x8] sm:$0xff]
    %v594 = vld [vmem:[%s43 + $0x10] sm:$0xff]
    %v595 = vld [vmem:[%s43 + $0x18] sm:$0xff]
    %v596 = vld [vmem:[%s45] sm:$0x1]
    %v598 = vlaneseq
    %v599 = vshrl.u32 %v598, 7
    %v600 = vsub.s32 0, %v599
    %v601 = vrot.slane %v596, %v600
    %603 = vmatprep.subr.mxu0 0.0
    %604 = vmatpush1.msra.mxu0 0.0
    %605 = vmatprep.subr.mxu0 0.0
    %606 = vmatpush1.msra.mxu0 0.0
    %607 = vmatprep.subr.mxu0 0.0
    %608 = vmatpush1.msra.mxu0 0.0
    %609 = vmatprep.subr.mxu0 0.0
    %610 = vmatpush1.msra.mxu0 0.0
    %611 = vmatprep.subr.mxu0 0.0
    %612 = vmatpush1.msra.mxu0 0.0
    %613 = vmatprep.subr.mxu0 0.0
    %614 = vmatpush1.msra.mxu0 0.0
    %615 = vmatprep.subr.mxu0 0.0
    %616 = vmatpush1.msra.mxu0 0.0
    %617 = vmatprep.subr.mxu0 0.0
    %618 = vmatpush1.msra.mxu0 0.0
    %619 = vmatprep.subr.mxu0 0.0
    %620 = vmatpush1.msra.mxu0 0.0
    %621 = vmatprep.subr.mxu0 0.0
    %622 = vmatpush1.msra.mxu0 0.0
    %623 = vmatprep.subr.mxu0 0.0
    %624 = vmatpush1.msra.mxu0 0.0
    %625 = vmatprep.subr.mxu0 0.0
    %626 = vmatpush1.msra.mxu0 0.0
    %627 = vmatprep.subr.mxu0 0.0
    %628 = vmatpush1.msra.mxu0 %v595
    %629 = vmatprep.subr.mxu0 0.0
    %630 = vmatpush1.msra.mxu0 %v594
    %631 = vmatprep.subr.mxu0 0.0
    %632 = vmatpush1.msra.mxu0 %v593
    %633 = vmatprep.subr.mxu0 0.0
    %634 = vmatpush1.msra.mxu0 %v592
    %635 = vmatprep.subr.mxu0 0.0
    %636 = vmatpush2.msra.mxu0 0.0
    %637 = vmatprep.subr.mxu0 0.0
    %638 = vmatpush2.msra.mxu0 0.0
    %639 = vmatprep.subr.mxu0 0.0
    %640 = vmatpush2.msra.mxu0 0.0
    %641 = vmatprep.subr.mxu0 0.0
    %642 = vmatpush2.msra.mxu0 0.0
    %643 = vmatprep.subr.mxu0 0.0
    %644 = vmatpush2.msra.mxu0 0.0
    %645 = vmatprep.subr.mxu0 0.0
    %646 = vmatpush2.msra.mxu0 0.0
    %647 = vmatprep.subr.mxu0 0.0
    %648 = vmatpush2.msra.mxu0 0.0
    %649 = vmatprep.subr.mxu0 0.0
    %650 = vmatpush2.msra.mxu0 0.0
    %651 = vmatprep.subr.mxu0 0.0
    %652 = vmatpush2.msra.mxu0 0.0
    %653 = vmatprep.subr.mxu0 0.0
    %654 = vmatpush2.msra.mxu0 0.0
    %655 = vmatprep.subr.mxu0 0.0
    %656 = vmatpush2.msra.mxu0 0.0
    %657 = vmatprep.subr.mxu0 0.0
    %658 = vmatpush2.msra.mxu0 0.0
    %659 = vmatprep.subr.mxu0 0.0
    %660 = vmatpush2.msra.mxu0 0.0
    %661 = vmatprep.subr.mxu0 0.0
    %662 = vmatpush2.msra.mxu0 0.0
    %663 = vmatprep.subr.mxu0 0.0
    %664 = vmatpush2.msra.mxu0 0.0
    %665 = vmatprep.subr.mxu0 0.0
    %666 = vmatpush2.msra.mxu0 0.0
    %667 = vmatprep.mubr.f32.mxu0 0.0
    %668 = vmatmul.mubr.f32.gmra.mxu0 %v254
    %v669 = vpop.f32.mrf.mxu0
    %v670 = vadd.f32 %v601, %v669
    %v671 = vpop.f32.mrf.mxu0
    %672 = vmatprep.mubr.f32.mxu0 0.0
    %673 = vmatmul.mubr.f32.gmra.mxu0 %v257
    %v674 = vpop.f32.mrf.mxu0
    %v675 = vadd.f32 %v601, %v674
    %v676 = vpop.f32.mrf.mxu0
    %677 = vdwg.mxu0
    %v678 = vxor.u32 %v584, 2147483648
    %v679 = vxor.u32 %v589, 2147483648
    %v680 = vmul.f32 %v678, 1.442695
    %v681 = vpow.pop %v680
    %v682 = vmul.f32 %v679, 1.442695
    %v683 = vpow.pop %v682
    %v684 = vadd.f32 %v681, 1.0
    %v685 = vadd.f32 %v683, 1.0
    %v686 = vrcp.pop %v684
    %v687 = vmul.f32 1.0, %v686
    %v688 = vrcp.pop %v685
    %v689 = vmul.f32 1.0, %v688
    %v690 = vmul.f32 %v584, %v687
    %v691 = vmul.f32 %v589, %v689
    %v692 = vmul.f32 %v690, %v670
    %v693 = vmul.f32 %v691, %v675
    %v694 = vld [vmem:[%s47] sm:$0xff]
    %v695 = vld [vmem:[%s47 + $0x8] sm:$0xff]
    %v696 = vld [vmem:[%s47 + $0x10] sm:$0xff]
    %v697 = vld [vmem:[%s47 + $0x18] sm:$0xff]
    %v698 = vld [vmem:[%s47 + $0x20] sm:$0xff]
    %v699 = vld [vmem:[%s47 + $0x28] sm:$0xff]
    %v700 = vld [vmem:[%s47 + $0x30] sm:$0xff]
    %v701 = vld [vmem:[%s47 + $0x38] sm:$0xff]
    %v702 = vld [vmem:[%s47 + $0x40] sm:$0xff]
    %v703 = vld [vmem:[%s47 + $0x48] sm:$0xff]
    %v704 = vld [vmem:[%s47 + $0x50] sm:$0xff]
    %v705 = vld [vmem:[%s47 + $0x58] sm:$0xff]
    %v706 = vld [vmem:[%s47 + $0x60] sm:$0xff]
    %v707 = vld [vmem:[%s47 + $0x68] sm:$0xff]
    %v708 = vld [vmem:[%s47 + $0x70] sm:$0xff]
    %v709 = vld [vmem:[%s47 + $0x78] sm:$0xff]
    %v710 = vld [vmem:[%s49] sm:$0x1]
    %v712 = vlaneseq
    %v713 = vshrl.u32 %v712, 7
    %v714 = vsub.s32 0, %v713
    %v715 = vrot.slane %v710, %v714
    %717 = vmatprep.subr.mxu0 0.0
    %718 = vmatpush1.msra.mxu0 %v709
    %719 = vmatprep.subr.mxu0 0.0
    %720 = vmatpush1.msra.mxu0 %v708
    %721 = vmatprep.subr.mxu0 0.0
    %722 = vmatpush1.msra.mxu0 %v707
    %723 = vmatprep.subr.mxu0 0.0
    %724 = vmatpush1.msra.mxu0 %v706
    %725 = vmatprep.subr.mxu0 0.0
    %726 = vmatpush1.msra.mxu0 %v705
    %727 = vmatprep.subr.mxu0 0.0
    %728 = vmatpush1.msra.mxu0 %v704
    %729 = vmatprep.subr.mxu0 0.0
    %730 = vmatpush1.msra.mxu0 %v703
    %731 = vmatprep.subr.mxu0 0.0
    %732 = vmatpush1.msra.mxu0 %v702
    %733 = vmatprep.subr.mxu0 0.0
    %734 = vmatpush1.msra.mxu0 %v701
    %735 = vmatprep.subr.mxu0 0.0
    %736 = vmatpush1.msra.mxu0 %v700
    %737 = vmatprep.subr.mxu0 0.0
    %738 = vmatpush1.msra.mxu0 %v699
    %739 = vmatprep.subr.mxu0 0.0
    %740 = vmatpush1.msra.mxu0 %v698
    %741 = vmatprep.subr.mxu0 0.0
    %742 = vmatpush1.msra.mxu0 %v697
    %743 = vmatprep.subr.mxu0 0.0
    %744 = vmatpush1.msra.mxu0 %v696
    %745 = vmatprep.subr.mxu0 0.0
    %746 = vmatpush1.msra.mxu0 %v695
    %747 = vmatprep.subr.mxu0 0.0
    %748 = vmatpush1.msra.mxu0 %v694
    %749 = vmatprep.subr.mxu0 0.0
    %750 = vmatpush2.msra.mxu0 0.0
    %751 = vmatprep.subr.mxu0 0.0
    %752 = vmatpush2.msra.mxu0 0.0
    %753 = vmatprep.subr.mxu0 0.0
    %754 = vmatpush2.msra.mxu0 0.0
    %755 = vmatprep.subr.mxu0 0.0
    %756 = vmatpush2.msra.mxu0 0.0
    %757 = vmatprep.subr.mxu0 0.0
    %758 = vmatpush2.msra.mxu0 0.0
    %759 = vmatprep.subr.mxu0 0.0
    %760 = vmatpush2.msra.mxu0 0.0
    %761 = vmatprep.subr.mxu0 0.0
    %762 = vmatpush2.msra.mxu0 0.0
    %763 = vmatprep.subr.mxu0 0.0
    %764 = vmatpush2.msra.mxu0 0.0
    %765 = vmatprep.subr.mxu0 0.0
    %766 = vmatpush2.msra.mxu0 0.0
    %767 = vmatprep.subr.mxu0 0.0
    %768 = vmatpush2.msra.mxu0 0.0
    %769 = vmatprep.subr.mxu0 0.0
    %770 = vmatpush2.msra.mxu0 0.0
    %771 = vmatprep.subr.mxu0 0.0
    %772 = vmatpush2.msra.mxu0 0.0
    %773 = vmatprep.subr.mxu0 0.0
    %774 = vmatpush2.msra.mxu0 0.0
    %775 = vmatprep.subr.mxu0 0.0
    %776 = vmatpush2.msra.mxu0 0.0
    %777 = vmatprep.subr.mxu0 0.0
    %778 = vmatpush2.msra.mxu0 0.0
    %779 = vmatprep.subr.mxu0 0.0
    %780 = vmatpush2.msra.mxu0 0.0
    %781 = vmatprep.mubr.f32.mxu0 0.0
    %782 = vmatmul.mubr.f32.gmra.mxu0 %v692
    %v783 = vpop.f32.mrf.mxu0
    %v784 = vadd.f32 %v715, %v783
    %v785 = vpop.f32.mrf.mxu0
    %786 = vmatprep.mubr.f32.mxu0 0.0
    %787 = vmatmul.mubr.f32.gmra.mxu0 %v693
    %v788 = vpop.f32.mrf.mxu0
    %v789 = vadd.f32 %v715, %v788
    %v790 = vpop.f32.mrf.mxu0
    %791 = vdwg.mxu0
    %vm792 = vcmask 64512
    %v793 = vsel %vm792, %v784, -inf
    %794 = vmax.xlane.f32.xlu0 %v793
    %v795 = vpop.xlane.xlu0 %794
    %v796 = vsel %vm792, %v789, -inf
    %797 = vmax.xlane.f32.xlu0 %v796
    %v798 = vpop.xlane.xlu0 %797
    %v799 = vsub.f32 %v784, %v795
    %v800 = vsub.f32 %v789, %v798
    %v801 = vmul.f32 %v799, 1.442695
    %v802 = vpow.pop %v801
    %v803 = vmul.f32 %v800, 1.442695
    %v804 = vpow.pop %v803
    %v806 = vsel %vm792, %v802, 0
    %v809 = vsel %vm792, %v804, 0
    %811 = vmatprep.subr.mxu0 0.0
    %812 = vmatpush1.msra.mxu0 0.0
    %813 = vmatprep.subr.mxu0 0.0
    %814 = vmatpush1.msra.mxu0 0.0
    %815 = vmatprep.subr.mxu0 0.0
    %816 = vmatpush1.msra.mxu0 0.0
    %817 = vmatprep.subr.mxu0 0.0
    %818 = vmatpush1.msra.mxu0 0.0
    %819 = vmatprep.subr.mxu0 0.0
    %820 = vmatpush1.msra.mxu0 0.0
    %821 = vmatprep.subr.mxu0 0.0
    %822 = vmatpush1.msra.mxu0 0.0
    %823 = vmatprep.subr.mxu0 0.0
    %824 = vmatpush1.msra.mxu0 0.0
    %825 = vmatprep.subr.mxu0 0.0
    %826 = vmatpush1.msra.mxu0 0.0
    %827 = vmatprep.subr.mxu0 0.0
    %828 = vmatpush1.msra.mxu0 0.0
    %829 = vmatprep.subr.mxu0 0.0
    %830 = vmatpush1.msra.mxu0 0.0
    %831 = vmatprep.subr.mxu0 0.0
    %832 = vmatpush1.msra.mxu0 0.0
    %833 = vmatprep.subr.mxu0 0.0
    %834 = vmatpush1.msra.mxu0 0.0
    %835 = vmatprep.subr.mxu0 0.0
    %836 = vmatpush1.msra.mxu0 0.0
    %837 = vmatprep.subr.mxu0 0.0
    %838 = vmatpush1.msra.mxu0 0.0
    %839 = vmatprep.subr.mxu0 0.0
    %840 = vmatpush1.msra.mxu0 0.0
    %841 = vmatprep.subr.mxu0 0.0
    %842 = vmatpush1.msra.mxu0 %v195
    %843 = vmatprep.subr.mxu0 0.0
    %844 = vmatpush2.msra.mxu0 0.0
    %845 = vmatprep.subr.mxu0 0.0
    %846 = vmatpush2.msra.mxu0 0.0
    %847 = vmatprep.subr.mxu0 0.0
    %848 = vmatpush2.msra.mxu0 0.0
    %849 = vmatprep.subr.mxu0 0.0
    %850 = vmatpush2.msra.mxu0 0.0
    %851 = vmatprep.subr.mxu0 0.0
    %852 = vmatpush2.msra.mxu0 0.0
    %853 = vmatprep.subr.mxu0 0.0
    %854 = vmatpush2.msra.mxu0 0.0
    %855 = vmatprep.subr.mxu0 0.0
    %856 = vmatpush2.msra.mxu0 0.0
    %857 = vmatprep.subr.mxu0 0.0
    %858 = vmatpush2.msra.mxu0 0.0
    %859 = vmatprep.subr.mxu0 0.0
    %860 = vmatpush2.msra.mxu0 0.0
    %861 = vmatprep.subr.mxu0 0.0
    %862 = vmatpush2.msra.mxu0 0.0
    %863 = vmatprep.subr.mxu0 0.0
    %864 = vmatpush2.msra.mxu0 0.0
    %865 = vmatprep.subr.mxu0 0.0
    %866 = vmatpush2.msra.mxu0 0.0
    %867 = vmatprep.subr.mxu0 0.0
    %868 = vmatpush2.msra.mxu0 0.0
    %869 = vmatprep.subr.mxu0 0.0
    %870 = vmatpush2.msra.mxu0 0.0
    %871 = vmatprep.subr.mxu0 0.0
    %872 = vmatpush2.msra.mxu0 0.0
    %873 = vmatprep.subr.mxu0 0.0
    %874 = vmatpush2.msra.mxu0 0.0
    %875 = vmatprep.mubr.f32.mxu0 0.0
    %876 = vmatmul.mubr.f32.gmra.mxu0 %v806
    %v877 = vpop.f32.mrf.mxu0
    %v878 = vadd.f32 0.0, %v877
    %v879 = vpop.f32.mrf.mxu0
    %880 = vmatprep.mubr.f32.mxu0 0.0
    %881 = vmatmul.mubr.f32.gmra.mxu0 %v809
    %v882 = vpop.f32.mrf.mxu0
    %v883 = vadd.f32 0.0, %v882
    %v884 = vpop.f32.mrf.mxu0
    %885 = vdwg.mxu0
    %v886 = vrcp.pop %v878
    %v887 = vmul.f32 %v802, %v886
    %v888 = vrcp.pop %v883
    %v889 = vmul.f32 %v804, %v888
    %v890 = vsub.f32 0.0, %v887
    %v891 = vsub.f32 0.0, %v889
    %v892 = vadd.f32 %v887, 1e-09
    %v893 = vadd.f32 %v889, 1e-09
    %v894 = vlog2.pop %v892
    %v895 = vmul.f32 %v894, 0.6931472
    %v896 = vlog2.pop %v893
    %v897 = vmul.f32 %v896, 0.6931472
    %v898 = vmul.f32 %v890, %v895
    %v899 = vmul.f32 %v891, %v897
    %v900 = vsel %vm792, %v898, 0.0
    %901 = vadd.xlane.f32.xlu0 %v900
    %v902 = vpop.xlane.xlu0 %901
    %v903 = vsel %vm792, %v899, 0.0
    %904 = vadd.xlane.f32.xlu0 %v903
    %v905 = vpop.xlane.xlu0 %904
    %v906 = vmul.f32 %v412, %v187
    %v907 = vmul.f32 %v412, %v188
    %v908 = vmul.f32 %v412, %v189
    %v909 = vmul.f32 %v412, %v190
    %v910 = vmul.f32 %v498, %v187
    %v911 = vmul.f32 %v498, %v188
    %v912 = vmul.f32 %v498, %v189
    %v913 = vmul.f32 %v498, %v190
    %v915 = vsel %vm196, %v326, 0
    %v918 = vsel %vm196, %v906, 0
    %v921 = vsel %vm196, %v907, 0
    %v924 = vsel %vm196, %v908, 0
    %v927 = vsel %vm196, %v909, 0
    %929 = vmatprep.subr.mxu0 0.0
    %930 = vmatpush1.xpose.msra.mxu0 0.0
    %931 = vmatprep.subr.mxu0 0.0
    %932 = vmatpush1.xpose.msra.mxu0 0.0
    %933 = vmatprep.subr.mxu0 0.0
    %934 = vmatpush1.xpose.msra.mxu0 0.0
    %935 = vmatprep.subr.mxu0 0.0
    %936 = vmatpush1.xpose.msra.mxu0 0.0
    %937 = vmatprep.subr.mxu0 0.0
    %938 = vmatpush1.xpose.msra.mxu0 0.0
    %939 = vmatprep.subr.mxu0 0.0
    %940 = vmatpush1.xpose.msra.mxu0 0.0
    %941 = vmatprep.subr.mxu0 0.0
    %942 = vmatpush1.xpose.msra.mxu0 0.0
    %943 = vmatprep.subr.mxu0 0.0
    %944 = vmatpush1.xpose.msra.mxu0 0.0
    %945 = vmatprep.subr.mxu0 0.0
    %946 = vmatpush1.xpose.msra.mxu0 0.0
    %947 = vmatprep.subr.mxu0 0.0
    %948 = vmatpush1.xpose.msra.mxu0 0.0
    %949 = vmatprep.subr.mxu0 0.0
    %950 = vmatpush1.xpose.msra.mxu0 0.0
    %951 = vmatprep.subr.mxu0 0.0
    %952 = vmatpush1.xpose.msra.mxu0 0.0
    %953 = vmatprep.subr.mxu0 0.0
    %954 = vmatpush1.xpose.msra.mxu0 %v927
    %955 = vmatprep.subr.mxu0 0.0
    %956 = vmatpush1.xpose.msra.mxu0 %v924
    %957 = vmatprep.subr.mxu0 0.0
    %958 = vmatpush1.xpose.msra.mxu0 %v921
    %959 = vmatprep.subr.mxu0 0.0
    %960 = vmatpush1.xpose.msra.mxu0 %v918
    %961 = vmatprep.subr.mxu0 0.0
    %962 = vmatpush2.xpose.msra.mxu0 0.0
    %963 = vmatprep.subr.mxu0 0.0
    %964 = vmatpush2.xpose.msra.mxu0 0.0
    %965 = vmatprep.subr.mxu0 0.0
    %966 = vmatpush2.xpose.msra.mxu0 0.0
    %967 = vmatprep.subr.mxu0 0.0
    %968 = vmatpush2.xpose.msra.mxu0 0.0
    %969 = vmatprep.subr.mxu0 0.0
    %970 = vmatpush2.xpose.msra.mxu0 0.0
    %971 = vmatprep.subr.mxu0 0.0
    %972 = vmatpush2.xpose.msra.mxu0 0.0
    %973 = vmatprep.subr.mxu0 0.0
    %974 = vmatpush2.xpose.msra.mxu0 0.0
    %975 = vmatprep.subr.mxu0 0.0
    %976 = vmatpush2.xpose.msra.mxu0 0.0
    %977 = vmatprep.subr.mxu0 0.0
    %978 = vmatpush2.xpose.msra.mxu0 0.0
    %979 = vmatprep.subr.mxu0 0.0
    %980 = vmatpush2.xpose.msra.mxu0 0.0
    %981 = vmatprep.subr.mxu0 0.0
    %982 = vmatpush2.xpose.msra.mxu0 0.0
    %983 = vmatprep.subr.mxu0 0.0
    %984 = vmatpush2.xpose.msra.mxu0 0.0
    %985 = vmatprep.subr.mxu0 0.0
    %986 = vmatpush2.xpose.msra.mxu0 0.0
    %987 = vmatprep.subr.mxu0 0.0
    %988 = vmatpush2.xpose.msra.mxu0 0.0
    %989 = vmatprep.subr.mxu0 0.0
    %990 = vmatpush2.xpose.msra.mxu0 0.0
    %991 = vmatprep.subr.mxu0 0.0
    %992 = vmatpush2.xpose.msra.mxu0 0.0
    %993 = vmatprep.mubr.f32.mxu0 0.0
    %994 = vmatmul.mubr.f32.gmra.mxu0 %v915
    %v995 = vpop.f32.mrf.mxu0
    %v996 = vadd.f32 0.0, %v995
    %v997 = vpop.f32.mrf.mxu0
    %998 = vdwg.mxu0
    %v999 = vsel %vm196, %v996, -inf
    %1000 = vmax.xlane.f32.xlu0 %v999
    %v1001 = vpop.xlane.xlu0 %1000
    %v1002 = vsub.f32 %v996, %v1001
    %v1003 = vmul.f32 %v1002, 1.442695
    %v1004 = vpow.pop %v1003
    %v1006 = vsel %vm196, %v1004, 0
    %1008 = vmatprep.subr.mxu0 0.0
    %1009 = vmatpush1.msra.mxu0 0.0
    %1010 = vmatprep.subr.mxu0 0.0
    %1011 = vmatpush1.msra.mxu0 0.0
    %1012 = vmatprep.subr.mxu0 0.0
    %1013 = vmatpush1.msra.mxu0 0.0
    %1014 = vmatprep.subr.mxu0 0.0
    %1015 = vmatpush1.msra.mxu0 0.0
    %1016 = vmatprep.subr.mxu0 0.0
    %1017 = vmatpush1.msra.mxu0 0.0
    %1018 = vmatprep.subr.mxu0 0.0
    %1019 = vmatpush1.msra.mxu0 0.0
    %1020 = vmatprep.subr.mxu0 0.0
    %1021 = vmatpush1.msra.mxu0 0.0
    %1022 = vmatprep.subr.mxu0 0.0
    %1023 = vmatpush1.msra.mxu0 0.0
    %1024 = vmatprep.subr.mxu0 0.0
    %1025 = vmatpush1.msra.mxu0 0.0
    %1026 = vmatprep.subr.mxu0 0.0
    %1027 = vmatpush1.msra.mxu0 0.0
    %1028 = vmatprep.subr.mxu0 0.0
    %1029 = vmatpush1.msra.mxu0 0.0
    %1030 = vmatprep.subr.mxu0 0.0
    %1031 = vmatpush1.msra.mxu0 0.0
    %1032 = vmatprep.subr.mxu0 0.0
    %1033 = vmatpush1.msra.mxu0 %v194
    %1034 = vmatprep.subr.mxu0 0.0
    %1035 = vmatpush1.msra.mxu0 %v193
    %1036 = vmatprep.subr.mxu0 0.0
    %1037 = vmatpush1.msra.mxu0 %v192
    %1038 = vmatprep.subr.mxu0 0.0
    %1039 = vmatpush1.msra.mxu0 %v191
    %1040 = vmatprep.subr.mxu0 0.0
    %1041 = vmatpush2.msra.mxu0 0.0
    %1042 = vmatprep.subr.mxu0 0.0
    %1043 = vmatpush2.msra.mxu0 0.0
    %1044 = vmatprep.subr.mxu0 0.0
    %1045 = vmatpush2.msra.mxu0 0.0
    %1046 = vmatprep.subr.mxu0 0.0
    %1047 = vmatpush2.msra.mxu0 0.0
    %1048 = vmatprep.subr.mxu0 0.0
    %1049 = vmatpush2.msra.mxu0 0.0
    %1050 = vmatprep.subr.mxu0 0.0
    %1051 = vmatpush2.msra.mxu0 0.0
    %1052 = vmatprep.subr.mxu0 0.0
    %1053 = vmatpush2.msra.mxu0 0.0
    %1054 = vmatprep.subr.mxu0 0.0
    %1055 = vmatpush2.msra.mxu0 0.0
    %1056 = vmatprep.subr.mxu0 0.0
    %1057 = vmatpush2.msra.mxu0 0.0
    %1058 = vmatprep.subr.mxu0 0.0
    %1059 = vmatpush2.msra.mxu0 0.0
    %1060 = vmatprep.subr.mxu0 0.0
    %1061 = vmatpush2.msra.mxu0 0.0
    %1062 = vmatprep.subr.mxu0 0.0
    %1063 = vmatpush2.msra.mxu0 0.0
    %1064 = vmatprep.subr.mxu0 0.0
    %1065 = vmatpush2.msra.mxu0 0.0
    %1066 = vmatprep.subr.mxu0 0.0
    %1067 = vmatpush2.msra.mxu0 0.0
    %1068 = vmatprep.subr.mxu0 0.0
    %1069 = vmatpush2.msra.mxu0 0.0
    %1070 = vmatprep.subr.mxu0 0.0
    %1071 = vmatpush2.msra.mxu0 0.0
    %1072 = vmatprep.mubr.f32.mxu0 0.0
    %1073 = vmatmul.mubr.f32.gmra.mxu0 %v1006
    %v1074 = vpop.f32.mrf.mxu0
    %v1075 = vadd.f32 0.0, %v1074
    %v1076 = vpop.f32.mrf.mxu0
    %1077 = vdwg.mxu0
    %v1078 = vrcp.pop %v1075
    %v1079 = vmul.f32 %v1004, %v1078
    %v1081 = vsel %vm196, %v1079, 0
    %1083 = vmatprep.subr.mxu0 0.0
    %1084 = vmatpush1.msra.mxu0 0.0
    %1085 = vmatprep.subr.mxu0 0.0
    %1086 = vmatpush1.msra.mxu0 0.0
    %1087 = vmatprep.subr.mxu0 0.0
    %1088 = vmatpush1.msra.mxu0 0.0
    %1089 = vmatprep.subr.mxu0 0.0
    %1090 = vmatpush1.msra.mxu0 0.0
    %1091 = vmatprep.subr.mxu0 0.0
    %1092 = vmatpush1.msra.mxu0 0.0
    %1093 = vmatprep.subr.mxu0 0.0
    %1094 = vmatpush1.msra.mxu0 0.0
    %1095 = vmatprep.subr.mxu0 0.0
    %1096 = vmatpush1.msra.mxu0 0.0
    %1097 = vmatprep.subr.mxu0 0.0
    %1098 = vmatpush1.msra.mxu0 0.0
    %1099 = vmatprep.subr.mxu0 0.0
    %1100 = vmatpush1.msra.mxu0 0.0
    %1101 = vmatprep.subr.mxu0 0.0
    %1102 = vmatpush1.msra.mxu0 0.0
    %1103 = vmatprep.subr.mxu0 0.0
    %1104 = vmatpush1.msra.mxu0 0.0
    %1105 = vmatprep.subr.mxu0 0.0
    %1106 = vmatpush1.msra.mxu0 0.0
    %1107 = vmatprep.subr.mxu0 0.0
    %1108 = vmatpush1.msra.mxu0 %v913
    %1109 = vmatprep.subr.mxu0 0.0
    %1110 = vmatpush1.msra.mxu0 %v912
    %1111 = vmatprep.subr.mxu0 0.0
    %1112 = vmatpush1.msra.mxu0 %v911
    %1113 = vmatprep.subr.mxu0 0.0
    %1114 = vmatpush1.msra.mxu0 %v910
    %1115 = vmatprep.subr.mxu0 0.0
    %1116 = vmatpush2.msra.mxu0 0.0
    %1117 = vmatprep.subr.mxu0 0.0
    %1118 = vmatpush2.msra.mxu0 0.0
    %1119 = vmatprep.subr.mxu0 0.0
    %1120 = vmatpush2.msra.mxu0 0.0
    %1121 = vmatprep.subr.mxu0 0.0
    %1122 = vmatpush2.msra.mxu0 0.0
    %1123 = vmatprep.subr.mxu0 0.0
    %1124 = vmatpush2.msra.mxu0 0.0
    %1125 = vmatprep.subr.mxu0 0.0
    %1126 = vmatpush2.msra.mxu0 0.0
    %1127 = vmatprep.subr.mxu0 0.0
    %1128 = vmatpush2.msra.mxu0 0.0
    %1129 = vmatprep.subr.mxu0 0.0
    %1130 = vmatpush2.msra.mxu0 0.0
    %1131 = vmatprep.subr.mxu0 0.0
    %1132 = vmatpush2.msra.mxu0 0.0
    %1133 = vmatprep.subr.mxu0 0.0
    %1134 = vmatpush2.msra.mxu0 0.0
    %1135 = vmatprep.subr.mxu0 0.0
    %1136 = vmatpush2.msra.mxu0 0.0
    %1137 = vmatprep.subr.mxu0 0.0
    %1138 = vmatpush2.msra.mxu0 0.0
    %1139 = vmatprep.subr.mxu0 0.0
    %1140 = vmatpush2.msra.mxu0 0.0
    %1141 = vmatprep.subr.mxu0 0.0
    %1142 = vmatpush2.msra.mxu0 0.0
    %1143 = vmatprep.subr.mxu0 0.0
    %1144 = vmatpush2.msra.mxu0 0.0
    %1145 = vmatprep.subr.mxu0 0.0
    %1146 = vmatpush2.msra.mxu0 0.0
    %1147 = vmatprep.mubr.f32.mxu0 0.0
    %1148 = vmatmul.mubr.f32.gmra.mxu0 %v1081
    %v1149 = vpop.f32.mrf.mxu0
    %v1150 = vadd.f32 0.0, %v1149
    %v1151 = vpop.f32.mrf.mxu0
    %1152 = vdwg.mxu0
    %v1153 = vmul.f32 %v417, %v187
    %v1154 = vmul.f32 %v417, %v188
    %v1155 = vmul.f32 %v417, %v189
    %v1156 = vmul.f32 %v417, %v190
    %v1157 = vmul.f32 %v503, %v187
    %v1158 = vmul.f32 %v503, %v188
    %v1159 = vmul.f32 %v503, %v189
    %v1160 = vmul.f32 %v503, %v190
    %v1162 = vsel %vm196, %v331, 0
    %v1165 = vsel %vm196, %v1153, 0
    %v1168 = vsel %vm196, %v1154, 0
    %v1171 = vsel %vm196, %v1155, 0
    %v1174 = vsel %vm196, %v1156, 0
    %1176 = vmatprep.subr.mxu0 0.0
    %1177 = vmatpush1.xpose.msra.mxu0 0.0
    %1178 = vmatprep.subr.mxu0 0.0
    %1179 = vmatpush1.xpose.msra.mxu0 0.0
    %1180 = vmatprep.subr.mxu0 0.0
    %1181 = vmatpush1.xpose.msra.mxu0 0.0
    %1182 = vmatprep.subr.mxu0 0.0
    %1183 = vmatpush1.xpose.msra.mxu0 0.0
    %1184 = vmatprep.subr.mxu0 0.0
    %1185 = vmatpush1.xpose.msra.mxu0 0.0
    %1186 = vmatprep.subr.mxu0 0.0
    %1187 = vmatpush1.xpose.msra.mxu0 0.0
    %1188 = vmatprep.subr.mxu0 0.0
    %1189 = vmatpush1.xpose.msra.mxu0 0.0
    %1190 = vmatprep.subr.mxu0 0.0
    %1191 = vmatpush1.xpose.msra.mxu0 0.0
    %1192 = vmatprep.subr.mxu0 0.0
    %1193 = vmatpush1.xpose.msra.mxu0 0.0
    %1194 = vmatprep.subr.mxu0 0.0
    %1195 = vmatpush1.xpose.msra.mxu0 0.0
    %1196 = vmatprep.subr.mxu0 0.0
    %1197 = vmatpush1.xpose.msra.mxu0 0.0
    %1198 = vmatprep.subr.mxu0 0.0
    %1199 = vmatpush1.xpose.msra.mxu0 0.0
    %1200 = vmatprep.subr.mxu0 0.0
    %1201 = vmatpush1.xpose.msra.mxu0 %v1174
    %1202 = vmatprep.subr.mxu0 0.0
    %1203 = vmatpush1.xpose.msra.mxu0 %v1171
    %1204 = vmatprep.subr.mxu0 0.0
    %1205 = vmatpush1.xpose.msra.mxu0 %v1168
    %1206 = vmatprep.subr.mxu0 0.0
    %1207 = vmatpush1.xpose.msra.mxu0 %v1165
    %1208 = vmatprep.subr.mxu0 0.0
    %1209 = vmatpush2.xpose.msra.mxu0 0.0
    %1210 = vmatprep.subr.mxu0 0.0
    %1211 = vmatpush2.xpose.msra.mxu0 0.0
    %1212 = vmatprep.subr.mxu0 0.0
    %1213 = vmatpush2.xpose.msra.mxu0 0.0
    %1214 = vmatprep.subr.mxu0 0.0
    %1215 = vmatpush2.xpose.msra.mxu0 0.0
    %1216 = vmatprep.subr.mxu0 0.0
    %1217 = vmatpush2.xpose.msra.mxu0 0.0
    %1218 = vmatprep.subr.mxu0 0.0
    %1219 = vmatpush2.xpose.msra.mxu0 0.0
    %1220 = vmatprep.subr.mxu0 0.0
    %1221 = vmatpush2.xpose.msra.mxu0 0.0
    %1222 = vmatprep.subr.mxu0 0.0
    %1223 = vmatpush2.xpose.msra.mxu0 0.0
    %1224 = vmatprep.subr.mxu0 0.0
    %1225 = vmatpush2.xpose.msra.mxu0 0.0
    %1226 = vmatprep.subr.mxu0 0.0
    %1227 = vmatpush2.xpose.msra.mxu0 0.0
    %1228 = vmatprep.subr.mxu0 0.0
    %1229 = vmatpush2.xpose.msra.mxu0 0.0
    %1230 = vmatprep.subr.mxu0 0.0
    %1231 = vmatpush2.xpose.msra.mxu0 0.0
    %1232 = vmatprep.subr.mxu0 0.0
    %1233 = vmatpush2.xpose.msra.mxu0 0.0
    %1234 = vmatprep.subr.mxu0 0.0
    %1235 = vmatpush2.xpose.msra.mxu0 0.0
    %1236 = vmatprep.subr.mxu0 0.0
    %1237 = vmatpush2.xpose.msra.mxu0 0.0
    %1238 = vmatprep.subr.mxu0 0.0
    %1239 = vmatpush2.xpose.msra.mxu0 0.0
    %1240 = vmatprep.mubr.f32.mxu0 0.0
    %1241 = vmatmul.mubr.f32.gmra.mxu0 %v1162
    %v1242 = vpop.f32.mrf.mxu0
    %v1243 = vadd.f32 0.0, %v1242
    %v1244 = vpop.f32.mrf.mxu0
    %1245 = vdwg.mxu0
    %v1246 = vsel %vm196, %v1243, -inf
    %1247 = vmax.xlane.f32.xlu0 %v1246
    %v1248 = vpop.xlane.xlu0 %1247
    %v1249 = vsub.f32 %v1243, %v1248
    %v1250 = vmul.f32 %v1249, 1.442695
    %v1251 = vpow.pop %v1250
    %v1253 = vsel %vm196, %v1251, 0
    %1255 = vmatprep.subr.mxu0 0.0
    %1256 = vmatpush1.msra.mxu0 0.0
    %1257 = vmatprep.subr.mxu0 0.0
    %1258 = vmatpush1.msra.mxu0 0.0
    %1259 = vmatprep.subr.mxu0 0.0
    %1260 = vmatpush1.msra.mxu0 0.0
    %1261 = vmatprep.subr.mxu0 0.0
    %1262 = vmatpush1.msra.mxu0 0.0
    %1263 = vmatprep.subr.mxu0 0.0
    %1264 = vmatpush1.msra.mxu0 0.0
    %1265 = vmatprep.subr.mxu0 0.0
    %1266 = vmatpush1.msra.mxu0 0.0
    %1267 = vmatprep.subr.mxu0 0.0
    %1268 = vmatpush1.msra.mxu0 0.0
    %1269 = vmatprep.subr.mxu0 0.0
    %1270 = vmatpush1.msra.mxu0 0.0
    %1271 = vmatprep.subr.mxu0 0.0
    %1272 = vmatpush1.msra.mxu0 0.0
    %1273 = vmatprep.subr.mxu0 0.0
    %1274 = vmatpush1.msra.mxu0 0.0
    %1275 = vmatprep.subr.mxu0 0.0
    %1276 = vmatpush1.msra.mxu0 0.0
    %1277 = vmatprep.subr.mxu0 0.0
    %1278 = vmatpush1.msra.mxu0 0.0
    %1279 = vmatprep.subr.mxu0 0.0
    %1280 = vmatpush1.msra.mxu0 %v194
    %1281 = vmatprep.subr.mxu0 0.0
    %1282 = vmatpush1.msra.mxu0 %v193
    %1283 = vmatprep.subr.mxu0 0.0
    %1284 = vmatpush1.msra.mxu0 %v192
    %1285 = vmatprep.subr.mxu0 0.0
    %1286 = vmatpush1.msra.mxu0 %v191
    %1287 = vmatprep.subr.mxu0 0.0
    %1288 = vmatpush2.msra.mxu0 0.0
    %1289 = vmatprep.subr.mxu0 0.0
    %1290 = vmatpush2.msra.mxu0 0.0
    %1291 = vmatprep.subr.mxu0 0.0
    %1292 = vmatpush2.msra.mxu0 0.0
    %1293 = vmatprep.subr.mxu0 0.0
    %1294 = vmatpush2.msra.mxu0 0.0
    %1295 = vmatprep.subr.mxu0 0.0
    %1296 = vmatpush2.msra.mxu0 0.0
    %1297 = vmatprep.subr.mxu0 0.0
    %1298 = vmatpush2.msra.mxu0 0.0
    %1299 = vmatprep.subr.mxu0 0.0
    %1300 = vmatpush2.msra.mxu0 0.0
    %1301 = vmatprep.subr.mxu0 0.0
    %1302 = vmatpush2.msra.mxu0 0.0
    %1303 = vmatprep.subr.mxu0 0.0
    %1304 = vmatpush2.msra.mxu0 0.0
    %1305 = vmatprep.subr.mxu0 0.0
    %1306 = vmatpush2.msra.mxu0 0.0
    %1307 = vmatprep.subr.mxu0 0.0
    %1308 = vmatpush2.msra.mxu0 0.0
    %1309 = vmatprep.subr.mxu0 0.0
    %1310 = vmatpush2.msra.mxu0 0.0
    %1311 = vmatprep.subr.mxu0 0.0
    %1312 = vmatpush2.msra.mxu0 0.0
    %1313 = vmatprep.subr.mxu0 0.0
    %1314 = vmatpush2.msra.mxu0 0.0
    %1315 = vmatprep.subr.mxu0 0.0
    %1316 = vmatpush2.msra.mxu0 0.0
    %1317 = vmatprep.subr.mxu0 0.0
    %1318 = vmatpush2.msra.mxu0 0.0
    %1319 = vmatprep.mubr.f32.mxu0 0.0
    %1320 = vmatmul.mubr.f32.gmra.mxu0 %v1253
    %v1321 = vpop.f32.mrf.mxu0
    %v1322 = vadd.f32 0.0, %v1321
    %v1323 = vpop.f32.mrf.mxu0
    %1324 = vdwg.mxu0
    %v1325 = vrcp.pop %v1322
    %v1326 = vmul.f32 %v1251, %v1325
    %v1328 = vsel %vm196, %v1326, 0
    %1330 = vmatprep.subr.mxu0 0.0
    %1331 = vmatpush1.msra.mxu0 0.0
    %1332 = vmatprep.subr.mxu0 0.0
    %1333 = vmatpush1.msra.mxu0 0.0
    %1334 = vmatprep.subr.mxu0 0.0
    %1335 = vmatpush1.msra.mxu0 0.0
    %1336 = vmatprep.subr.mxu0 0.0
    %1337 = vmatpush1.msra.mxu0 0.0
    %1338 = vmatprep.subr.mxu0 0.0
    %1339 = vmatpush1.msra.mxu0 0.0
    %1340 = vmatprep.subr.mxu0 0.0
    %1341 = vmatpush1.msra.mxu0 0.0
    %1342 = vmatprep.subr.mxu0 0.0
    %1343 = vmatpush1.msra.mxu0 0.0
    %1344 = vmatprep.subr.mxu0 0.0
    %1345 = vmatpush1.msra.mxu0 0.0
    %1346 = vmatprep.subr.mxu0 0.0
    %1347 = vmatpush1.msra.mxu0 0.0
    %1348 = vmatprep.subr.mxu0 0.0
    %1349 = vmatpush1.msra.mxu0 0.0
    %1350 = vmatprep.subr.mxu0 0.0
    %1351 = vmatpush1.msra.mxu0 0.0
    %1352 = vmatprep.subr.mxu0 0.0
    %1353 = vmatpush1.msra.mxu0 0.0
    %1354 = vmatprep.subr.mxu0 0.0
    %1355 = vmatpush1.msra.mxu0 %v1160
    %1356 = vmatprep.subr.mxu0 0.0
    %1357 = vmatpush1.msra.mxu0 %v1159
    %1358 = vmatprep.subr.mxu0 0.0
    %1359 = vmatpush1.msra.mxu0 %v1158
    %1360 = vmatprep.subr.mxu0 0.0
    %1361 = vmatpush1.msra.mxu0 %v1157
    %1362 = vmatprep.subr.mxu0 0.0
    %1363 = vmatpush2.msra.mxu0 0.0
    %1364 = vmatprep.subr.mxu0 0.0
    %1365 = vmatpush2.msra.mxu0 0.0
    %1366 = vmatprep.subr.mxu0 0.0
    %1367 = vmatpush2.msra.mxu0 0.0
    %1368 = vmatprep.subr.mxu0 0.0
    %1369 = vmatpush2.msra.mxu0 0.0
    %1370 = vmatprep.subr.mxu0 0.0
    %1371 = vmatpush2.msra.mxu0 0.0
    %1372 = vmatprep.subr.mxu0 0.0
    %1373 = vmatpush2.msra.mxu0 0.0
    %1374 = vmatprep.subr.mxu0 0.0
    %1375 = vmatpush2.msra.mxu0 0.0
    %1376 = vmatprep.subr.mxu0 0.0
    %1377 = vmatpush2.msra.mxu0 0.0
    %1378 = vmatprep.subr.mxu0 0.0
    %1379 = vmatpush2.msra.mxu0 0.0
    %1380 = vmatprep.subr.mxu0 0.0
    %1381 = vmatpush2.msra.mxu0 0.0
    %1382 = vmatprep.subr.mxu0 0.0
    %1383 = vmatpush2.msra.mxu0 0.0
    %1384 = vmatprep.subr.mxu0 0.0
    %1385 = vmatpush2.msra.mxu0 0.0
    %1386 = vmatprep.subr.mxu0 0.0
    %1387 = vmatpush2.msra.mxu0 0.0
    %1388 = vmatprep.subr.mxu0 0.0
    %1389 = vmatpush2.msra.mxu0 0.0
    %1390 = vmatprep.subr.mxu0 0.0
    %1391 = vmatpush2.msra.mxu0 0.0
    %1392 = vmatprep.subr.mxu0 0.0
    %1393 = vmatpush2.msra.mxu0 0.0
    %1394 = vmatprep.mubr.f32.mxu0 0.0
    %1395 = vmatmul.mubr.f32.gmra.mxu0 %v1328
    %v1396 = vpop.f32.mrf.mxu0
    %v1397 = vadd.f32 0.0, %v1396
    %v1398 = vpop.f32.mrf.mxu0
    %1399 = vdwg.mxu0
    %v1400 = vld [vmem:[%s35] sm:$0xff]
    %v1401 = vld [vmem:[%s35 + $0x8] sm:$0xff]
    %v1402 = vld [vmem:[%s35 + $0x10] sm:$0xff]
    %v1403 = vld [vmem:[%s35 + $0x18] sm:$0xff]
    %v1404 = vld [vmem:[%s37] sm:$0x1]
    %v1406 = vlaneseq
    %v1407 = vshrl.u32 %v1406, 7
    %v1408 = vsub.s32 0, %v1407
    %v1409 = vrot.slane %v1404, %v1408
    %v1412 = vsel %vm196, %v1150, 0
    %v1415 = vsel %vm196, %v1397, 0
    %1417 = vmatprep.subr.mxu0 0.0
    %1418 = vmatpush1.msra.mxu0 0.0
    %1419 = vmatprep.subr.mxu0 0.0
    %1420 = vmatpush1.msra.mxu0 0.0
    %1421 = vmatprep.subr.mxu0 0.0
    %1422 = vmatpush1.msra.mxu0 0.0
    %1423 = vmatprep.subr.mxu0 0.0
    %1424 = vmatpush1.msra.mxu0 0.0
    %1425 = vmatprep.subr.mxu0 0.0
    %1426 = vmatpush1.msra.mxu0 0.0
    %1427 = vmatprep.subr.mxu0 0.0
    %1428 = vmatpush1.msra.mxu0 0.0
    %1429 = vmatprep.subr.mxu0 0.0
    %1430 = vmatpush1.msra.mxu0 0.0
    %1431 = vmatprep.subr.mxu0 0.0
    %1432 = vmatpush1.msra.mxu0 0.0
    %1433 = vmatprep.subr.mxu0 0.0
    %1434 = vmatpush1.msra.mxu0 0.0
    %1435 = vmatprep.subr.mxu0 0.0
    %1436 = vmatpush1.msra.mxu0 0.0
    %1437 = vmatprep.subr.mxu0 0.0
    %1438 = vmatpush1.msra.mxu0 0.0
    %1439 = vmatprep.subr.mxu0 0.0
    %1440 = vmatpush1.msra.mxu0 0.0
    %1441 = vmatprep.subr.mxu0 0.0
    %1442 = vmatpush1.msra.mxu0 %v1403
    %1443 = vmatprep.subr.mxu0 0.0
    %1444 = vmatpush1.msra.mxu0 %v1402
    %1445 = vmatprep.subr.mxu0 0.0
    %1446 = vmatpush1.msra.mxu0 %v1401
    %1447 = vmatprep.subr.mxu0 0.0
    %1448 = vmatpush1.msra.mxu0 %v1400
    %1449 = vmatprep.subr.mxu0 0.0
    %1450 = vmatpush2.msra.mxu0 0.0
    %1451 = vmatprep.subr.mxu0 0.0
    %1452 = vmatpush2.msra.mxu0 0.0
    %1453 = vmatprep.subr.mxu0 0.0
    %1454 = vmatpush2.msra.mxu0 0.0
    %1455 = vmatprep.subr.mxu0 0.0
    %1456 = vmatpush2.msra.mxu0 0.0
    %1457 = vmatprep.subr.mxu0 0.0
    %1458 = vmatpush2.msra.mxu0 0.0
    %1459 = vmatprep.subr.mxu0 0.0
    %1460 = vmatpush2.msra.mxu0 0.0
    %1461 = vmatprep.subr.mxu0 0.0
    %1462 = vmatpush2.msra.mxu0 0.0
    %1463 = vmatprep.subr.mxu0 0.0
    %1464 = vmatpush2.msra.mxu0 0.0
    %1465 = vmatprep.subr.mxu0 0.0
    %1466 = vmatpush2.msra.mxu0 0.0
    %1467 = vmatprep.subr.mxu0 0.0
    %1468 = vmatpush2.msra.mxu0 0.0
    %1469 = vmatprep.subr.mxu0 0.0
    %1470 = vmatpush2.msra.mxu0 0.0
    %1471 = vmatprep.subr.mxu0 0.0
    %1472 = vmatpush2.msra.mxu0 0.0
    %1473 = vmatprep.subr.mxu0 0.0
    %1474 = vmatpush2.msra.mxu0 0.0
    %1475 = vmatprep.subr.mxu0 0.0
    %1476 = vmatpush2.msra.mxu0 0.0
    %1477 = vmatprep.subr.mxu0 0.0
    %1478 = vmatpush2.msra.mxu0 0.0
    %1479 = vmatprep.subr.mxu0 0.0
    %1480 = vmatpush2.msra.mxu0 0.0
    %1481 = vmatprep.mubr.f32.mxu0 0.0
    %1482 = vmatmul.mubr.f32.gmra.mxu0 %v1412
    %v1483 = vpop.f32.mrf.mxu0
    %v1484 = vadd.f32 %v1409, %v1483
    %v1485 = vpop.f32.mrf.mxu0
    %1486 = vmatprep.mubr.f32.mxu0 0.0
    %1487 = vmatmul.mubr.f32.gmra.mxu0 %v1415
    %v1488 = vpop.f32.mrf.mxu0
    %v1489 = vadd.f32 %v1409, %v1488
    %v1490 = vpop.f32.mrf.mxu0
    %1491 = vdwg.mxu0
    %v1492 = vadd.f32 %v183, %v1484
    %v1493 = vadd.f32 %v184, %v1489
    %v1494 = vsel %vm196, %v1492, 0.0
    %1495 = vadd.xlane.f32.xlu0 %v1494
    %v1496 = vpop.xlane.xlu0 %1495
    %v1497 = vsel %vm196, %v1493, 0.0
    %1498 = vadd.xlane.f32.xlu0 %v1497
    %v1499 = vpop.xlane.xlu0 %1498
    %v1500 = vmul.f32 %v1496, %v203
    %v1501 = vmul.f32 %v1499, %v203
    %v1502 = vsub.f32 %v1492, %v1500
    %v1503 = vsub.f32 %v1493, %v1501
    %v1504 = vmul.f32 %v1502, %v1502
    %v1505 = vmul.f32 %v1503, %v1503
    %v1506 = vsel %vm196, %v1504, 0.0
    %1507 = vadd.xlane.f32.xlu0 %v1506
    %v1508 = vpop.xlane.xlu0 %1507
    %v1509 = vsel %vm196, %v1505, 0.0
    %1510 = vadd.xlane.f32.xlu0 %v1509
    %v1511 = vpop.xlane.xlu0 %1510
    %v1512 = vmul.f32 %v1508, %v203
    %v1513 = vmul.f32 %v1511, %v203
    %v1514 = vadd.f32 %v1512, 1e-06
    %v1515 = vadd.f32 %v1513, 1e-06
    %v1516 = vrsqrt.pop %v1514
    %v1517 = vrsqrt.pop %v1515
    %v1518 = vmul.f32 %v1502, %v1516
    %v1519 = vmul.f32 %v1503, %v1517
    %v1520 = vld [vmem:[%s15] sm:$0x1]
    %v1522 = vlaneseq
    %v1523 = vshrl.u32 %v1522, 7
    %v1524 = vsub.s32 0, %v1523
    %v1525 = vrot.slane %v1520, %v1524
    %v1527 = vmul.f32 %v1518, %v1525
    %v1528 = vmul.f32 %v1519, %v1525
    %v1529 = vld [vmem:[%s17] sm:$0x1]
    %v1531 = vlaneseq
    %v1532 = vshrl.u32 %v1531, 7
    %v1533 = vsub.s32 0, %v1532
    %v1534 = vrot.slane %v1529, %v1533
    %v1536 = vadd.f32 %v1527, %v1534
    %v1537 = vadd.f32 %v1528, %v1534
    %v1538 = vld [vmem:[%s51] sm:$0xff]
    %v1539 = vld [vmem:[%s51 + $0x8] sm:$0xff]
    %v1540 = vld [vmem:[%s51 + $0x10] sm:$0xff]
    %v1541 = vld [vmem:[%s51 + $0x18] sm:$0xff]
    %v1542 = vld [vmem:[%s53] sm:$0x1]
    %v1544 = vlaneseq
    %v1545 = vshrl.u32 %v1544, 7
    %v1546 = vsub.s32 0, %v1545
    %v1547 = vrot.slane %v1542, %v1546
    %v1550 = vsel %vm196, %v1536, 0
    %v1553 = vsel %vm196, %v1537, 0
    %1555 = vmatprep.subr.mxu0 0.0
    %1556 = vmatpush1.msra.mxu0 0.0
    %1557 = vmatprep.subr.mxu0 0.0
    %1558 = vmatpush1.msra.mxu0 0.0
    %1559 = vmatprep.subr.mxu0 0.0
    %1560 = vmatpush1.msra.mxu0 0.0
    %1561 = vmatprep.subr.mxu0 0.0
    %1562 = vmatpush1.msra.mxu0 0.0
    %1563 = vmatprep.subr.mxu0 0.0
    %1564 = vmatpush1.msra.mxu0 0.0
    %1565 = vmatprep.subr.mxu0 0.0
    %1566 = vmatpush1.msra.mxu0 0.0
    %1567 = vmatprep.subr.mxu0 0.0
    %1568 = vmatpush1.msra.mxu0 0.0
    %1569 = vmatprep.subr.mxu0 0.0
    %1570 = vmatpush1.msra.mxu0 0.0
    %1571 = vmatprep.subr.mxu0 0.0
    %1572 = vmatpush1.msra.mxu0 0.0
    %1573 = vmatprep.subr.mxu0 0.0
    %1574 = vmatpush1.msra.mxu0 0.0
    %1575 = vmatprep.subr.mxu0 0.0
    %1576 = vmatpush1.msra.mxu0 0.0
    %1577 = vmatprep.subr.mxu0 0.0
    %1578 = vmatpush1.msra.mxu0 0.0
    %1579 = vmatprep.subr.mxu0 0.0
    %1580 = vmatpush1.msra.mxu0 %v1541
    %1581 = vmatprep.subr.mxu0 0.0
    %1582 = vmatpush1.msra.mxu0 %v1540
    %1583 = vmatprep.subr.mxu0 0.0
    %1584 = vmatpush1.msra.mxu0 %v1539
    %1585 = vmatprep.subr.mxu0 0.0
    %1586 = vmatpush1.msra.mxu0 %v1538
    %1587 = vmatprep.subr.mxu0 0.0
    %1588 = vmatpush2.msra.mxu0 0.0
    %1589 = vmatprep.subr.mxu0 0.0
    %1590 = vmatpush2.msra.mxu0 0.0
    %1591 = vmatprep.subr.mxu0 0.0
    %1592 = vmatpush2.msra.mxu0 0.0
    %1593 = vmatprep.subr.mxu0 0.0
    %1594 = vmatpush2.msra.mxu0 0.0
    %1595 = vmatprep.subr.mxu0 0.0
    %1596 = vmatpush2.msra.mxu0 0.0
    %1597 = vmatprep.subr.mxu0 0.0
    %1598 = vmatpush2.msra.mxu0 0.0
    %1599 = vmatprep.subr.mxu0 0.0
    %1600 = vmatpush2.msra.mxu0 0.0
    %1601 = vmatprep.subr.mxu0 0.0
    %1602 = vmatpush2.msra.mxu0 0.0
    %1603 = vmatprep.subr.mxu0 0.0
    %1604 = vmatpush2.msra.mxu0 0.0
    %1605 = vmatprep.subr.mxu0 0.0
    %1606 = vmatpush2.msra.mxu0 0.0
    %1607 = vmatprep.subr.mxu0 0.0
    %1608 = vmatpush2.msra.mxu0 0.0
    %1609 = vmatprep.subr.mxu0 0.0
    %1610 = vmatpush2.msra.mxu0 0.0
    %1611 = vmatprep.subr.mxu0 0.0
    %1612 = vmatpush2.msra.mxu0 0.0
    %1613 = vmatprep.subr.mxu0 0.0
    %1614 = vmatpush2.msra.mxu0 0.0
    %1615 = vmatprep.subr.mxu0 0.0
    %1616 = vmatpush2.msra.mxu0 0.0
    %1617 = vmatprep.subr.mxu0 0.0
    %1618 = vmatpush2.msra.mxu0 0.0
    %1619 = vmatprep.mubr.f32.mxu0 0.0
    %1620 = vmatmul.mubr.f32.gmra.mxu0 %v1550
    %v1621 = vpop.f32.mrf.mxu0
    %v1622 = vadd.f32 %v1547, %v1621
    %v1623 = vpop.f32.mrf.mxu0
    %1624 = vmatprep.mubr.f32.mxu0 0.0
    %1625 = vmatmul.mubr.f32.gmra.mxu0 %v1553
    %v1626 = vpop.f32.mrf.mxu0
    %v1627 = vadd.f32 %v1547, %v1626
    %v1628 = vpop.f32.mrf.mxu0
    %1629 = vdwg.mxu0
    %v1630 = vld [vmem:[%s55] sm:$0xff]
    %v1631 = vld [vmem:[%s55 + $0x8] sm:$0xff]
    %v1632 = vld [vmem:[%s55 + $0x10] sm:$0xff]
    %v1633 = vld [vmem:[%s55 + $0x18] sm:$0xff]
    %v1634 = vld [vmem:[%s57] sm:$0x1]
    %v1636 = vlaneseq
    %v1637 = vshrl.u32 %v1636, 7
    %v1638 = vsub.s32 0, %v1637
    %v1639 = vrot.slane %v1634, %v1638
    %v1642 = vsel %vm196, %v185, 0
    %v1645 = vsel %vm196, %v186, 0
    %1647 = vmatprep.subr.mxu0 0.0
    %1648 = vmatpush1.msra.mxu0 0.0
    %1649 = vmatprep.subr.mxu0 0.0
    %1650 = vmatpush1.msra.mxu0 0.0
    %1651 = vmatprep.subr.mxu0 0.0
    %1652 = vmatpush1.msra.mxu0 0.0
    %1653 = vmatprep.subr.mxu0 0.0
    %1654 = vmatpush1.msra.mxu0 0.0
    %1655 = vmatprep.subr.mxu0 0.0
    %1656 = vmatpush1.msra.mxu0 0.0
    %1657 = vmatprep.subr.mxu0 0.0
    %1658 = vmatpush1.msra.mxu0 0.0
    %1659 = vmatprep.subr.mxu0 0.0
    %1660 = vmatpush1.msra.mxu0 0.0
    %1661 = vmatprep.subr.mxu0 0.0
    %1662 = vmatpush1.msra.mxu0 0.0
    %1663 = vmatprep.subr.mxu0 0.0
    %1664 = vmatpush1.msra.mxu0 0.0
    %1665 = vmatprep.subr.mxu0 0.0
    %1666 = vmatpush1.msra.mxu0 0.0
    %1667 = vmatprep.subr.mxu0 0.0
    %1668 = vmatpush1.msra.mxu0 0.0
    %1669 = vmatprep.subr.mxu0 0.0
    %1670 = vmatpush1.msra.mxu0 0.0
    %1671 = vmatprep.subr.mxu0 0.0
    %1672 = vmatpush1.msra.mxu0 %v1633
    %1673 = vmatprep.subr.mxu0 0.0
    %1674 = vmatpush1.msra.mxu0 %v1632
    %1675 = vmatprep.subr.mxu0 0.0
    %1676 = vmatpush1.msra.mxu0 %v1631
    %1677 = vmatprep.subr.mxu0 0.0
    %1678 = vmatpush1.msra.mxu0 %v1630
    %1679 = vmatprep.subr.mxu0 0.0
    %1680 = vmatpush2.msra.mxu0 0.0
    %1681 = vmatprep.subr.mxu0 0.0
    %1682 = vmatpush2.msra.mxu0 0.0
    %1683 = vmatprep.subr.mxu0 0.0
    %1684 = vmatpush2.msra.mxu0 0.0
    %1685 = vmatprep.subr.mxu0 0.0
    %1686 = vmatpush2.msra.mxu0 0.0
    %1687 = vmatprep.subr.mxu0 0.0
    %1688 = vmatpush2.msra.mxu0 0.0
    %1689 = vmatprep.subr.mxu0 0.0
    %1690 = vmatpush2.msra.mxu0 0.0
    %1691 = vmatprep.subr.mxu0 0.0
    %1692 = vmatpush2.msra.mxu0 0.0
    %1693 = vmatprep.subr.mxu0 0.0
    %1694 = vmatpush2.msra.mxu0 0.0
    %1695 = vmatprep.subr.mxu0 0.0
    %1696 = vmatpush2.msra.mxu0 0.0
    %1697 = vmatprep.subr.mxu0 0.0
    %1698 = vmatpush2.msra.mxu0 0.0
    %1699 = vmatprep.subr.mxu0 0.0
    %1700 = vmatpush2.msra.mxu0 0.0
    %1701 = vmatprep.subr.mxu0 0.0
    %1702 = vmatpush2.msra.mxu0 0.0
    %1703 = vmatprep.subr.mxu0 0.0
    %1704 = vmatpush2.msra.mxu0 0.0
    %1705 = vmatprep.subr.mxu0 0.0
    %1706 = vmatpush2.msra.mxu0 0.0
    %1707 = vmatprep.subr.mxu0 0.0
    %1708 = vmatpush2.msra.mxu0 0.0
    %1709 = vmatprep.subr.mxu0 0.0
    %1710 = vmatpush2.msra.mxu0 0.0
    %1711 = vmatprep.mubr.f32.mxu0 0.0
    %1712 = vmatmul.mubr.f32.gmra.mxu0 %v1642
    %v1713 = vpop.f32.mrf.mxu0
    %v1714 = vadd.f32 %v1639, %v1713
    %v1715 = vpop.f32.mrf.mxu0
    %1716 = vmatprep.mubr.f32.mxu0 0.0
    %1717 = vmatmul.mubr.f32.gmra.mxu0 %v1645
    %v1718 = vpop.f32.mrf.mxu0
    %v1719 = vadd.f32 %v1639, %v1718
    %v1720 = vpop.f32.mrf.mxu0
    %1721 = vdwg.mxu0
    %v1722 = vld [vmem:[%s59] sm:$0xff]
    %v1723 = vld [vmem:[%s59 + $0x8] sm:$0xff]
    %v1724 = vld [vmem:[%s59 + $0x10] sm:$0xff]
    %v1725 = vld [vmem:[%s59 + $0x18] sm:$0xff]
    %v1726 = vld [vmem:[%s61] sm:$0x1]
    %v1728 = vlaneseq
    %v1729 = vshrl.u32 %v1728, 7
    %v1730 = vsub.s32 0, %v1729
    %v1731 = vrot.slane %v1726, %v1730
    %1733 = vmatprep.subr.mxu0 0.0
    %1734 = vmatpush1.msra.mxu0 0.0
    %1735 = vmatprep.subr.mxu0 0.0
    %1736 = vmatpush1.msra.mxu0 0.0
    %1737 = vmatprep.subr.mxu0 0.0
    %1738 = vmatpush1.msra.mxu0 0.0
    %1739 = vmatprep.subr.mxu0 0.0
    %1740 = vmatpush1.msra.mxu0 0.0
    %1741 = vmatprep.subr.mxu0 0.0
    %1742 = vmatpush1.msra.mxu0 0.0
    %1743 = vmatprep.subr.mxu0 0.0
    %1744 = vmatpush1.msra.mxu0 0.0
    %1745 = vmatprep.subr.mxu0 0.0
    %1746 = vmatpush1.msra.mxu0 0.0
    %1747 = vmatprep.subr.mxu0 0.0
    %1748 = vmatpush1.msra.mxu0 0.0
    %1749 = vmatprep.subr.mxu0 0.0
    %1750 = vmatpush1.msra.mxu0 0.0
    %1751 = vmatprep.subr.mxu0 0.0
    %1752 = vmatpush1.msra.mxu0 0.0
    %1753 = vmatprep.subr.mxu0 0.0
    %1754 = vmatpush1.msra.mxu0 0.0
    %1755 = vmatprep.subr.mxu0 0.0
    %1756 = vmatpush1.msra.mxu0 0.0
    %1757 = vmatprep.subr.mxu0 0.0
    %1758 = vmatpush1.msra.mxu0 %v1725
    %1759 = vmatprep.subr.mxu0 0.0
    %1760 = vmatpush1.msra.mxu0 %v1724
    %1761 = vmatprep.subr.mxu0 0.0
    %1762 = vmatpush1.msra.mxu0 %v1723
    %1763 = vmatprep.subr.mxu0 0.0
    %1764 = vmatpush1.msra.mxu0 %v1722
    %1765 = vmatprep.subr.mxu0 0.0
    %1766 = vmatpush2.msra.mxu0 0.0
    %1767 = vmatprep.subr.mxu0 0.0
    %1768 = vmatpush2.msra.mxu0 0.0
    %1769 = vmatprep.subr.mxu0 0.0
    %1770 = vmatpush2.msra.mxu0 0.0
    %1771 = vmatprep.subr.mxu0 0.0
    %1772 = vmatpush2.msra.mxu0 0.0
    %1773 = vmatprep.subr.mxu0 0.0
    %1774 = vmatpush2.msra.mxu0 0.0
    %1775 = vmatprep.subr.mxu0 0.0
    %1776 = vmatpush2.msra.mxu0 0.0
    %1777 = vmatprep.subr.mxu0 0.0
    %1778 = vmatpush2.msra.mxu0 0.0
    %1779 = vmatprep.subr.mxu0 0.0
    %1780 = vmatpush2.msra.mxu0 0.0
    %1781 = vmatprep.subr.mxu0 0.0
    %1782 = vmatpush2.msra.mxu0 0.0
    %1783 = vmatprep.subr.mxu0 0.0
    %1784 = vmatpush2.msra.mxu0 0.0
    %1785 = vmatprep.subr.mxu0 0.0
    %1786 = vmatpush2.msra.mxu0 0.0
    %1787 = vmatprep.subr.mxu0 0.0
    %1788 = vmatpush2.msra.mxu0 0.0
    %1789 = vmatprep.subr.mxu0 0.0
    %1790 = vmatpush2.msra.mxu0 0.0
    %1791 = vmatprep.subr.mxu0 0.0
    %1792 = vmatpush2.msra.mxu0 0.0
    %1793 = vmatprep.subr.mxu0 0.0
    %1794 = vmatpush2.msra.mxu0 0.0
    %1795 = vmatprep.subr.mxu0 0.0
    %1796 = vmatpush2.msra.mxu0 0.0
    %1797 = vmatprep.mubr.f32.mxu0 0.0
    %1798 = vmatmul.mubr.f32.gmra.mxu0 %v1642
    %v1799 = vpop.f32.mrf.mxu0
    %v1800 = vadd.f32 %v1731, %v1799
    %v1801 = vpop.f32.mrf.mxu0
    %1802 = vmatprep.mubr.f32.mxu0 0.0
    %1803 = vmatmul.mubr.f32.gmra.mxu0 %v1645
    %v1804 = vpop.f32.mrf.mxu0
    %v1805 = vadd.f32 %v1731, %v1804
    %v1806 = vpop.f32.mrf.mxu0
    %1807 = vdwg.mxu0
    %v1808 = vld [vmem:[%s67] sm:$0xff]
    %v1809 = vld [vmem:[%s67 + $0x8] sm:$0xff]
    %v1810 = vld [vmem:[%s67 + $0x10] sm:$0xff]
    %v1811 = vld [vmem:[%s67 + $0x18] sm:$0xff]
    %v1812 = vld [vmem:[%s69] sm:$0x1]
    %v1814 = vlaneseq
    %v1815 = vshrl.u32 %v1814, 7
    %v1816 = vsub.s32 0, %v1815
    %v1817 = vrot.slane %v1812, %v1816
    %1819 = vmatprep.subr.mxu0 0.0
    %1820 = vmatpush1.msra.mxu0 0.0
    %1821 = vmatprep.subr.mxu0 0.0
    %1822 = vmatpush1.msra.mxu0 0.0
    %1823 = vmatprep.subr.mxu0 0.0
    %1824 = vmatpush1.msra.mxu0 0.0
    %1825 = vmatprep.subr.mxu0 0.0
    %1826 = vmatpush1.msra.mxu0 0.0
    %1827 = vmatprep.subr.mxu0 0.0
    %1828 = vmatpush1.msra.mxu0 0.0
    %1829 = vmatprep.subr.mxu0 0.0
    %1830 = vmatpush1.msra.mxu0 0.0
    %1831 = vmatprep.subr.mxu0 0.0
    %1832 = vmatpush1.msra.mxu0 0.0
    %1833 = vmatprep.subr.mxu0 0.0
    %1834 = vmatpush1.msra.mxu0 0.0
    %1835 = vmatprep.subr.mxu0 0.0
    %1836 = vmatpush1.msra.mxu0 0.0
    %1837 = vmatprep.subr.mxu0 0.0
    %1838 = vmatpush1.msra.mxu0 0.0
    %1839 = vmatprep.subr.mxu0 0.0
    %1840 = vmatpush1.msra.mxu0 0.0
    %1841 = vmatprep.subr.mxu0 0.0
    %1842 = vmatpush1.msra.mxu0 0.0
    %1843 = vmatprep.subr.mxu0 0.0
    %1844 = vmatpush1.msra.mxu0 %v1811
    %1845 = vmatprep.subr.mxu0 0.0
    %1846 = vmatpush1.msra.mxu0 %v1810
    %1847 = vmatprep.subr.mxu0 0.0
    %1848 = vmatpush1.msra.mxu0 %v1809
    %1849 = vmatprep.subr.mxu0 0.0
    %1850 = vmatpush1.msra.mxu0 %v1808
    %1851 = vmatprep.subr.mxu0 0.0
    %1852 = vmatpush2.msra.mxu0 0.0
    %1853 = vmatprep.subr.mxu0 0.0
    %1854 = vmatpush2.msra.mxu0 0.0
    %1855 = vmatprep.subr.mxu0 0.0
    %1856 = vmatpush2.msra.mxu0 0.0
    %1857 = vmatprep.subr.mxu0 0.0
    %1858 = vmatpush2.msra.mxu0 0.0
    %1859 = vmatprep.subr.mxu0 0.0
    %1860 = vmatpush2.msra.mxu0 0.0
    %1861 = vmatprep.subr.mxu0 0.0
    %1862 = vmatpush2.msra.mxu0 0.0
    %1863 = vmatprep.subr.mxu0 0.0
    %1864 = vmatpush2.msra.mxu0 0.0
    %1865 = vmatprep.subr.mxu0 0.0
    %1866 = vmatpush2.msra.mxu0 0.0
    %1867 = vmatprep.subr.mxu0 0.0
    %1868 = vmatpush2.msra.mxu0 0.0
    %1869 = vmatprep.subr.mxu0 0.0
    %1870 = vmatpush2.msra.mxu0 0.0
    %1871 = vmatprep.subr.mxu0 0.0
    %1872 = vmatpush2.msra.mxu0 0.0
    %1873 = vmatprep.subr.mxu0 0.0
    %1874 = vmatpush2.msra.mxu0 0.0
    %1875 = vmatprep.subr.mxu0 0.0
    %1876 = vmatpush2.msra.mxu0 0.0
    %1877 = vmatprep.subr.mxu0 0.0
    %1878 = vmatpush2.msra.mxu0 0.0
    %1879 = vmatprep.subr.mxu0 0.0
    %1880 = vmatpush2.msra.mxu0 0.0
    %1881 = vmatprep.subr.mxu0 0.0
    %1882 = vmatpush2.msra.mxu0 0.0
    %1883 = vmatprep.mubr.f32.mxu0 0.0
    %1884 = vmatmul.mubr.f32.gmra.mxu0 %v1550
    %v1885 = vpop.f32.mrf.mxu0
    %v1886 = vadd.f32 %v1817, %v1885
    %v1887 = vpop.f32.mrf.mxu0
    %1888 = vmatprep.mubr.f32.mxu0 0.0
    %1889 = vmatmul.mubr.f32.gmra.mxu0 %v1553
    %v1890 = vpop.f32.mrf.mxu0
    %v1891 = vadd.f32 %v1817, %v1890
    %v1892 = vpop.f32.mrf.mxu0
    %1893 = vdwg.mxu0
    %v1894 = vld [vmem:[%s71] sm:$0xff]
    %v1895 = vld [vmem:[%s71 + $0x8] sm:$0xff]
    %v1896 = vld [vmem:[%s71 + $0x10] sm:$0xff]
    %v1897 = vld [vmem:[%s71 + $0x18] sm:$0xff]
    %v1898 = vld [vmem:[%s73] sm:$0x1]
    %v1900 = vlaneseq
    %v1901 = vshrl.u32 %v1900, 7
    %v1902 = vsub.s32 0, %v1901
    %v1903 = vrot.slane %v1898, %v1902
    %1905 = vmatprep.subr.mxu0 0.0
    %1906 = vmatpush1.msra.mxu0 0.0
    %1907 = vmatprep.subr.mxu0 0.0
    %1908 = vmatpush1.msra.mxu0 0.0
    %1909 = vmatprep.subr.mxu0 0.0
    %1910 = vmatpush1.msra.mxu0 0.0
    %1911 = vmatprep.subr.mxu0 0.0
    %1912 = vmatpush1.msra.mxu0 0.0
    %1913 = vmatprep.subr.mxu0 0.0
    %1914 = vmatpush1.msra.mxu0 0.0
    %1915 = vmatprep.subr.mxu0 0.0
    %1916 = vmatpush1.msra.mxu0 0.0
    %1917 = vmatprep.subr.mxu0 0.0
    %1918 = vmatpush1.msra.mxu0 0.0
    %1919 = vmatprep.subr.mxu0 0.0
    %1920 = vmatpush1.msra.mxu0 0.0
    %1921 = vmatprep.subr.mxu0 0.0
    %1922 = vmatpush1.msra.mxu0 0.0
    %1923 = vmatprep.subr.mxu0 0.0
    %1924 = vmatpush1.msra.mxu0 0.0
    %1925 = vmatprep.subr.mxu0 0.0
    %1926 = vmatpush1.msra.mxu0 0.0
    %1927 = vmatprep.subr.mxu0 0.0
    %1928 = vmatpush1.msra.mxu0 0.0
    %1929 = vmatprep.subr.mxu0 0.0
    %1930 = vmatpush1.msra.mxu0 %v1897
    %1931 = vmatprep.subr.mxu0 0.0
    %1932 = vmatpush1.msra.mxu0 %v1896
    %1933 = vmatprep.subr.mxu0 0.0
    %1934 = vmatpush1.msra.mxu0 %v1895
    %1935 = vmatprep.subr.mxu0 0.0
    %1936 = vmatpush1.msra.mxu0 %v1894
    %1937 = vmatprep.subr.mxu0 0.0
    %1938 = vmatpush2.msra.mxu0 0.0
    %1939 = vmatprep.subr.mxu0 0.0
    %1940 = vmatpush2.msra.mxu0 0.0
    %1941 = vmatprep.subr.mxu0 0.0
    %1942 = vmatpush2.msra.mxu0 0.0
    %1943 = vmatprep.subr.mxu0 0.0
    %1944 = vmatpush2.msra.mxu0 0.0
    %1945 = vmatprep.subr.mxu0 0.0
    %1946 = vmatpush2.msra.mxu0 0.0
    %1947 = vmatprep.subr.mxu0 0.0
    %1948 = vmatpush2.msra.mxu0 0.0
    %1949 = vmatprep.subr.mxu0 0.0
    %1950 = vmatpush2.msra.mxu0 0.0
    %1951 = vmatprep.subr.mxu0 0.0
    %1952 = vmatpush2.msra.mxu0 0.0
    %1953 = vmatprep.subr.mxu0 0.0
    %1954 = vmatpush2.msra.mxu0 0.0
    %1955 = vmatprep.subr.mxu0 0.0
    %1956 = vmatpush2.msra.mxu0 0.0
    %1957 = vmatprep.subr.mxu0 0.0
    %1958 = vmatpush2.msra.mxu0 0.0
    %1959 = vmatprep.subr.mxu0 0.0
    %1960 = vmatpush2.msra.mxu0 0.0
    %1961 = vmatprep.subr.mxu0 0.0
    %1962 = vmatpush2.msra.mxu0 0.0
    %1963 = vmatprep.subr.mxu0 0.0
    %1964 = vmatpush2.msra.mxu0 0.0
    %1965 = vmatprep.subr.mxu0 0.0
    %1966 = vmatpush2.msra.mxu0 0.0
    %1967 = vmatprep.subr.mxu0 0.0
    %1968 = vmatpush2.msra.mxu0 0.0
    %1969 = vmatprep.mubr.f32.mxu0 0.0
    %1970 = vmatmul.mubr.f32.gmra.mxu0 %v1550
    %v1971 = vpop.f32.mrf.mxu0
    %v1972 = vadd.f32 %v1903, %v1971
    %v1973 = vpop.f32.mrf.mxu0
    %1974 = vmatprep.mubr.f32.mxu0 0.0
    %1975 = vmatmul.mubr.f32.gmra.mxu0 %v1553
    %v1976 = vpop.f32.mrf.mxu0
    %v1977 = vadd.f32 %v1903, %v1976
    %v1978 = vpop.f32.mrf.mxu0
    %1979 = vdwg.mxu0
    %v1980 = vxor.u32 %v1886, 2147483648
    %v1981 = vxor.u32 %v1891, 2147483648
    %v1982 = vmul.f32 %v1980, 1.442695
    %v1983 = vpow.pop %v1982
    %v1984 = vmul.f32 %v1981, 1.442695
    %v1985 = vpow.pop %v1984
    %v1986 = vadd.f32 %v1983, 1.0
    %v1987 = vadd.f32 %v1985, 1.0
    %v1988 = vrcp.pop %v1986
    %v1989 = vmul.f32 1.0, %v1988
    %v1990 = vrcp.pop %v1987
    %v1991 = vmul.f32 1.0, %v1990
    %v1992 = vmul.f32 %v1886, %v1989
    %v1993 = vmul.f32 %v1891, %v1991
    %v1994 = vmul.f32 %v1992, %v1972
    %v1995 = vmul.f32 %v1993, %v1977
    %v1996 = vld [vmem:[%s75] sm:$0xff]
    %v1997 = vld [vmem:[%s75 + $0x8] sm:$0xff]
    %v1998 = vld [vmem:[%s75 + $0x10] sm:$0xff]
    %v1999 = vld [vmem:[%s75 + $0x18] sm:$0xff]
    %v2000 = vld [vmem:[%s75 + $0x20] sm:$0xff]
    %v2001 = vld [vmem:[%s75 + $0x28] sm:$0xff]
    %v2002 = vld [vmem:[%s75 + $0x30] sm:$0xff]
    %v2003 = vld [vmem:[%s75 + $0x38] sm:$0xff]
    %v2004 = vld [vmem:[%s75 + $0x40] sm:$0xff]
    %v2005 = vld [vmem:[%s75 + $0x48] sm:$0xff]
    %v2006 = vld [vmem:[%s75 + $0x50] sm:$0xff]
    %v2007 = vld [vmem:[%s75 + $0x58] sm:$0xff]
    %v2008 = vld [vmem:[%s75 + $0x60] sm:$0xff]
    %v2009 = vld [vmem:[%s75 + $0x68] sm:$0xff]
    %v2010 = vld [vmem:[%s75 + $0x70] sm:$0xff]
    %v2011 = vld [vmem:[%s75 + $0x78] sm:$0xff]
    %v2012 = vld [vmem:[%s77] sm:$0x1]
    %v2014 = vlaneseq
    %v2015 = vshrl.u32 %v2014, 7
    %v2016 = vsub.s32 0, %v2015
    %v2017 = vrot.slane %v2012, %v2016
    %2019 = vmatprep.subr.mxu0 0.0
    %2020 = vmatpush1.msra.mxu0 %v2011
    %2021 = vmatprep.subr.mxu0 0.0
    %2022 = vmatpush1.msra.mxu0 %v2010
    %2023 = vmatprep.subr.mxu0 0.0
    %2024 = vmatpush1.msra.mxu0 %v2009
    %2025 = vmatprep.subr.mxu0 0.0
    %2026 = vmatpush1.msra.mxu0 %v2008
    %2027 = vmatprep.subr.mxu0 0.0
    %2028 = vmatpush1.msra.mxu0 %v2007
    %2029 = vmatprep.subr.mxu0 0.0
    %2030 = vmatpush1.msra.mxu0 %v2006
    %2031 = vmatprep.subr.mxu0 0.0
    %2032 = vmatpush1.msra.mxu0 %v2005
    %2033 = vmatprep.subr.mxu0 0.0
    %2034 = vmatpush1.msra.mxu0 %v2004
    %2035 = vmatprep.subr.mxu0 0.0
    %2036 = vmatpush1.msra.mxu0 %v2003
    %2037 = vmatprep.subr.mxu0 0.0
    %2038 = vmatpush1.msra.mxu0 %v2002
    %2039 = vmatprep.subr.mxu0 0.0
    %2040 = vmatpush1.msra.mxu0 %v2001
    %2041 = vmatprep.subr.mxu0 0.0
    %2042 = vmatpush1.msra.mxu0 %v2000
    %2043 = vmatprep.subr.mxu0 0.0
    %2044 = vmatpush1.msra.mxu0 %v1999
    %2045 = vmatprep.subr.mxu0 0.0
    %2046 = vmatpush1.msra.mxu0 %v1998
    %2047 = vmatprep.subr.mxu0 0.0
    %2048 = vmatpush1.msra.mxu0 %v1997
    %2049 = vmatprep.subr.mxu0 0.0
    %2050 = vmatpush1.msra.mxu0 %v1996
    %2051 = vmatprep.subr.mxu0 0.0
    %2052 = vmatpush2.msra.mxu0 0.0
    %2053 = vmatprep.subr.mxu0 0.0
    %2054 = vmatpush2.msra.mxu0 0.0
    %2055 = vmatprep.subr.mxu0 0.0
    %2056 = vmatpush2.msra.mxu0 0.0
    %2057 = vmatprep.subr.mxu0 0.0
    %2058 = vmatpush2.msra.mxu0 0.0
    %2059 = vmatprep.subr.mxu0 0.0
    %2060 = vmatpush2.msra.mxu0 0.0
    %2061 = vmatprep.subr.mxu0 0.0
    %2062 = vmatpush2.msra.mxu0 0.0
    %2063 = vmatprep.subr.mxu0 0.0
    %2064 = vmatpush2.msra.mxu0 0.0
    %2065 = vmatprep.subr.mxu0 0.0
    %2066 = vmatpush2.msra.mxu0 0.0
    %2067 = vmatprep.subr.mxu0 0.0
    %2068 = vmatpush2.msra.mxu0 0.0
    %2069 = vmatprep.subr.mxu0 0.0
    %2070 = vmatpush2.msra.mxu0 0.0
    %2071 = vmatprep.subr.mxu0 0.0
    %2072 = vmatpush2.msra.mxu0 0.0
    %2073 = vmatprep.subr.mxu0 0.0
    %2074 = vmatpush2.msra.mxu0 0.0
    %2075 = vmatprep.subr.mxu0 0.0
    %2076 = vmatpush2.msra.mxu0 0.0
    %2077 = vmatprep.subr.mxu0 0.0
    %2078 = vmatpush2.msra.mxu0 0.0
    %2079 = vmatprep.subr.mxu0 0.0
    %2080 = vmatpush2.msra.mxu0 0.0
    %2081 = vmatprep.subr.mxu0 0.0
    %2082 = vmatpush2.msra.mxu0 0.0
    %2083 = vmatprep.mubr.f32.mxu0 0.0
    %2084 = vmatmul.mubr.f32.gmra.mxu0 %v1994
    %v2085 = vpop.f32.mrf.mxu0
    %v2086 = vadd.f32 %v2017, %v2085
    %v2087 = vpop.f32.mrf.mxu0
    %2088 = vmatprep.mubr.f32.mxu0 0.0
    %2089 = vmatmul.mubr.f32.gmra.mxu0 %v1995
    %v2090 = vpop.f32.mrf.mxu0
    %v2091 = vadd.f32 %v2017, %v2090
    %v2092 = vpop.f32.mrf.mxu0
    %2093 = vdwg.mxu0
    %v2094 = vsel %vm792, %v2086, -inf
    %2095 = vmax.xlane.f32.xlu0 %v2094
    %v2096 = vpop.xlane.xlu0 %2095
    %v2097 = vsel %vm792, %v2091, -inf
    %2098 = vmax.xlane.f32.xlu0 %v2097
    %v2099 = vpop.xlane.xlu0 %2098
    %v2100 = vsub.f32 %v2086, %v2096
    %v2101 = vsub.f32 %v2091, %v2099
    %v2102 = vmul.f32 %v2100, 1.442695
    %v2103 = vpow.pop %v2102
    %v2104 = vmul.f32 %v2101, 1.442695
    %v2105 = vpow.pop %v2104
    %v2107 = vsel %vm792, %v2103, 0
    %v2110 = vsel %vm792, %v2105, 0
    %2112 = vmatprep.subr.mxu0 0.0
    %2113 = vmatpush1.msra.mxu0 0.0
    %2114 = vmatprep.subr.mxu0 0.0
    %2115 = vmatpush1.msra.mxu0 0.0
    %2116 = vmatprep.subr.mxu0 0.0
    %2117 = vmatpush1.msra.mxu0 0.0
    %2118 = vmatprep.subr.mxu0 0.0
    %2119 = vmatpush1.msra.mxu0 0.0
    %2120 = vmatprep.subr.mxu0 0.0
    %2121 = vmatpush1.msra.mxu0 0.0
    %2122 = vmatprep.subr.mxu0 0.0
    %2123 = vmatpush1.msra.mxu0 0.0
    %2124 = vmatprep.subr.mxu0 0.0
    %2125 = vmatpush1.msra.mxu0 0.0
    %2126 = vmatprep.subr.mxu0 0.0
    %2127 = vmatpush1.msra.mxu0 0.0
    %2128 = vmatprep.subr.mxu0 0.0
    %2129 = vmatpush1.msra.mxu0 0.0
    %2130 = vmatprep.subr.mxu0 0.0
    %2131 = vmatpush1.msra.mxu0 0.0
    %2132 = vmatprep.subr.mxu0 0.0
    %2133 = vmatpush1.msra.mxu0 0.0
    %2134 = vmatprep.subr.mxu0 0.0
    %2135 = vmatpush1.msra.mxu0 0.0
    %2136 = vmatprep.subr.mxu0 0.0
    %2137 = vmatpush1.msra.mxu0 0.0
    %2138 = vmatprep.subr.mxu0 0.0
    %2139 = vmatpush1.msra.mxu0 0.0
    %2140 = vmatprep.subr.mxu0 0.0
    %2141 = vmatpush1.msra.mxu0 0.0
    %2142 = vmatprep.subr.mxu0 0.0
    %2143 = vmatpush1.msra.mxu0 %v195
    %2144 = vmatprep.subr.mxu0 0.0
    %2145 = vmatpush2.msra.mxu0 0.0
    %2146 = vmatprep.subr.mxu0 0.0
    %2147 = vmatpush2.msra.mxu0 0.0
    %2148 = vmatprep.subr.mxu0 0.0
    %2149 = vmatpush2.msra.mxu0 0.0
    %2150 = vmatprep.subr.mxu0 0.0
    %2151 = vmatpush2.msra.mxu0 0.0
    %2152 = vmatprep.subr.mxu0 0.0
    %2153 = vmatpush2.msra.mxu0 0.0
    %2154 = vmatprep.subr.mxu0 0.0
    %2155 = vmatpush2.msra.mxu0 0.0
    %2156 = vmatprep.subr.mxu0 0.0
    %2157 = vmatpush2.msra.mxu0 0.0
    %2158 = vmatprep.subr.mxu0 0.0
    %2159 = vmatpush2.msra.mxu0 0.0
    %2160 = vmatprep.subr.mxu0 0.0
    %2161 = vmatpush2.msra.mxu0 0.0
    %2162 = vmatprep.subr.mxu0 0.0
    %2163 = vmatpush2.msra.mxu0 0.0
    %2164 = vmatprep.subr.mxu0 0.0
    %2165 = vmatpush2.msra.mxu0 0.0
    %2166 = vmatprep.subr.mxu0 0.0
    %2167 = vmatpush2.msra.mxu0 0.0
    %2168 = vmatprep.subr.mxu0 0.0
    %2169 = vmatpush2.msra.mxu0 0.0
    %2170 = vmatprep.subr.mxu0 0.0
    %2171 = vmatpush2.msra.mxu0 0.0
    %2172 = vmatprep.subr.mxu0 0.0
    %2173 = vmatpush2.msra.mxu0 0.0
    %2174 = vmatprep.subr.mxu0 0.0
    %2175 = vmatpush2.msra.mxu0 0.0
    %2176 = vmatprep.mubr.f32.mxu0 0.0
    %2177 = vmatmul.mubr.f32.gmra.mxu0 %v2107
    %v2178 = vpop.f32.mrf.mxu0
    %v2179 = vadd.f32 0.0, %v2178
    %v2180 = vpop.f32.mrf.mxu0
    %2181 = vmatprep.mubr.f32.mxu0 0.0
    %2182 = vmatmul.mubr.f32.gmra.mxu0 %v2110
    %v2183 = vpop.f32.mrf.mxu0
    %v2184 = vadd.f32 0.0, %v2183
    %v2185 = vpop.f32.mrf.mxu0
    %2186 = vdwg.mxu0
    %v2187 = vrcp.pop %v2179
    %v2188 = vmul.f32 %v2103, %v2187
    %v2189 = vrcp.pop %v2184
    %v2190 = vmul.f32 %v2105, %v2189
    %v2191 = vsub.f32 0.0, %v2188
    %v2192 = vsub.f32 0.0, %v2190
    %v2193 = vadd.f32 %v2188, 1e-09
    %v2194 = vadd.f32 %v2190, 1e-09
    %v2195 = vlog2.pop %v2193
    %v2196 = vmul.f32 %v2195, 0.6931472
    %v2197 = vlog2.pop %v2194
    %v2198 = vmul.f32 %v2197, 0.6931472
    %v2199 = vmul.f32 %v2191, %v2196
    %v2200 = vmul.f32 %v2192, %v2198
    %v2201 = vsel %vm792, %v2199, 0.0
    %2202 = vadd.xlane.f32.xlu0 %v2201
    %v2203 = vpop.xlane.xlu0 %2202
    %v2204 = vsel %vm792, %v2200, 0.0
    %2205 = vadd.xlane.f32.xlu0 %v2204
    %v2206 = vpop.xlane.xlu0 %2205
    %v2207 = vmul.f32 %v1714, %v187
    %v2208 = vmul.f32 %v1714, %v188
    %v2209 = vmul.f32 %v1714, %v189
    %v2210 = vmul.f32 %v1714, %v190
    %v2211 = vmul.f32 %v1800, %v187
    %v2212 = vmul.f32 %v1800, %v188
    %v2213 = vmul.f32 %v1800, %v189
    %v2214 = vmul.f32 %v1800, %v190
    %v2216 = vsel %vm196, %v1622, 0
    %v2219 = vsel %vm196, %v2207, 0
    %v2222 = vsel %vm196, %v2208, 0
    %v2225 = vsel %vm196, %v2209, 0
    %v2228 = vsel %vm196, %v2210, 0
    %2230 = vmatprep.subr.mxu0 0.0
    %2231 = vmatpush1.xpose.msra.mxu0 0.0
    %2232 = vmatprep.subr.mxu0 0.0
    %2233 = vmatpush1.xpose.msra.mxu0 0.0
    %2234 = vmatprep.subr.mxu0 0.0
    %2235 = vmatpush1.xpose.msra.mxu0 0.0
    %2236 = vmatprep.subr.mxu0 0.0
    %2237 = vmatpush1.xpose.msra.mxu0 0.0
    %2238 = vmatprep.subr.mxu0 0.0
    %2239 = vmatpush1.xpose.msra.mxu0 0.0
    %2240 = vmatprep.subr.mxu0 0.0
    %2241 = vmatpush1.xpose.msra.mxu0 0.0
    %2242 = vmatprep.subr.mxu0 0.0
    %2243 = vmatpush1.xpose.msra.mxu0 0.0
    %2244 = vmatprep.subr.mxu0 0.0
    %2245 = vmatpush1.xpose.msra.mxu0 0.0
    %2246 = vmatprep.subr.mxu0 0.0
    %2247 = vmatpush1.xpose.msra.mxu0 0.0
    %2248 = vmatprep.subr.mxu0 0.0
    %2249 = vmatpush1.xpose.msra.mxu0 0.0
    %2250 = vmatprep.subr.mxu0 0.0
    %2251 = vmatpush1.xpose.msra.mxu0 0.0
    %2252 = vmatprep.subr.mxu0 0.0
    %2253 = vmatpush1.xpose.msra.mxu0 0.0
    %2254 = vmatprep.subr.mxu0 0.0
    %2255 = vmatpush1.xpose.msra.mxu0 %v2228
    %2256 = vmatprep.subr.mxu0 0.0
    %2257 = vmatpush1.xpose.msra.mxu0 %v2225
    %2258 = vmatprep.subr.mxu0 0.0
    %2259 = vmatpush1.xpose.msra.mxu0 %v2222
    %2260 = vmatprep.subr.mxu0 0.0
    %2261 = vmatpush1.xpose.msra.mxu0 %v2219
    %2262 = vmatprep.subr.mxu0 0.0
    %2263 = vmatpush2.xpose.msra.mxu0 0.0
    %2264 = vmatprep.subr.mxu0 0.0
    %2265 = vmatpush2.xpose.msra.mxu0 0.0
    %2266 = vmatprep.subr.mxu0 0.0
    %2267 = vmatpush2.xpose.msra.mxu0 0.0
    %2268 = vmatprep.subr.mxu0 0.0
    %2269 = vmatpush2.xpose.msra.mxu0 0.0
    %2270 = vmatprep.subr.mxu0 0.0
    %2271 = vmatpush2.xpose.msra.mxu0 0.0
    %2272 = vmatprep.subr.mxu0 0.0
    %2273 = vmatpush2.xpose.msra.mxu0 0.0
    %2274 = vmatprep.subr.mxu0 0.0
    %2275 = vmatpush2.xpose.msra.mxu0 0.0
    %2276 = vmatprep.subr.mxu0 0.0
    %2277 = vmatpush2.xpose.msra.mxu0 0.0
    %2278 = vmatprep.subr.mxu0 0.0
    %2279 = vmatpush2.xpose.msra.mxu0 0.0
    %2280 = vmatprep.subr.mxu0 0.0
    %2281 = vmatpush2.xpose.msra.mxu0 0.0
    %2282 = vmatprep.subr.mxu0 0.0
    %2283 = vmatpush2.xpose.msra.mxu0 0.0
    %2284 = vmatprep.subr.mxu0 0.0
    %2285 = vmatpush2.xpose.msra.mxu0 0.0
    %2286 = vmatprep.subr.mxu0 0.0
    %2287 = vmatpush2.xpose.msra.mxu0 0.0
    %2288 = vmatprep.subr.mxu0 0.0
    %2289 = vmatpush2.xpose.msra.mxu0 0.0
    %2290 = vmatprep.subr.mxu0 0.0
    %2291 = vmatpush2.xpose.msra.mxu0 0.0
    %2292 = vmatprep.subr.mxu0 0.0
    %2293 = vmatpush2.xpose.msra.mxu0 0.0
    %2294 = vmatprep.mubr.f32.mxu0 0.0
    %2295 = vmatmul.mubr.f32.gmra.mxu0 %v2216
    %v2296 = vpop.f32.mrf.mxu0
    %v2297 = vadd.f32 0.0, %v2296
    %v2298 = vpop.f32.mrf.mxu0
    %2299 = vdwg.mxu0
    %v2300 = vsel %vm196, %v2297, -inf
    %2301 = vmax.xlane.f32.xlu0 %v2300
    %v2302 = vpop.xlane.xlu0 %2301
    %v2303 = vsub.f32 %v2297, %v2302
    %v2304 = vmul.f32 %v2303, 1.442695
    %v2305 = vpow.pop %v2304
    %v2307 = vsel %vm196, %v2305, 0
    %2309 = vmatprep.subr.mxu0 0.0
    %2310 = vmatpush1.msra.mxu0 0.0
    %2311 = vmatprep.subr.mxu0 0.0
    %2312 = vmatpush1.msra.mxu0 0.0
    %2313 = vmatprep.subr.mxu0 0.0
    %2314 = vmatpush1.msra.mxu0 0.0
    %2315 = vmatprep.subr.mxu0 0.0
    %2316 = vmatpush1.msra.mxu0 0.0
    %2317 = vmatprep.subr.mxu0 0.0
    %2318 = vmatpush1.msra.mxu0 0.0
    %2319 = vmatprep.subr.mxu0 0.0
    %2320 = vmatpush1.msra.mxu0 0.0
    %2321 = vmatprep.subr.mxu0 0.0
    %2322 = vmatpush1.msra.mxu0 0.0
    %2323 = vmatprep.subr.mxu0 0.0
    %2324 = vmatpush1.msra.mxu0 0.0
    %2325 = vmatprep.subr.mxu0 0.0
    %2326 = vmatpush1.msra.mxu0 0.0
    %2327 = vmatprep.subr.mxu0 0.0
    %2328 = vmatpush1.msra.mxu0 0.0
    %2329 = vmatprep.subr.mxu0 0.0
    %2330 = vmatpush1.msra.mxu0 0.0
    %2331 = vmatprep.subr.mxu0 0.0
    %2332 = vmatpush1.msra.mxu0 0.0
    %2333 = vmatprep.subr.mxu0 0.0
    %2334 = vmatpush1.msra.mxu0 %v194
    %2335 = vmatprep.subr.mxu0 0.0
    %2336 = vmatpush1.msra.mxu0 %v193
    %2337 = vmatprep.subr.mxu0 0.0
    %2338 = vmatpush1.msra.mxu0 %v192
    %2339 = vmatprep.subr.mxu0 0.0
    %2340 = vmatpush1.msra.mxu0 %v191
    %2341 = vmatprep.subr.mxu0 0.0
    %2342 = vmatpush2.msra.mxu0 0.0
    %2343 = vmatprep.subr.mxu0 0.0
    %2344 = vmatpush2.msra.mxu0 0.0
    %2345 = vmatprep.subr.mxu0 0.0
    %2346 = vmatpush2.msra.mxu0 0.0
    %2347 = vmatprep.subr.mxu0 0.0
    %2348 = vmatpush2.msra.mxu0 0.0
    %2349 = vmatprep.subr.mxu0 0.0
    %2350 = vmatpush2.msra.mxu0 0.0
    %2351 = vmatprep.subr.mxu0 0.0
    %2352 = vmatpush2.msra.mxu0 0.0
    %2353 = vmatprep.subr.mxu0 0.0
    %2354 = vmatpush2.msra.mxu0 0.0
    %2355 = vmatprep.subr.mxu0 0.0
    %2356 = vmatpush2.msra.mxu0 0.0
    %2357 = vmatprep.subr.mxu0 0.0
    %2358 = vmatpush2.msra.mxu0 0.0
    %2359 = vmatprep.subr.mxu0 0.0
    %2360 = vmatpush2.msra.mxu0 0.0
    %2361 = vmatprep.subr.mxu0 0.0
    %2362 = vmatpush2.msra.mxu0 0.0
    %2363 = vmatprep.subr.mxu0 0.0
    %2364 = vmatpush2.msra.mxu0 0.0
    %2365 = vmatprep.subr.mxu0 0.0
    %2366 = vmatpush2.msra.mxu0 0.0
    %2367 = vmatprep.subr.mxu0 0.0
    %2368 = vmatpush2.msra.mxu0 0.0
    %2369 = vmatprep.subr.mxu0 0.0
    %2370 = vmatpush2.msra.mxu0 0.0
    %2371 = vmatprep.subr.mxu0 0.0
    %2372 = vmatpush2.msra.mxu0 0.0
    %2373 = vmatprep.mubr.f32.mxu0 0.0
    %2374 = vmatmul.mubr.f32.gmra.mxu0 %v2307
    %v2375 = vpop.f32.mrf.mxu0
    %v2376 = vadd.f32 0.0, %v2375
    %v2377 = vpop.f32.mrf.mxu0
    %2378 = vdwg.mxu0
    %v2379 = vrcp.pop %v2376
    %v2380 = vmul.f32 %v2305, %v2379
    %v2382 = vsel %vm196, %v2380, 0
    %2384 = vmatprep.subr.mxu0 0.0
    %2385 = vmatpush1.msra.mxu0 0.0
    %2386 = vmatprep.subr.mxu0 0.0
    %2387 = vmatpush1.msra.mxu0 0.0
    %2388 = vmatprep.subr.mxu0 0.0
    %2389 = vmatpush1.msra.mxu0 0.0
    %2390 = vmatprep.subr.mxu0 0.0
    %2391 = vmatpush1.msra.mxu0 0.0
    %2392 = vmatprep.subr.mxu0 0.0
    %2393 = vmatpush1.msra.mxu0 0.0
    %2394 = vmatprep.subr.mxu0 0.0
    %2395 = vmatpush1.msra.mxu0 0.0
    %2396 = vmatprep.subr.mxu0 0.0
    %2397 = vmatpush1.msra.mxu0 0.0
    %2398 = vmatprep.subr.mxu0 0.0
    %2399 = vmatpush1.msra.mxu0 0.0
    %2400 = vmatprep.subr.mxu0 0.0
    %2401 = vmatpush1.msra.mxu0 0.0
    %2402 = vmatprep.subr.mxu0 0.0
    %2403 = vmatpush1.msra.mxu0 0.0
    %2404 = vmatprep.subr.mxu0 0.0
    %2405 = vmatpush1.msra.mxu0 0.0
    %2406 = vmatprep.subr.mxu0 0.0
    %2407 = vmatpush1.msra.mxu0 0.0
    %2408 = vmatprep.subr.mxu0 0.0
    %2409 = vmatpush1.msra.mxu0 %v2214
    %2410 = vmatprep.subr.mxu0 0.0
    %2411 = vmatpush1.msra.mxu0 %v2213
    %2412 = vmatprep.subr.mxu0 0.0
    %2413 = vmatpush1.msra.mxu0 %v2212
    %2414 = vmatprep.subr.mxu0 0.0
    %2415 = vmatpush1.msra.mxu0 %v2211
    %2416 = vmatprep.subr.mxu0 0.0
    %2417 = vmatpush2.msra.mxu0 0.0
    %2418 = vmatprep.subr.mxu0 0.0
    %2419 = vmatpush2.msra.mxu0 0.0
    %2420 = vmatprep.subr.mxu0 0.0
    %2421 = vmatpush2.msra.mxu0 0.0
    %2422 = vmatprep.subr.mxu0 0.0
    %2423 = vmatpush2.msra.mxu0 0.0
    %2424 = vmatprep.subr.mxu0 0.0
    %2425 = vmatpush2.msra.mxu0 0.0
    %2426 = vmatprep.subr.mxu0 0.0
    %2427 = vmatpush2.msra.mxu0 0.0
    %2428 = vmatprep.subr.mxu0 0.0
    %2429 = vmatpush2.msra.mxu0 0.0
    %2430 = vmatprep.subr.mxu0 0.0
    %2431 = vmatpush2.msra.mxu0 0.0
    %2432 = vmatprep.subr.mxu0 0.0
    %2433 = vmatpush2.msra.mxu0 0.0
    %2434 = vmatprep.subr.mxu0 0.0
    %2435 = vmatpush2.msra.mxu0 0.0
    %2436 = vmatprep.subr.mxu0 0.0
    %2437 = vmatpush2.msra.mxu0 0.0
    %2438 = vmatprep.subr.mxu0 0.0
    %2439 = vmatpush2.msra.mxu0 0.0
    %2440 = vmatprep.subr.mxu0 0.0
    %2441 = vmatpush2.msra.mxu0 0.0
    %2442 = vmatprep.subr.mxu0 0.0
    %2443 = vmatpush2.msra.mxu0 0.0
    %2444 = vmatprep.subr.mxu0 0.0
    %2445 = vmatpush2.msra.mxu0 0.0
    %2446 = vmatprep.subr.mxu0 0.0
    %2447 = vmatpush2.msra.mxu0 0.0
    %2448 = vmatprep.mubr.f32.mxu0 0.0
    %2449 = vmatmul.mubr.f32.gmra.mxu0 %v2382
    %v2450 = vpop.f32.mrf.mxu0
    %v2451 = vadd.f32 0.0, %v2450
    %v2452 = vpop.f32.mrf.mxu0
    %2453 = vdwg.mxu0
    %v2454 = vmul.f32 %v1719, %v187
    %v2455 = vmul.f32 %v1719, %v188
    %v2456 = vmul.f32 %v1719, %v189
    %v2457 = vmul.f32 %v1719, %v190
    %v2458 = vmul.f32 %v1805, %v187
    %v2459 = vmul.f32 %v1805, %v188
    %v2460 = vmul.f32 %v1805, %v189
    %v2461 = vmul.f32 %v1805, %v190
    %v2463 = vsel %vm196, %v1627, 0
    %v2466 = vsel %vm196, %v2454, 0
    %v2469 = vsel %vm196, %v2455, 0
    %v2472 = vsel %vm196, %v2456, 0
    %v2475 = vsel %vm196, %v2457, 0
    %2477 = vmatprep.subr.mxu0 0.0
    %2478 = vmatpush1.xpose.msra.mxu0 0.0
    %2479 = vmatprep.subr.mxu0 0.0
    %2480 = vmatpush1.xpose.msra.mxu0 0.0
    %2481 = vmatprep.subr.mxu0 0.0
    %2482 = vmatpush1.xpose.msra.mxu0 0.0
    %2483 = vmatprep.subr.mxu0 0.0
    %2484 = vmatpush1.xpose.msra.mxu0 0.0
    %2485 = vmatprep.subr.mxu0 0.0
    %2486 = vmatpush1.xpose.msra.mxu0 0.0
    %2487 = vmatprep.subr.mxu0 0.0
    %2488 = vmatpush1.xpose.msra.mxu0 0.0
    %2489 = vmatprep.subr.mxu0 0.0
    %2490 = vmatpush1.xpose.msra.mxu0 0.0
    %2491 = vmatprep.subr.mxu0 0.0
    %2492 = vmatpush1.xpose.msra.mxu0 0.0
    %2493 = vmatprep.subr.mxu0 0.0
    %2494 = vmatpush1.xpose.msra.mxu0 0.0
    %2495 = vmatprep.subr.mxu0 0.0
    %2496 = vmatpush1.xpose.msra.mxu0 0.0
    %2497 = vmatprep.subr.mxu0 0.0
    %2498 = vmatpush1.xpose.msra.mxu0 0.0
    %2499 = vmatprep.subr.mxu0 0.0
    %2500 = vmatpush1.xpose.msra.mxu0 0.0
    %2501 = vmatprep.subr.mxu0 0.0
    %2502 = vmatpush1.xpose.msra.mxu0 %v2475
    %2503 = vmatprep.subr.mxu0 0.0
    %2504 = vmatpush1.xpose.msra.mxu0 %v2472
    %2505 = vmatprep.subr.mxu0 0.0
    %2506 = vmatpush1.xpose.msra.mxu0 %v2469
    %2507 = vmatprep.subr.mxu0 0.0
    %2508 = vmatpush1.xpose.msra.mxu0 %v2466
    %2509 = vmatprep.subr.mxu0 0.0
    %2510 = vmatpush2.xpose.msra.mxu0 0.0
    %2511 = vmatprep.subr.mxu0 0.0
    %2512 = vmatpush2.xpose.msra.mxu0 0.0
    %2513 = vmatprep.subr.mxu0 0.0
    %2514 = vmatpush2.xpose.msra.mxu0 0.0
    %2515 = vmatprep.subr.mxu0 0.0
    %2516 = vmatpush2.xpose.msra.mxu0 0.0
    %2517 = vmatprep.subr.mxu0 0.0
    %2518 = vmatpush2.xpose.msra.mxu0 0.0
    %2519 = vmatprep.subr.mxu0 0.0
    %2520 = vmatpush2.xpose.msra.mxu0 0.0
    %2521 = vmatprep.subr.mxu0 0.0
    %2522 = vmatpush2.xpose.msra.mxu0 0.0
    %2523 = vmatprep.subr.mxu0 0.0
    %2524 = vmatpush2.xpose.msra.mxu0 0.0
    %2525 = vmatprep.subr.mxu0 0.0
    %2526 = vmatpush2.xpose.msra.mxu0 0.0
    %2527 = vmatprep.subr.mxu0 0.0
    %2528 = vmatpush2.xpose.msra.mxu0 0.0
    %2529 = vmatprep.subr.mxu0 0.0
    %2530 = vmatpush2.xpose.msra.mxu0 0.0
    %2531 = vmatprep.subr.mxu0 0.0
    %2532 = vmatpush2.xpose.msra.mxu0 0.0
    %2533 = vmatprep.subr.mxu0 0.0
    %2534 = vmatpush2.xpose.msra.mxu0 0.0
    %2535 = vmatprep.subr.mxu0 0.0
    %2536 = vmatpush2.xpose.msra.mxu0 0.0
    %2537 = vmatprep.subr.mxu0 0.0
    %2538 = vmatpush2.xpose.msra.mxu0 0.0
    %2539 = vmatprep.subr.mxu0 0.0
    %2540 = vmatpush2.xpose.msra.mxu0 0.0
    %2541 = vmatprep.mubr.f32.mxu0 0.0
    %2542 = vmatmul.mubr.f32.gmra.mxu0 %v2463
    %v2543 = vpop.f32.mrf.mxu0
    %v2544 = vadd.f32 0.0, %v2543
    %v2545 = vpop.f32.mrf.mxu0
    %2546 = vdwg.mxu0
    %v2547 = vsel %vm196, %v2544, -inf
    %2548 = vmax.xlane.f32.xlu0 %v2547
    %v2549 = vpop.xlane.xlu0 %2548
    %v2550 = vsub.f32 %v2544, %v2549
    %v2551 = vmul.f32 %v2550, 1.442695
    %v2552 = vpow.pop %v2551
    %v2554 = vsel %vm196, %v2552, 0
    %2556 = vmatprep.subr.mxu0 0.0
    %2557 = vmatpush1.msra.mxu0 0.0
    %2558 = vmatprep.subr.mxu0 0.0
    %2559 = vmatpush1.msra.mxu0 0.0
    %2560 = vmatprep.subr.mxu0 0.0
    %2561 = vmatpush1.msra.mxu0 0.0
    %2562 = vmatprep.subr.mxu0 0.0
    %2563 = vmatpush1.msra.mxu0 0.0
    %2564 = vmatprep.subr.mxu0 0.0
    %2565 = vmatpush1.msra.mxu0 0.0
    %2566 = vmatprep.subr.mxu0 0.0
    %2567 = vmatpush1.msra.mxu0 0.0
    %2568 = vmatprep.subr.mxu0 0.0
    %2569 = vmatpush1.msra.mxu0 0.0
    %2570 = vmatprep.subr.mxu0 0.0
    %2571 = vmatpush1.msra.mxu0 0.0
    %2572 = vmatprep.subr.mxu0 0.0
    %2573 = vmatpush1.msra.mxu0 0.0
    %2574 = vmatprep.subr.mxu0 0.0
    %2575 = vmatpush1.msra.mxu0 0.0
    %2576 = vmatprep.subr.mxu0 0.0
    %2577 = vmatpush1.msra.mxu0 0.0
    %2578 = vmatprep.subr.mxu0 0.0
    %2579 = vmatpush1.msra.mxu0 0.0
    %2580 = vmatprep.subr.mxu0 0.0
    %2581 = vmatpush1.msra.mxu0 %v194
    %2582 = vmatprep.subr.mxu0 0.0
    %2583 = vmatpush1.msra.mxu0 %v193
    %2584 = vmatprep.subr.mxu0 0.0
    %2585 = vmatpush1.msra.mxu0 %v192
    %2586 = vmatprep.subr.mxu0 0.0
    %2587 = vmatpush1.msra.mxu0 %v191
    %2588 = vmatprep.subr.mxu0 0.0
    %2589 = vmatpush2.msra.mxu0 0.0
    %2590 = vmatprep.subr.mxu0 0.0
    %2591 = vmatpush2.msra.mxu0 0.0
    %2592 = vmatprep.subr.mxu0 0.0
    %2593 = vmatpush2.msra.mxu0 0.0
    %2594 = vmatprep.subr.mxu0 0.0
    %2595 = vmatpush2.msra.mxu0 0.0
    %2596 = vmatprep.subr.mxu0 0.0
    %2597 = vmatpush2.msra.mxu0 0.0
    %2598 = vmatprep.subr.mxu0 0.0
    %2599 = vmatpush2.msra.mxu0 0.0
    %2600 = vmatprep.subr.mxu0 0.0
    %2601 = vmatpush2.msra.mxu0 0.0
    %2602 = vmatprep.subr.mxu0 0.0
    %2603 = vmatpush2.msra.mxu0 0.0
    %2604 = vmatprep.subr.mxu0 0.0
    %2605 = vmatpush2.msra.mxu0 0.0
    %2606 = vmatprep.subr.mxu0 0.0
    %2607 = vmatpush2.msra.mxu0 0.0
    %2608 = vmatprep.subr.mxu0 0.0
    %2609 = vmatpush2.msra.mxu0 0.0
    %2610 = vmatprep.subr.mxu0 0.0
    %2611 = vmatpush2.msra.mxu0 0.0
    %2612 = vmatprep.subr.mxu0 0.0
    %2613 = vmatpush2.msra.mxu0 0.0
    %2614 = vmatprep.subr.mxu0 0.0
    %2615 = vmatpush2.msra.mxu0 0.0
    %2616 = vmatprep.subr.mxu0 0.0
    %2617 = vmatpush2.msra.mxu0 0.0
    %2618 = vmatprep.subr.mxu0 0.0
    %2619 = vmatpush2.msra.mxu0 0.0
    %2620 = vmatprep.mubr.f32.mxu0 0.0
    %2621 = vmatmul.mubr.f32.gmra.mxu0 %v2554
    %v2622 = vpop.f32.mrf.mxu0
    %v2623 = vadd.f32 0.0, %v2622
    %v2624 = vpop.f32.mrf.mxu0
    %2625 = vdwg.mxu0
    %v2626 = vrcp.pop %v2623
    %v2627 = vmul.f32 %v2552, %v2626
    %v2629 = vsel %vm196, %v2627, 0
    %2631 = vmatprep.subr.mxu0 0.0
    %2632 = vmatpush1.msra.mxu0 0.0
    %2633 = vmatprep.subr.mxu0 0.0
    %2634 = vmatpush1.msra.mxu0 0.0
    %2635 = vmatprep.subr.mxu0 0.0
    %2636 = vmatpush1.msra.mxu0 0.0
    %2637 = vmatprep.subr.mxu0 0.0
    %2638 = vmatpush1.msra.mxu0 0.0
    %2639 = vmatprep.subr.mxu0 0.0
    %2640 = vmatpush1.msra.mxu0 0.0
    %2641 = vmatprep.subr.mxu0 0.0
    %2642 = vmatpush1.msra.mxu0 0.0
    %2643 = vmatprep.subr.mxu0 0.0
    %2644 = vmatpush1.msra.mxu0 0.0
    %2645 = vmatprep.subr.mxu0 0.0
    %2646 = vmatpush1.msra.mxu0 0.0
    %2647 = vmatprep.subr.mxu0 0.0
    %2648 = vmatpush1.msra.mxu0 0.0
    %2649 = vmatprep.subr.mxu0 0.0
    %2650 = vmatpush1.msra.mxu0 0.0
    %2651 = vmatprep.subr.mxu0 0.0
    %2652 = vmatpush1.msra.mxu0 0.0
    %2653 = vmatprep.subr.mxu0 0.0
    %2654 = vmatpush1.msra.mxu0 0.0
    %2655 = vmatprep.subr.mxu0 0.0
    %2656 = vmatpush1.msra.mxu0 %v2461
    %2657 = vmatprep.subr.mxu0 0.0
    %2658 = vmatpush1.msra.mxu0 %v2460
    %2659 = vmatprep.subr.mxu0 0.0
    %2660 = vmatpush1.msra.mxu0 %v2459
    %2661 = vmatprep.subr.mxu0 0.0
    %2662 = vmatpush1.msra.mxu0 %v2458
    %2663 = vmatprep.subr.mxu0 0.0
    %2664 = vmatpush2.msra.mxu0 0.0
    %2665 = vmatprep.subr.mxu0 0.0
    %2666 = vmatpush2.msra.mxu0 0.0
    %2667 = vmatprep.subr.mxu0 0.0
    %2668 = vmatpush2.msra.mxu0 0.0
    %2669 = vmatprep.subr.mxu0 0.0
    %2670 = vmatpush2.msra.mxu0 0.0
    %2671 = vmatprep.subr.mxu0 0.0
    %2672 = vmatpush2.msra.mxu0 0.0
    %2673 = vmatprep.subr.mxu0 0.0
    %2674 = vmatpush2.msra.mxu0 0.0
    %2675 = vmatprep.subr.mxu0 0.0
    %2676 = vmatpush2.msra.mxu0 0.0
    %2677 = vmatprep.subr.mxu0 0.0
    %2678 = vmatpush2.msra.mxu0 0.0
    %2679 = vmatprep.subr.mxu0 0.0
    %2680 = vmatpush2.msra.mxu0 0.0
    %2681 = vmatprep.subr.mxu0 0.0
    %2682 = vmatpush2.msra.mxu0 0.0
    %2683 = vmatprep.subr.mxu0 0.0
    %2684 = vmatpush2.msra.mxu0 0.0
    %2685 = vmatprep.subr.mxu0 0.0
    %2686 = vmatpush2.msra.mxu0 0.0
    %2687 = vmatprep.subr.mxu0 0.0
    %2688 = vmatpush2.msra.mxu0 0.0
    %2689 = vmatprep.subr.mxu0 0.0
    %2690 = vmatpush2.msra.mxu0 0.0
    %2691 = vmatprep.subr.mxu0 0.0
    %2692 = vmatpush2.msra.mxu0 0.0
    %2693 = vmatprep.subr.mxu0 0.0
    %2694 = vmatpush2.msra.mxu0 0.0
    %2695 = vmatprep.mubr.f32.mxu0 0.0
    %2696 = vmatmul.mubr.f32.gmra.mxu0 %v2629
    %v2697 = vpop.f32.mrf.mxu0
    %v2698 = vadd.f32 0.0, %v2697
    %v2699 = vpop.f32.mrf.mxu0
    %2700 = vdwg.mxu0
    %v2701 = vld [vmem:[%s63] sm:$0xff]
    %v2702 = vld [vmem:[%s63 + $0x8] sm:$0xff]
    %v2703 = vld [vmem:[%s63 + $0x10] sm:$0xff]
    %v2704 = vld [vmem:[%s63 + $0x18] sm:$0xff]
    %v2705 = vld [vmem:[%s65] sm:$0x1]
    %v2707 = vlaneseq
    %v2708 = vshrl.u32 %v2707, 7
    %v2709 = vsub.s32 0, %v2708
    %v2710 = vrot.slane %v2705, %v2709
    %v2713 = vsel %vm196, %v2451, 0
    %v2716 = vsel %vm196, %v2698, 0
    %2718 = vmatprep.subr.mxu0 0.0
    %2719 = vmatpush1.msra.mxu0 0.0
    %2720 = vmatprep.subr.mxu0 0.0
    %2721 = vmatpush1.msra.mxu0 0.0
    %2722 = vmatprep.subr.mxu0 0.0
    %2723 = vmatpush1.msra.mxu0 0.0
    %2724 = vmatprep.subr.mxu0 0.0
    %2725 = vmatpush1.msra.mxu0 0.0
    %2726 = vmatprep.subr.mxu0 0.0
    %2727 = vmatpush1.msra.mxu0 0.0
    %2728 = vmatprep.subr.mxu0 0.0
    %2729 = vmatpush1.msra.mxu0 0.0
    %2730 = vmatprep.subr.mxu0 0.0
    %2731 = vmatpush1.msra.mxu0 0.0
    %2732 = vmatprep.subr.mxu0 0.0
    %2733 = vmatpush1.msra.mxu0 0.0
    %2734 = vmatprep.subr.mxu0 0.0
    %2735 = vmatpush1.msra.mxu0 0.0
    %2736 = vmatprep.subr.mxu0 0.0
    %2737 = vmatpush1.msra.mxu0 0.0
    %2738 = vmatprep.subr.mxu0 0.0
    %2739 = vmatpush1.msra.mxu0 0.0
    %2740 = vmatprep.subr.mxu0 0.0
    %2741 = vmatpush1.msra.mxu0 0.0
    %2742 = vmatprep.subr.mxu0 0.0
    %2743 = vmatpush1.msra.mxu0 %v2704
    %2744 = vmatprep.subr.mxu0 0.0
    %2745 = vmatpush1.msra.mxu0 %v2703
    %2746 = vmatprep.subr.mxu0 0.0
    %2747 = vmatpush1.msra.mxu0 %v2702
    %2748 = vmatprep.subr.mxu0 0.0
    %2749 = vmatpush1.msra.mxu0 %v2701
    %2750 = vmatprep.subr.mxu0 0.0
    %2751 = vmatpush2.msra.mxu0 0.0
    %2752 = vmatprep.subr.mxu0 0.0
    %2753 = vmatpush2.msra.mxu0 0.0
    %2754 = vmatprep.subr.mxu0 0.0
    %2755 = vmatpush2.msra.mxu0 0.0
    %2756 = vmatprep.subr.mxu0 0.0
    %2757 = vmatpush2.msra.mxu0 0.0
    %2758 = vmatprep.subr.mxu0 0.0
    %2759 = vmatpush2.msra.mxu0 0.0
    %2760 = vmatprep.subr.mxu0 0.0
    %2761 = vmatpush2.msra.mxu0 0.0
    %2762 = vmatprep.subr.mxu0 0.0
    %2763 = vmatpush2.msra.mxu0 0.0
    %2764 = vmatprep.subr.mxu0 0.0
    %2765 = vmatpush2.msra.mxu0 0.0
    %2766 = vmatprep.subr.mxu0 0.0
    %2767 = vmatpush2.msra.mxu0 0.0
    %2768 = vmatprep.subr.mxu0 0.0
    %2769 = vmatpush2.msra.mxu0 0.0
    %2770 = vmatprep.subr.mxu0 0.0
    %2771 = vmatpush2.msra.mxu0 0.0
    %2772 = vmatprep.subr.mxu0 0.0
    %2773 = vmatpush2.msra.mxu0 0.0
    %2774 = vmatprep.subr.mxu0 0.0
    %2775 = vmatpush2.msra.mxu0 0.0
    %2776 = vmatprep.subr.mxu0 0.0
    %2777 = vmatpush2.msra.mxu0 0.0
    %2778 = vmatprep.subr.mxu0 0.0
    %2779 = vmatpush2.msra.mxu0 0.0
    %2780 = vmatprep.subr.mxu0 0.0
    %2781 = vmatpush2.msra.mxu0 0.0
    %2782 = vmatprep.mubr.f32.mxu0 0.0
    %2783 = vmatmul.mubr.f32.gmra.mxu0 %v2713
    %v2784 = vpop.f32.mrf.mxu0
    %v2785 = vadd.f32 %v2710, %v2784
    %v2786 = vpop.f32.mrf.mxu0
    %2787 = vmatprep.mubr.f32.mxu0 0.0
    %2788 = vmatmul.mubr.f32.gmra.mxu0 %v2716
    %v2789 = vpop.f32.mrf.mxu0
    %v2790 = vadd.f32 %v2710, %v2789
    %v2791 = vpop.f32.mrf.mxu0
    %2792 = vdwg.mxu0
    %v2793 = vadd.f32 %v1492, %v2785
    %v2794 = vadd.f32 %v1493, %v2790
    %v2795 = vsel %vm196, %v2793, 0.0
    %2796 = vadd.xlane.f32.xlu0 %v2795
    %v2797 = vpop.xlane.xlu0 %2796
    %v2798 = vsel %vm196, %v2794, 0.0
    %2799 = vadd.xlane.f32.xlu0 %v2798
    %v2800 = vpop.xlane.xlu0 %2799
    %v2801 = vmul.f32 %v2797, %v203
    %v2802 = vmul.f32 %v2800, %v203
    %v2803 = vsub.f32 %v2793, %v2801
    %v2804 = vsub.f32 %v2794, %v2802
    %v2805 = vmul.f32 %v2803, %v2803
    %v2806 = vmul.f32 %v2804, %v2804
    %v2807 = vsel %vm196, %v2805, 0.0
    %2808 = vadd.xlane.f32.xlu0 %v2807
    %v2809 = vpop.xlane.xlu0 %2808
    %v2810 = vsel %vm196, %v2806, 0.0
    %2811 = vadd.xlane.f32.xlu0 %v2810
    %v2812 = vpop.xlane.xlu0 %2811
    %v2813 = vmul.f32 %v2809, %v203
    %v2814 = vmul.f32 %v2812, %v203
    %v2815 = vadd.f32 %v2813, 1e-06
    %v2816 = vadd.f32 %v2814, 1e-06
    %v2817 = vrsqrt.pop %v2815
    %v2818 = vrsqrt.pop %v2816
    %v2819 = vmul.f32 %v2803, %v2817
    %v2820 = vmul.f32 %v2804, %v2818
    %v2821 = vld [vmem:[%s19] sm:$0x1]
    %v2823 = vlaneseq
    %v2824 = vshrl.u32 %v2823, 7
    %v2825 = vsub.s32 0, %v2824
    %v2826 = vrot.slane %v2821, %v2825
    %v2828 = vmul.f32 %v2819, %v2826
    %v2829 = vmul.f32 %v2820, %v2826
    %v2830 = vld [vmem:[%s21] sm:$0x1]
    %v2832 = vlaneseq
    %v2833 = vshrl.u32 %v2832, 7
    %v2834 = vsub.s32 0, %v2833
    %v2835 = vrot.slane %v2830, %v2834
    %v2837 = vadd.f32 %v2828, %v2835
    %v2838 = vadd.f32 %v2829, %v2835
    %v2839 = vld [vmem:[%s79] sm:$0xff]
    %v2840 = vld [vmem:[%s79 + $0x8] sm:$0xff]
    %v2841 = vld [vmem:[%s79 + $0x10] sm:$0xff]
    %v2842 = vld [vmem:[%s79 + $0x18] sm:$0xff]
    %v2843 = vld [vmem:[%s81] sm:$0x1]
    %v2845 = vlaneseq
    %v2846 = vshrl.u32 %v2845, 7
    %v2847 = vsub.s32 0, %v2846
    %v2848 = vrot.slane %v2843, %v2847
    %v2851 = vsel %vm196, %v2837, 0
    %v2854 = vsel %vm196, %v2838, 0
    %2856 = vmatprep.subr.mxu0 0.0
    %2857 = vmatpush1.msra.mxu0 0.0
    %2858 = vmatprep.subr.mxu0 0.0
    %2859 = vmatpush1.msra.mxu0 0.0
    %2860 = vmatprep.subr.mxu0 0.0
    %2861 = vmatpush1.msra.mxu0 0.0
    %2862 = vmatprep.subr.mxu0 0.0
    %2863 = vmatpush1.msra.mxu0 0.0
    %2864 = vmatprep.subr.mxu0 0.0
    %2865 = vmatpush1.msra.mxu0 0.0
    %2866 = vmatprep.subr.mxu0 0.0
    %2867 = vmatpush1.msra.mxu0 0.0
    %2868 = vmatprep.subr.mxu0 0.0
    %2869 = vmatpush1.msra.mxu0 0.0
    %2870 = vmatprep.subr.mxu0 0.0
    %2871 = vmatpush1.msra.mxu0 0.0
    %2872 = vmatprep.subr.mxu0 0.0
    %2873 = vmatpush1.msra.mxu0 0.0
    %2874 = vmatprep.subr.mxu0 0.0
    %2875 = vmatpush1.msra.mxu0 0.0
    %2876 = vmatprep.subr.mxu0 0.0
    %2877 = vmatpush1.msra.mxu0 0.0
    %2878 = vmatprep.subr.mxu0 0.0
    %2879 = vmatpush1.msra.mxu0 0.0
    %2880 = vmatprep.subr.mxu0 0.0
    %2881 = vmatpush1.msra.mxu0 %v2842
    %2882 = vmatprep.subr.mxu0 0.0
    %2883 = vmatpush1.msra.mxu0 %v2841
    %2884 = vmatprep.subr.mxu0 0.0
    %2885 = vmatpush1.msra.mxu0 %v2840
    %2886 = vmatprep.subr.mxu0 0.0
    %2887 = vmatpush1.msra.mxu0 %v2839
    %2888 = vmatprep.subr.mxu0 0.0
    %2889 = vmatpush2.msra.mxu0 0.0
    %2890 = vmatprep.subr.mxu0 0.0
    %2891 = vmatpush2.msra.mxu0 0.0
    %2892 = vmatprep.subr.mxu0 0.0
    %2893 = vmatpush2.msra.mxu0 0.0
    %2894 = vmatprep.subr.mxu0 0.0
    %2895 = vmatpush2.msra.mxu0 0.0
    %2896 = vmatprep.subr.mxu0 0.0
    %2897 = vmatpush2.msra.mxu0 0.0
    %2898 = vmatprep.subr.mxu0 0.0
    %2899 = vmatpush2.msra.mxu0 0.0
    %2900 = vmatprep.subr.mxu0 0.0
    %2901 = vmatpush2.msra.mxu0 0.0
    %2902 = vmatprep.subr.mxu0 0.0
    %2903 = vmatpush2.msra.mxu0 0.0
    %2904 = vmatprep.subr.mxu0 0.0
    %2905 = vmatpush2.msra.mxu0 0.0
    %2906 = vmatprep.subr.mxu0 0.0
    %2907 = vmatpush2.msra.mxu0 0.0
    %2908 = vmatprep.subr.mxu0 0.0
    %2909 = vmatpush2.msra.mxu0 0.0
    %2910 = vmatprep.subr.mxu0 0.0
    %2911 = vmatpush2.msra.mxu0 0.0
    %2912 = vmatprep.subr.mxu0 0.0
    %2913 = vmatpush2.msra.mxu0 0.0
    %2914 = vmatprep.subr.mxu0 0.0
    %2915 = vmatpush2.msra.mxu0 0.0
    %2916 = vmatprep.subr.mxu0 0.0
    %2917 = vmatpush2.msra.mxu0 0.0
    %2918 = vmatprep.subr.mxu0 0.0
    %2919 = vmatpush2.msra.mxu0 0.0
    %2920 = vmatprep.mubr.f32.mxu0 0.0
    %2921 = vmatmul.mubr.f32.gmra.mxu0 %v2851
    %v2922 = vpop.f32.mrf.mxu0
    %v2923 = vadd.f32 %v2848, %v2922
    %v2924 = vpop.f32.mrf.mxu0
    %2925 = vmatprep.mubr.f32.mxu0 0.0
    %2926 = vmatmul.mubr.f32.gmra.mxu0 %v2854
    %v2927 = vpop.f32.mrf.mxu0
    %v2928 = vadd.f32 %v2848, %v2927
    %v2929 = vpop.f32.mrf.mxu0
    %2930 = vdwg.mxu0
    %v2931 = vmax.f32 %v2923, 0.0
    %v2932 = vmax.f32 %v2928, 0.0
    %v2933 = vld [vmem:[%s83] sm:$0xff]
    %v2934 = vld [vmem:[%s83 + $0x8] sm:$0xff]
    %v2935 = vld [vmem:[%s83 + $0x10] sm:$0xff]
    %v2936 = vld [vmem:[%s83 + $0x18] sm:$0xff]
    %v2937 = vld [vmem:[%s83 + $0x20] sm:$0xff]
    %v2938 = vld [vmem:[%s83 + $0x28] sm:$0xff]
    %v2939 = vld [vmem:[%s83 + $0x30] sm:$0xff]
    %v2940 = vld [vmem:[%s83 + $0x38] sm:$0xff]
    %v2941 = vld [vmem:[%s85] sm:$0x1]
    %v2943 = vlaneseq
    %v2944 = vshrl.u32 %v2943, 7
    %v2945 = vsub.s32 0, %v2944
    %v2946 = vrot.slane %v2941, %v2945
    %vm2948 = vcmask 523264
    %v2950 = vsel %vm2948, %v2931, 0
    %v2953 = vsel %vm2948, %v2932, 0
    %2955 = vmatprep.subr.mxu0 0.0
    %2956 = vmatpush1.msra.mxu0 0.0
    %2957 = vmatprep.subr.mxu0 0.0
    %2958 = vmatpush1.msra.mxu0 0.0
    %2959 = vmatprep.subr.mxu0 0.0
    %2960 = vmatpush1.msra.mxu0 0.0
    %2961 = vmatprep.subr.mxu0 0.0
    %2962 = vmatpush1.msra.mxu0 0.0
    %2963 = vmatprep.subr.mxu0 0.0
    %2964 = vmatpush1.msra.mxu0 0.0
    %2965 = vmatprep.subr.mxu0 0.0
    %2966 = vmatpush1.msra.mxu0 0.0
    %2967 = vmatprep.subr.mxu0 0.0
    %2968 = vmatpush1.msra.mxu0 0.0
    %2969 = vmatprep.subr.mxu0 0.0
    %2970 = vmatpush1.msra.mxu0 0.0
    %2971 = vmatprep.subr.mxu0 0.0
    %2972 = vmatpush1.msra.mxu0 %v2940
    %2973 = vmatprep.subr.mxu0 0.0
    %2974 = vmatpush1.msra.mxu0 %v2939
    %2975 = vmatprep.subr.mxu0 0.0
    %2976 = vmatpush1.msra.mxu0 %v2938
    %2977 = vmatprep.subr.mxu0 0.0
    %2978 = vmatpush1.msra.mxu0 %v2937
    %2979 = vmatprep.subr.mxu0 0.0
    %2980 = vmatpush1.msra.mxu0 %v2936
    %2981 = vmatprep.subr.mxu0 0.0
    %2982 = vmatpush1.msra.mxu0 %v2935
    %2983 = vmatprep.subr.mxu0 0.0
    %2984 = vmatpush1.msra.mxu0 %v2934
    %2985 = vmatprep.subr.mxu0 0.0
    %2986 = vmatpush1.msra.mxu0 %v2933
    %2987 = vmatprep.subr.mxu0 0.0
    %2988 = vmatpush2.msra.mxu0 0.0
    %2989 = vmatprep.subr.mxu0 0.0
    %2990 = vmatpush2.msra.mxu0 0.0
    %2991 = vmatprep.subr.mxu0 0.0
    %2992 = vmatpush2.msra.mxu0 0.0
    %2993 = vmatprep.subr.mxu0 0.0
    %2994 = vmatpush2.msra.mxu0 0.0
    %2995 = vmatprep.subr.mxu0 0.0
    %2996 = vmatpush2.msra.mxu0 0.0
    %2997 = vmatprep.subr.mxu0 0.0
    %2998 = vmatpush2.msra.mxu0 0.0
    %2999 = vmatprep.subr.mxu0 0.0
    %3000 = vmatpush2.msra.mxu0 0.0
    %3001 = vmatprep.subr.mxu0 0.0
    %3002 = vmatpush2.msra.mxu0 0.0
    %3003 = vmatprep.subr.mxu0 0.0
    %3004 = vmatpush2.msra.mxu0 0.0
    %3005 = vmatprep.subr.mxu0 0.0
    %3006 = vmatpush2.msra.mxu0 0.0
    %3007 = vmatprep.subr.mxu0 0.0
    %3008 = vmatpush2.msra.mxu0 0.0
    %3009 = vmatprep.subr.mxu0 0.0
    %3010 = vmatpush2.msra.mxu0 0.0
    %3011 = vmatprep.subr.mxu0 0.0
    %3012 = vmatpush2.msra.mxu0 0.0
    %3013 = vmatprep.subr.mxu0 0.0
    %3014 = vmatpush2.msra.mxu0 0.0
    %3015 = vmatprep.subr.mxu0 0.0
    %3016 = vmatpush2.msra.mxu0 0.0
    %3017 = vmatprep.subr.mxu0 0.0
    %3018 = vmatpush2.msra.mxu0 0.0
    %3019 = vmatprep.mubr.f32.mxu0 0.0
    %3020 = vmatmul.mubr.f32.gmra.mxu0 %v2950
    %v3021 = vpop.f32.mrf.mxu0
    %v3022 = vadd.f32 %v2946, %v3021
    %v3023 = vpop.f32.mrf.mxu0
    %3024 = vmatprep.mubr.f32.mxu0 0.0
    %3025 = vmatmul.mubr.f32.gmra.mxu0 %v2953
    %v3026 = vpop.f32.mrf.mxu0
    %v3027 = vadd.f32 %v2946, %v3026
    %v3028 = vpop.f32.mrf.mxu0
    %3029 = vdwg.mxu0
    %v3030 = vadd.f32 %v2793, %v3022
    %v3031 = vadd.f32 %v2794, %v3027
    %3032 = vst.msk [vmem:[#allocation2] sm:$0xff] %vm196, %v3030
    %3033 = vst.msk [vmem:[#allocation2 + $0x8] sm:$0xff] %vm196, %v3031
    %v3034 = vadd.f32 %v902, %v2203
    %v3035 = vadd.f32 %v905, %v2206
    %v3036 = vadd.f32 %v3034, %v3035
    %v3037 = vrot.slane %v3036, 4
    %v3038 = vadd.f32 %v3036, %v3037
    %v3039 = vrot.slane %v3038, 2
    %v3040 = vadd.f32 %v3038, %v3039
    %v3041 = vrot.slane %v3040, 1
    %v3042 = vadd.f32 %v3040, %v3041
    %v3043 = vmul.f32 %v3042, 0.015625
    %vm3044 = vcmask 0
    %3045 = vst.msk [vmem:[#allocation4] sm:$0x1] %vm3044, %v3043
    // Predicated region
    $region174: #{decoder_layer.1} parent=1 // pred_check
      _
    $region175: #{decoder_layer.1} parent=1 // pred_check_branch
      %3047 = sbr.rel (0) target = $region177
    $region176: #{decoder_layer.1} parent=1 // pred_region
      %s3049 = ssub.s32 256, 256
      %3050 = vsyncadd [#allocation3], %s3049
      %s3051 = sshll.u32 [#allocation2], 4
      %s3052 = int_to_ptr.vmem [resolvable:$true] %s3051
      %3057 = dma.vmem_to_hbm [thread:$0]  %s3052, 256, %s87, [#allocation3], 128, 128, 8
    $region177: #{decoder_layer.1} parent=1 // pred_fallthru
      _
    // Predicated region
    $region178: #{decoder_layer.1} parent=1 // pred_check
      _
    $region179: #{decoder_layer.1} parent=1 // pred_check_branch
      %3059 = sbr.rel (0) target = $region181
    $region180: #{decoder_layer.1} parent=1 // pred_region
      %s3061 = ssub.s32 16, 16
      %3062 = vsyncadd [#allocation5], %s3061
      %s3064 = sshll.u32 [#allocation4], 4
      %s3065 = int_to_ptr.vmem [resolvable:$true] %s3064
      %3067 = dma.vmem_to_hbm [thread:$0]  %s3065, 16, %s89, [#allocation5]
    $region181: #{decoder_layer.1} parent=1 // pred_fallthru
      _
    // Predicated region
    $region182: #{decoder_layer.1} parent=1 // pred_check
      _
    $region183: #{decoder_layer.1} parent=1 // pred_check_branch
      %3069 = sbr.rel (0) target = $region185
    $region184: #{decoder_layer.1} parent=1 // pred_region
      %3070 = dma.done [#allocation3], 256
    $region185: #{decoder_layer.1} parent=1 // pred_fallthru
      _
    // Predicated region
    $region186: #{decoder_layer.1} parent=1 // pred_check
      _
    $region187: #{decoder_layer.1} parent=1 // pred_check_branch
      %3072 = sbr.rel (0) target = $region189
    $region188: #{decoder_layer.1} parent=1 // pred_region
      %3073 = dma.done [#allocation5], 16
    $region189: #{decoder_layer.1} parent=1 // pred_fallthru
      _
    %3074 = vsyncpa [#allocation3], 1
    %3075 = vsyncpa [#allocation5], 1

</llo_original>
